<compile_context>
chip_gen: v6e
topology: v6e:2x2x1
jax: 0.10.0
libtpu: 0.0.40
codegen_flags: <defaults>
</compile_context>

<pallas_src>
import jax
import jax.numpy as jnp
from jax.experimental import pallas as pl
from jax.experimental.pallas import tpu as pltpu


def _up_fused_kernel(x1_ref, x2_ref, wup_ref, bup_ref,
                     w1_ref, sc1_ref, sh1_ref,
                     w2_ref, sc2_ref, sh2_ref,
                     o_ref,
                     xc_ref, y1p_ref, p1_ref, p2_ref):
    # Static block shapes.
    _, F, T, Cin = x1_ref.shape
    _, H, W, Cout = x2_ref.shape
    C1 = 2 * Cout                      # channels after (virtual) concat
    Hu, Wu = 4 * F, T                  # ConvTranspose output spatial size
    pf = (H - Hu) // 2                 # F.pad offsets (torch ordering)
    pt = (W - Wu) // 2

    # ---- ConvTranspose2d(kernel=(4,1), stride=(4,1)) as one matmul ------------
    # u[f*T+t, kf*Cout+co] = sum_ci x1[f,t,ci] * W[ci,co,kf] + b[co]
    x1v = x1_ref[0].reshape(F * T, Cin)
    u = jnp.dot(x1v.astype(jnp.bfloat16), wup_ref[...],
                preferred_element_type=jnp.float32) + bup_ref[...]   # (F*T, 4*Cout)
    # Interleave the 4 kernel taps along frequency entirely with major-dim ops
    # (lane slice -> (F,1,T,Cout) -> concat on axis 1 -> merge): out row = 4f+kf.
    taps = [u[:, kf * Cout:(kf + 1) * Cout].reshape(F, 1, T, Cout)
            for kf in range(4)]
    x1_up = jnp.concatenate(taps, axis=1).reshape(Hu, Wu, Cout)      # (4F, T, Cout)

    # ---- zero-padded "concat" buffer in VMEM (replaces F.pad + torch.cat) -----
    xc_ref[...] = jnp.zeros(xc_ref.shape, xc_ref.dtype)
    xc_ref[1:1 + H, 1:1 + W, 0:Cout] = x2_ref[0]                     # channels [0,Cout)
    xc_ref[1 + pf:1 + pf + Hu, 1 + pt:1 + pt + Wu, Cout:C1] = x1_up  # channels [Cout,2Cout)

    # ---- conv1 (3x3, pad=1, no bias) + BN(eval) + ReLU as one K=9*C1 matmul ---
    for dh in range(3):
        for dw in range(3):
            idx = dh * 3 + dw
            p1_ref[:, idx * C1:(idx + 1) * C1] = (
                xc_ref[dh:dh + H, dw:dw + W, :].reshape(H * W, C1))
    acc1 = jnp.dot(p1_ref[...].astype(jnp.bfloat16), w1_ref[...],
                   preferred_element_type=jnp.float32)               # (H*W, Cout)
    y1 = jnp.maximum(acc1 * sc1_ref[...] + sh1_ref[...], 0.0)

    # ---- conv2 (3x3, pad=1, no bias) + BN(eval) + ReLU, y1 kept in VMEM -------
    y1p_ref[...] = jnp.zeros(y1p_ref.shape, y1p_ref.dtype)
    y1p_ref[1:1 + H, 1:1 + W, :] = y1.reshape(H, W, Cout)
    for dh in range(3):
        for dw in range(3):
            idx = dh * 3 + dw
            p2_ref[:, idx * Cout:(idx + 1) * Cout] = (
                y1p_ref[dh:dh + H, dw:dw + W, :].reshape(H * W, Cout))
    acc2 = jnp.dot(p2_ref[...].astype(jnp.bfloat16), w2_ref[...],
                   preferred_element_type=jnp.float32)               # (H*W, Cout)
    o_ref[0] = jnp.maximum(acc2 * sc2_ref[...] + sh2_ref[...], 0.0)


# ----------------------------------------------------------------------------
# Parameter init (deterministic, synthetic; BN in inference mode).
# ----------------------------------------------------------------------------
def init_up_params(key, in_ch, out_ch):
    ks = jax.random.split(key, 12)
    p = {}
    # ConvTranspose2d(in_ch, out_ch, kernel=(4,1), stride=(4,1)): torch layout
    # weight (in_ch, out_ch, 4, 1), bias (out_ch,)
    p["up_w"] = jax.random.normal(ks[0], (in_ch, out_ch, 4, 1), jnp.float32) * 0.1
    p["up_b"] = jax.random.normal(ks[1], (out_ch,), jnp.float32) * 0.1
    # DoubleConv: Conv2d(2*out_ch, out_ch, 3, pad=1, bias=False) x2, stored HWIO.
    p["conv1_w"] = jax.random.normal(ks[2], (3, 3, 2 * out_ch, out_ch), jnp.float32) * 0.1
    p["conv2_w"] = jax.random.normal(ks[3], (3, 3, out_ch, out_ch), jnp.float32) * 0.1
    # BatchNorm2d params + running stats (inference mode).
    p["bn1_gamma"] = 1.0 + 0.1 * jax.random.normal(ks[4], (out_ch,), jnp.float32)
    p["bn1_beta"] = 0.1 * jax.random.normal(ks[5], (out_ch,), jnp.float32)
    p["bn1_mean"] = 0.1 * jax.random.normal(ks[6], (out_ch,), jnp.float32)
    p["bn1_var"] = 1.0 + 0.1 * jax.random.uniform(ks[7], (out_ch,), jnp.float32)
    p["bn2_gamma"] = 1.0 + 0.1 * jax.random.normal(ks[8], (out_ch,), jnp.float32)
    p["bn2_beta"] = 0.1 * jax.random.normal(ks[9], (out_ch,), jnp.float32)
    p["bn2_mean"] = 0.1 * jax.random.normal(ks[10], (out_ch,), jnp.float32)
    p["bn2_var"] = 1.0 + 0.1 * jax.random.uniform(ks[11], (out_ch,), jnp.float32)
    return p


# ----------------------------------------------------------------------------
# Full forward pass: one fused pallas_call.
# ----------------------------------------------------------------------------
def up_forward(params, x1_nchw, x2_nchw):
    # NCHW -> NHWC (tiny tensors; required to match the PyTorch interface).
    x1 = jnp.transpose(x1_nchw, (0, 2, 3, 1)).astype(jnp.float32)   # (N, F, T, Cin)
    x2 = jnp.transpose(x2_nchw, (0, 2, 3, 1)).astype(jnp.float32)   # (N, H, W, Cout)
    N, F, T, Cin = x1.shape
    _, H, W, Cout = x2.shape
    assert H >= 4 * F and W >= T, "x2 must be at least as large as upsampled x1"
    C1 = 2 * Cout

    # ConvTranspose weight -> (Cin, 4*Cout) with column index kf*Cout + co (bf16
    # for the MXU); bias replicated per tap, kept f32 for the epilogue.
    wt = params["up_w"]                                              # (Cin, Cout, 4, 1)
    w_up = (jnp.transpose(wt[:, :, :, 0], (0, 2, 1))
            .reshape(Cin, 4 * Cout).astype(jnp.bfloat16))
    b_up = jnp.tile(params["up_b"], 4)[None, :]                      # (1, 4*Cout), f32

    # BN(eval) folded into per-channel scale/shift (f32 epilogue).
    eps = 1e-5
    sc1 = params["bn1_gamma"] / jnp.sqrt(params["bn1_var"] + eps)
    sh1 = params["bn1_beta"] - params["bn1_mean"] * sc1
    sc2 = params["bn2_gamma"] / jnp.sqrt(params["bn2_var"] + eps)
    sh2 = params["bn2_beta"] - params["bn2_mean"] * sc2

    # HWIO conv weights -> im2col matrices (9*Cin, Cout), row = (dh*3+dw)*Cin+ci.
    w1 = params["conv1_w"].reshape(9 * C1, Cout).astype(jnp.bfloat16)
    w2 = params["conv2_w"].reshape(9 * Cout, Cout).astype(jnp.bfloat16)

    out = pl.pallas_call(
        _up_fused_kernel,
        out_shape=jax.ShapeDtypeStruct((N, H * W, Cout), jnp.float32),
        grid=(N,),
        in_specs=[
            pl.BlockSpec((1, F, T, Cin), lambda n: (n, 0, 0, 0)),
            pl.BlockSpec((1, H, W, Cout), lambda n: (n, 0, 0, 0)),
            pl.BlockSpec((Cin, 4 * Cout), lambda n: (0, 0)),
            pl.BlockSpec((1, 4 * Cout), lambda n: (0, 0)),
            pl.BlockSpec((9 * C1, Cout), lambda n: (0, 0)),
            pl.BlockSpec((1, Cout), lambda n: (0, 0)),
            pl.BlockSpec((1, Cout), lambda n: (0, 0)),
            pl.BlockSpec((9 * Cout, Cout), lambda n: (0, 0)),
            pl.BlockSpec((1, Cout), lambda n: (0, 0)),
            pl.BlockSpec((1, Cout), lambda n: (0, 0)),
        ],
        out_specs=pl.BlockSpec((1, H * W, Cout), lambda n: (n, 0, 0)),
        scratch_shapes=[
            pltpu.VMEM((H + 2, W + 2, C1), jnp.float32),     # padded concat buffer
            pltpu.VMEM((H + 2, W + 2, Cout), jnp.float32),   # padded conv1 activation
            pltpu.VMEM((H * W, 9 * C1), jnp.float32),        # im2col patches, conv1
            pltpu.VMEM((H * W, 9 * Cout), jnp.float32),      # im2col patches, conv2
        ],
        compiler_params=pltpu.CompilerParams(
            dimension_semantics=("parallel",)),
    )(x1, x2, w_up, b_up, w1, sc1[None, :], sh1[None, :],
      w2, sc2[None, :], sh2[None, :])

    # (N, H*W, Cout) -> NCHW. Only remaining wrapper-side layout op (tiny).
    y = out.reshape(N, H, W, Cout)
    return jnp.transpose(y, (0, 3, 1, 2))


if __name__ == "__main__":
    key = jax.random.PRNGKey(0)
    in_ch, out_ch = 16, 8
    N, F, T = 2, 8, 8                       # x1 frequency dim F, time dim T

    k1, k2, kp = jax.random.split(key, 3)
    x1 = jax.random.normal(k1, (N, in_ch, F, T), jnp.float32)        # NCHW
    x2 = jax.random.normal(k2, (N, out_ch, 4 * F, T), jnp.float32)   # NCHW
    params = init_up_params(kp, in_ch, out_ch)

    out = jax.block_until_ready(jax.jit(up_forward)(params, x1, x2))
    assert out.shape == (N, out_ch, 4 * F, T), out.shape
    assert bool(jnp.all(jnp.isfinite(out)))
    print("KERNEL_OK")
</pallas_src>

<mosaic_0001>
module attributes {stable_mosaic.version = 11 : i64} {
  func.func @_up_fused_kernel(%arg0: i32, %arg1: memref<1x8x8x16xf32, #tpu.memory_space<vmem>>, %arg2: memref<1x32x8x8xf32, #tpu.memory_space<vmem>>, %arg3: memref<16x32xbf16, #tpu.memory_space<vmem>>, %arg4: memref<1x32xf32, #tpu.memory_space<vmem>>, %arg5: memref<144x8xbf16, #tpu.memory_space<vmem>>, %arg6: memref<1x8xf32, #tpu.memory_space<vmem>>, %arg7: memref<1x8xf32, #tpu.memory_space<vmem>>, %arg8: memref<72x8xbf16, #tpu.memory_space<vmem>>, %arg9: memref<1x8xf32, #tpu.memory_space<vmem>>, %arg10: memref<1x8xf32, #tpu.memory_space<vmem>>, %arg11: memref<1x256x8xf32, #tpu.memory_space<vmem>>, %arg12: memref<34x10x16xf32, #tpu.memory_space<vmem>>, %arg13: memref<34x10x8xf32, #tpu.memory_space<vmem>>, %arg14: memref<256x144xf32, #tpu.memory_space<vmem>>, %arg15: memref<256x72xf32, #tpu.memory_space<vmem>>) attributes {dimension_semantics = [#tpu.dimension_semantics<parallel>], iteration_bounds = array<i64: 2>, scalar_prefetch = 0 : i64, scratch_operands = 4 : i64, tpu.core_type = #tpu.core_type<tc>, window_params = [{transform_indices = @transform_0, window_bounds = array<i64: 1, 8, 8, 16>}, {transform_indices = @transform_1, window_bounds = array<i64: 1, 32, 8, 8>}, {pipeline_mode = #tpu.pipeline_mode<synchronous>, transform_indices = @transform_2, window_bounds = array<i64: 16, 32>}, {pipeline_mode = #tpu.pipeline_mode<synchronous>, transform_indices = @transform_3, window_bounds = array<i64: 1, 32>}, {pipeline_mode = #tpu.pipeline_mode<synchronous>, transform_indices = @transform_4, window_bounds = array<i64: 144, 8>}, {pipeline_mode = #tpu.pipeline_mode<synchronous>, transform_indices = @transform_5, window_bounds = array<i64: 1, 8>}, {pipeline_mode = #tpu.pipeline_mode<synchronous>, transform_indices = @transform_6, window_bounds = array<i64: 1, 8>}, {pipeline_mode = #tpu.pipeline_mode<synchronous>, transform_indices = @transform_7, window_bounds = array<i64: 72, 8>}, {pipeline_mode = #tpu.pipeline_mode<synchronous>, transform_indices = @transform_8, window_bounds = array<i64: 1, 8>}, {pipeline_mode = #tpu.pipeline_mode<synchronous>, transform_indices = @transform_9, window_bounds = array<i64: 1, 8>}, {transform_indices = @transform_10, window_bounds = array<i64: 1, 256, 8>}]} {
    %c0 = arith.constant 0 : index
    %c0_0 = arith.constant 0 : index
    %c0_1 = arith.constant 0 : index
    %c0_2 = arith.constant 0 : index
    %0 = vector.load %arg1[%c0, %c0_0, %c0_1, %c0_2] : memref<1x8x8x16xf32, #tpu.memory_space<vmem>>, vector<1x8x8x16xf32>
    %1 = vector.shape_cast %0 : vector<1x8x8x16xf32> to vector<8x8x16xf32>
    %2 = vector.shape_cast %1 : vector<8x8x16xf32> to vector<64x16xf32>
    %3 = arith.truncf %2 : vector<64x16xf32> to vector<64x16xbf16>
    %c0_3 = arith.constant 0 : index
    %c0_4 = arith.constant 0 : index
    %4 = vector.load %arg3[%c0_3, %c0_4] : memref<16x32xbf16, #tpu.memory_space<vmem>>, vector<16x32xbf16>
    %cst = arith.constant dense<0.000000e+00> : vector<64x32xf32>
    %5 = tpu.matmul %3, %4, %cst {dimension_numbers = #tpu.dot_dimension_numbers<[1], [0], [0], [1], [0, 0, 1, 1], [], []>} : vector<64x16xbf16>, vector<16x32xbf16>, vector<64x32xf32> -> vector<64x32xf32>
    %c0_5 = arith.constant 0 : index
    %c0_6 = arith.constant 0 : index
    %6 = vector.load %arg4[%c0_5, %c0_6] : memref<1x32xf32, #tpu.memory_space<vmem>>, vector<1x32xf32>
    %7 = vector.broadcast %6 : vector<1x32xf32> to vector<64x32xf32>
    %8 = arith.addf %5, %7 : vector<64x32xf32>
    %9 = vector.extract_strided_slice %8 {offsets = [0, 0], sizes = [64, 8], strides = [1, 1]} : vector<64x32xf32> to vector<64x8xf32>
    %10 = vector.shape_cast %9 : vector<64x8xf32> to vector<8x1x8x8xf32>
    %11 = vector.extract_strided_slice %8 {offsets = [0, 8], sizes = [64, 8], strides = [1, 1]} : vector<64x32xf32> to vector<64x8xf32>
    %12 = vector.shape_cast %11 : vector<64x8xf32> to vector<8x1x8x8xf32>
    %13 = vector.extract_strided_slice %8 {offsets = [0, 16], sizes = [64, 8], strides = [1, 1]} : vector<64x32xf32> to vector<64x8xf32>
    %14 = vector.shape_cast %13 : vector<64x8xf32> to vector<8x1x8x8xf32>
    %15 = vector.extract_strided_slice %8 {offsets = [0, 24], sizes = [64, 8], strides = [1, 1]} : vector<64x32xf32> to vector<64x8xf32>
    %16 = vector.shape_cast %15 : vector<64x8xf32> to vector<8x1x8x8xf32>
    %17 = tpu.concatenate %10, %12, %14, %16 in 1 : vector<8x1x8x8xf32>, vector<8x1x8x8xf32>, vector<8x1x8x8xf32>, vector<8x1x8x8xf32> -> vector<8x4x8x8xf32>
    %18 = vector.shape_cast %17 : vector<8x4x8x8xf32> to vector<32x8x8xf32>
    %cst_7 = arith.constant 0.000000e+00 : f32
    %19 = vector.broadcast %cst_7 : f32 to vector<34x10x16xf32>
    %c0_8 = arith.constant 0 : index
    %c0_9 = arith.constant 0 : index
    %c0_10 = arith.constant 0 : index
    %20 = vector.load %arg12[%c0_8, %c0_9, %c0_10] : memref<34x10x16xf32, #tpu.memory_space<vmem>>, vector<34x10x16xf32>
    tpu.vector_store %arg12[%c0_8, %c0_9, %c0_10], %19 {strides = array<i32>} : memref<34x10x16xf32, #tpu.memory_space<vmem>>, vector<34x10x16xf32>,
    %c0_11 = arith.constant 0 : index
    %c0_12 = arith.constant 0 : index
    %c0_13 = arith.constant 0 : index
    %c0_14 = arith.constant 0 : index
    %21 = vector.load %arg2[%c0_11, %c0_12, %c0_13, %c0_14] : memref<1x32x8x8xf32, #tpu.memory_space<vmem>>, vector<1x32x8x8xf32>
    %22 = vector.shape_cast %21 : vector<1x32x8x8xf32> to vector<32x8x8xf32>
    %c1 = arith.constant 1 : index
    %c1_15 = arith.constant 1 : index
    %c0_16 = arith.constant 0 : index
    %23 = vector.load %arg12[%c1, %c1_15, %c0_16] : memref<34x10x16xf32, #tpu.memory_space<vmem>>, vector<32x8x8xf32>
    tpu.vector_store %arg12[%c1, %c1_15, %c0_16], %22 {strides = array<i32>} : memref<34x10x16xf32, #tpu.memory_space<vmem>>, vector<32x8x8xf32>,
    %c1_17 = arith.constant 1 : index
    %c1_18 = arith.constant 1 : index
    %c8 = arith.constant 8 : index
    %24 = vector.load %arg12[%c1_17, %c1_18, %c8] : memref<34x10x16xf32, #tpu.memory_space<vmem>>, vector<32x8x8xf32>
    tpu.vector_store %arg12[%c1_17, %c1_18, %c8], %18 {strides = array<i32>} : memref<34x10x16xf32, #tpu.memory_space<vmem>>, vector<32x8x8xf32>,
    %c0_19 = arith.constant 0 : index
    %c0_20 = arith.constant 0 : index
    %c0_21 = arith.constant 0 : index
    %25 = vector.load %arg12[%c0_19, %c0_20, %c0_21] : memref<34x10x16xf32, #tpu.memory_space<vmem>>, vector<32x8x16xf32>
    %26 = vector.shape_cast %25 : vector<32x8x16xf32> to vector<256x16xf32>
    %c0_22 = arith.constant 0 : index
    %c0_23 = arith.constant 0 : index
    %27 = vector.load %arg14[%c0_22, %c0_23] : memref<256x144xf32, #tpu.memory_space<vmem>>, vector<256x16xf32>
    tpu.vector_store %arg14[%c0_22, %c0_23], %26 {strides = array<i32>} : memref<256x144xf32, #tpu.memory_space<vmem>>, vector<256x16xf32>,
    %c0_24 = arith.constant 0 : index
    %c1_25 = arith.constant 1 : index
    %c0_26 = arith.constant 0 : index
    %28 = vector.load %arg12[%c0_24, %c1_25, %c0_26] : memref<34x10x16xf32, #tpu.memory_space<vmem>>, vector<32x8x16xf32>
    %29 = vector.shape_cast %28 : vector<32x8x16xf32> to vector<256x16xf32>
    %c0_27 = arith.constant 0 : index
    %c16 = arith.constant 16 : index
    %30 = vector.load %arg14[%c0_27, %c16] : memref<256x144xf32, #tpu.memory_space<vmem>>, vector<256x16xf32>
    tpu.vector_store %arg14[%c0_27, %c16], %29 {strides = array<i32>} : memref<256x144xf32, #tpu.memory_space<vmem>>, vector<256x16xf32>,
    %c0_28 = arith.constant 0 : index
    %c2 = arith.constant 2 : index
    %c0_29 = arith.constant 0 : index
    %31 = vector.load %arg12[%c0_28, %c2, %c0_29] : memref<34x10x16xf32, #tpu.memory_space<vmem>>, vector<32x8x16xf32>
    %32 = vector.shape_cast %31 : vector<32x8x16xf32> to vector<256x16xf32>
    %c0_30 = arith.constant 0 : index
    %c32 = arith.constant 32 : index
    %33 = vector.load %arg14[%c0_30, %c32] : memref<256x144xf32, #tpu.memory_space<vmem>>, vector<256x16xf32>
    tpu.vector_store %arg14[%c0_30, %c32], %32 {strides = array<i32>} : memref<256x144xf32, #tpu.memory_space<vmem>>, vector<256x16xf32>,
    %c1_31 = arith.constant 1 : index
    %c0_32 = arith.constant 0 : index
    %c0_33 = arith.constant 0 : index
    %34 = vector.load %arg12[%c1_31, %c0_32, %c0_33] : memref<34x10x16xf32, #tpu.memory_space<vmem>>, vector<32x8x16xf32>
    %35 = vector.shape_cast %34 : vector<32x8x16xf32> to vector<256x16xf32>
    %c0_34 = arith.constant 0 : index
    %c48 = arith.constant 48 : index
    %36 = vector.load %arg14[%c0_34, %c48] : memref<256x144xf32, #tpu.memory_space<vmem>>, vector<256x16xf32>
    tpu.vector_store %arg14[%c0_34, %c48], %35 {strides = array<i32>} : memref<256x144xf32, #tpu.memory_space<vmem>>, vector<256x16xf32>,
    %c1_35 = arith.constant 1 : index
    %c1_36 = arith.constant 1 : index
    %c0_37 = arith.constant 0 : index
    %37 = vector.load %arg12[%c1_35, %c1_36, %c0_37] : memref<34x10x16xf32, #tpu.memory_space<vmem>>, vector<32x8x16xf32>
    %38 = vector.shape_cast %37 : vector<32x8x16xf32> to vector<256x16xf32>
    %c0_38 = arith.constant 0 : index
    %c64 = arith.constant 64 : index
    %39 = vector.load %arg14[%c0_38, %c64] : memref<256x144xf32, #tpu.memory_space<vmem>>, vector<256x16xf32>
    tpu.vector_store %arg14[%c0_38, %c64], %38 {strides = array<i32>} : memref<256x144xf32, #tpu.memory_space<vmem>>, vector<256x16xf32>,
    %c1_39 = arith.constant 1 : index
    %c2_40 = arith.constant 2 : index
    %c0_41 = arith.constant 0 : index
    %40 = vector.load %arg12[%c1_39, %c2_40, %c0_41] : memref<34x10x16xf32, #tpu.memory_space<vmem>>, vector<32x8x16xf32>
    %41 = vector.shape_cast %40 : vector<32x8x16xf32> to vector<256x16xf32>
    %c0_42 = arith.constant 0 : index
    %c80 = arith.constant 80 : index
    %42 = vector.load %arg14[%c0_42, %c80] : memref<256x144xf32, #tpu.memory_space<vmem>>, vector<256x16xf32>
    tpu.vector_store %arg14[%c0_42, %c80], %41 {strides = array<i32>} : memref<256x144xf32, #tpu.memory_space<vmem>>, vector<256x16xf32>,
    %c2_43 = arith.constant 2 : index
    %c0_44 = arith.constant 0 : index
    %c0_45 = arith.constant 0 : index
    %43 = vector.load %arg12[%c2_43, %c0_44, %c0_45] : memref<34x10x16xf32, #tpu.memory_space<vmem>>, vector<32x8x16xf32>
    %44 = vector.shape_cast %43 : vector<32x8x16xf32> to vector<256x16xf32>
    %c0_46 = arith.constant 0 : index
    %c96 = arith.constant 96 : index
    %45 = vector.load %arg14[%c0_46, %c96] : memref<256x144xf32, #tpu.memory_space<vmem>>, vector<256x16xf32>
    tpu.vector_store %arg14[%c0_46, %c96], %44 {strides = array<i32>} : memref<256x144xf32, #tpu.memory_space<vmem>>, vector<256x16xf32>,
    %c2_47 = arith.constant 2 : index
    %c1_48 = arith.constant 1 : index
    %c0_49 = arith.constant 0 : index
    %46 = vector.load %arg12[%c2_47, %c1_48, %c0_49] : memref<34x10x16xf32, #tpu.memory_space<vmem>>, vector<32x8x16xf32>
    %47 = vector.shape_cast %46 : vector<32x8x16xf32> to vector<256x16xf32>
    %c0_50 = arith.constant 0 : index
    %c112 = arith.constant 112 : index
    %48 = vector.load %arg14[%c0_50, %c112] : memref<256x144xf32, #tpu.memory_space<vmem>>, vector<256x16xf32>
    tpu.vector_store %arg14[%c0_50, %c112], %47 {strides = array<i32>} : memref<256x144xf32, #tpu.memory_space<vmem>>, vector<256x16xf32>,
    %c2_51 = arith.constant 2 : index
    %c2_52 = arith.constant 2 : index
    %c0_53 = arith.constant 0 : index
    %49 = vector.load %arg12[%c2_51, %c2_52, %c0_53] : memref<34x10x16xf32, #tpu.memory_space<vmem>>, vector<32x8x16xf32>
    %50 = vector.shape_cast %49 : vector<32x8x16xf32> to vector<256x16xf32>
    %c0_54 = arith.constant 0 : index
    %c128 = arith.constant 128 : index
    %51 = vector.load %arg14[%c0_54, %c128] : memref<256x144xf32, #tpu.memory_space<vmem>>, vector<256x16xf32>
    tpu.vector_store %arg14[%c0_54, %c128], %50 {strides = array<i32>} : memref<256x144xf32, #tpu.memory_space<vmem>>, vector<256x16xf32>,
    %c0_55 = arith.constant 0 : index
    %c0_56 = arith.constant 0 : index
    %52 = vector.load %arg14[%c0_55, %c0_56] : memref<256x144xf32, #tpu.memory_space<vmem>>, vector<256x144xf32>
    %53 = arith.truncf %52 : vector<256x144xf32> to vector<256x144xbf16>
    %c0_57 = arith.constant 0 : index
    %c0_58 = arith.constant 0 : index
    %54 = vector.load %arg5[%c0_57, %c0_58] : memref<144x8xbf16, #tpu.memory_space<vmem>>, vector<144x8xbf16>
    %cst_59 = arith.constant dense<0.000000e+00> : vector<256x8xf32>
    %55 = tpu.matmul %53, %54, %cst_59 {dimension_numbers = #tpu.dot_dimension_numbers<[1], [0], [0], [1], [0, 0, 1, 1], [], []>} : vector<256x144xbf16>, vector<144x8xbf16>, vector<256x8xf32> -> vector<256x8xf32>
    %c0_60 = arith.constant 0 : index
    %c0_61 = arith.constant 0 : index
    %56 = vector.load %arg6[%c0_60, %c0_61] : memref<1x8xf32, #tpu.memory_space<vmem>>, vector<1x8xf32>
    %57 = vector.broadcast %56 : vector<1x8xf32> to vector<256x8xf32>
    %58 = arith.mulf %55, %57 : vector<256x8xf32>
    %c0_62 = arith.constant 0 : index
    %c0_63 = arith.constant 0 : index
    %59 = vector.load %arg7[%c0_62, %c0_63] : memref<1x8xf32, #tpu.memory_space<vmem>>, vector<1x8xf32>
    %60 = vector.broadcast %59 : vector<1x8xf32> to vector<256x8xf32>
    %61 = arith.addf %58, %60 : vector<256x8xf32>
    %cst_64 = arith.constant 0.000000e+00 : f32
    %62 = vector.broadcast %cst_64 : f32 to vector<256x8xf32>
    %63 = arith.maximumf %61, %62 : vector<256x8xf32>
    %cst_65 = arith.constant 0.000000e+00 : f32
    %64 = vector.broadcast %cst_65 : f32 to vector<34x10x8xf32>
    %c0_66 = arith.constant 0 : index
    %c0_67 = arith.constant 0 : index
    %c0_68 = arith.constant 0 : index
    %65 = vector.load %arg13[%c0_66, %c0_67, %c0_68] : memref<34x10x8xf32, #tpu.memory_space<vmem>>, vector<34x10x8xf32>
    tpu.vector_store %arg13[%c0_66, %c0_67, %c0_68], %64 {strides = array<i32>} : memref<34x10x8xf32, #tpu.memory_space<vmem>>, vector<34x10x8xf32>,
    %66 = vector.shape_cast %63 : vector<256x8xf32> to vector<32x8x8xf32>
    %c1_69 = arith.constant 1 : index
    %c1_70 = arith.constant 1 : index
    %c0_71 = arith.constant 0 : index
    %67 = vector.load %arg13[%c1_69, %c1_70, %c0_71] : memref<34x10x8xf32, #tpu.memory_space<vmem>>, vector<32x8x8xf32>
    tpu.vector_store %arg13[%c1_69, %c1_70, %c0_71], %66 {strides = array<i32>} : memref<34x10x8xf32, #tpu.memory_space<vmem>>, vector<32x8x8xf32>,
    %c0_72 = arith.constant 0 : index
    %c0_73 = arith.constant 0 : index
    %c0_74 = arith.constant 0 : index
    %68 = vector.load %arg13[%c0_72, %c0_73, %c0_74] : memref<34x10x8xf32, #tpu.memory_space<vmem>>, vector<32x8x8xf32>
    %69 = vector.shape_cast %68 : vector<32x8x8xf32> to vector<256x8xf32>
    %c0_75 = arith.constant 0 : index
    %c0_76 = arith.constant 0 : index
    %70 = vector.load %arg15[%c0_75, %c0_76] : memref<256x72xf32, #tpu.memory_space<vmem>>, vector<256x8xf32>
    tpu.vector_store %arg15[%c0_75, %c0_76], %69 {strides = array<i32>} : memref<256x72xf32, #tpu.memory_space<vmem>>, vector<256x8xf32>,
    %c0_77 = arith.constant 0 : index
    %c1_78 = arith.constant 1 : index
    %c0_79 = arith.constant 0 : index
    %71 = vector.load %arg13[%c0_77, %c1_78, %c0_79] : memref<34x10x8xf32, #tpu.memory_space<vmem>>, vector<32x8x8xf32>
    %72 = vector.shape_cast %71 : vector<32x8x8xf32> to vector<256x8xf32>
    %c0_80 = arith.constant 0 : index
    %c8_81 = arith.constant 8 : index
    %73 = vector.load %arg15[%c0_80, %c8_81] : memref<256x72xf32, #tpu.memory_space<vmem>>, vector<256x8xf32>
    tpu.vector_store %arg15[%c0_80, %c8_81], %72 {strides = array<i32>} : memref<256x72xf32, #tpu.memory_space<vmem>>, vector<256x8xf32>,
    %c0_82 = arith.constant 0 : index
    %c2_83 = arith.constant 2 : index
    %c0_84 = arith.constant 0 : index
    %74 = vector.load %arg13[%c0_82, %c2_83, %c0_84] : memref<34x10x8xf32, #tpu.memory_space<vmem>>, vector<32x8x8xf32>
    %75 = vector.shape_cast %74 : vector<32x8x8xf32> to vector<256x8xf32>
    %c0_85 = arith.constant 0 : index
    %c16_86 = arith.constant 16 : index
    %76 = vector.load %arg15[%c0_85, %c16_86] : memref<256x72xf32, #tpu.memory_space<vmem>>, vector<256x8xf32>
    tpu.vector_store %arg15[%c0_85, %c16_86], %75 {strides = array<i32>} : memref<256x72xf32, #tpu.memory_space<vmem>>, vector<256x8xf32>,
    %c1_87 = arith.constant 1 : index
    %c0_88 = arith.constant 0 : index
    %c0_89 = arith.constant 0 : index
    %77 = vector.load %arg13[%c1_87, %c0_88, %c0_89] : memref<34x10x8xf32, #tpu.memory_space<vmem>>, vector<32x8x8xf32>
    %78 = vector.shape_cast %77 : vector<32x8x8xf32> to vector<256x8xf32>
    %c0_90 = arith.constant 0 : index
    %c24 = arith.constant 24 : index
    %79 = vector.load %arg15[%c0_90, %c24] : memref<256x72xf32, #tpu.memory_space<vmem>>, vector<256x8xf32>
    tpu.vector_store %arg15[%c0_90, %c24], %78 {strides = array<i32>} : memref<256x72xf32, #tpu.memory_space<vmem>>, vector<256x8xf32>,
    %c1_91 = arith.constant 1 : index
    %c1_92 = arith.constant 1 : index
    %c0_93 = arith.constant 0 : index
    %80 = vector.load %arg13[%c1_91, %c1_92, %c0_93] : memref<34x10x8xf32, #tpu.memory_space<vmem>>, vector<32x8x8xf32>
    %81 = vector.shape_cast %80 : vector<32x8x8xf32> to vector<256x8xf32>
    %c0_94 = arith.constant 0 : index
    %c32_95 = arith.constant 32 : index
    %82 = vector.load %arg15[%c0_94, %c32_95] : memref<256x72xf32, #tpu.memory_space<vmem>>, vector<256x8xf32>
    tpu.vector_store %arg15[%c0_94, %c32_95], %81 {strides = array<i32>} : memref<256x72xf32, #tpu.memory_space<vmem>>, vector<256x8xf32>,
    %c1_96 = arith.constant 1 : index
    %c2_97 = arith.constant 2 : index
    %c0_98 = arith.constant 0 : index
    %83 = vector.load %arg13[%c1_96, %c2_97, %c0_98] : memref<34x10x8xf32, #tpu.memory_space<vmem>>, vector<32x8x8xf32>
    %84 = vector.shape_cast %83 : vector<32x8x8xf32> to vector<256x8xf32>
    %c0_99 = arith.constant 0 : index
    %c40 = arith.constant 40 : index
    %85 = vector.load %arg15[%c0_99, %c40] : memref<256x72xf32, #tpu.memory_space<vmem>>, vector<256x8xf32>
    tpu.vector_store %arg15[%c0_99, %c40], %84 {strides = array<i32>} : memref<256x72xf32, #tpu.memory_space<vmem>>, vector<256x8xf32>,
    %c2_100 = arith.constant 2 : index
    %c0_101 = arith.constant 0 : index
    %c0_102 = arith.constant 0 : index
    %86 = vector.load %arg13[%c2_100, %c0_101, %c0_102] : memref<34x10x8xf32, #tpu.memory_space<vmem>>, vector<32x8x8xf32>
    %87 = vector.shape_cast %86 : vector<32x8x8xf32> to vector<256x8xf32>
    %c0_103 = arith.constant 0 : index
    %c48_104 = arith.constant 48 : index
    %88 = vector.load %arg15[%c0_103, %c48_104] : memref<256x72xf32, #tpu.memory_space<vmem>>, vector<256x8xf32>
    tpu.vector_store %arg15[%c0_103, %c48_104], %87 {strides = array<i32>} : memref<256x72xf32, #tpu.memory_space<vmem>>, vector<256x8xf32>,
    %c2_105 = arith.constant 2 : index
    %c1_106 = arith.constant 1 : index
    %c0_107 = arith.constant 0 : index
    %89 = vector.load %arg13[%c2_105, %c1_106, %c0_107] : memref<34x10x8xf32, #tpu.memory_space<vmem>>, vector<32x8x8xf32>
    %90 = vector.shape_cast %89 : vector<32x8x8xf32> to vector<256x8xf32>
    %c0_108 = arith.constant 0 : index
    %c56 = arith.constant 56 : index
    %91 = vector.load %arg15[%c0_108, %c56] : memref<256x72xf32, #tpu.memory_space<vmem>>, vector<256x8xf32>
    tpu.vector_store %arg15[%c0_108, %c56], %90 {strides = array<i32>} : memref<256x72xf32, #tpu.memory_space<vmem>>, vector<256x8xf32>,
    %c2_109 = arith.constant 2 : index
    %c2_110 = arith.constant 2 : index
    %c0_111 = arith.constant 0 : index
    %92 = vector.load %arg13[%c2_109, %c2_110, %c0_111] : memref<34x10x8xf32, #tpu.memory_space<vmem>>, vector<32x8x8xf32>
    %93 = vector.shape_cast %92 : vector<32x8x8xf32> to vector<256x8xf32>
    %c0_112 = arith.constant 0 : index
    %c64_113 = arith.constant 64 : index
    %94 = vector.load %arg15[%c0_112, %c64_113] : memref<256x72xf32, #tpu.memory_space<vmem>>, vector<256x8xf32>
    tpu.vector_store %arg15[%c0_112, %c64_113], %93 {strides = array<i32>} : memref<256x72xf32, #tpu.memory_space<vmem>>, vector<256x8xf32>,
    %c0_114 = arith.constant 0 : index
    %c0_115 = arith.constant 0 : index
    %95 = vector.load %arg15[%c0_114, %c0_115] : memref<256x72xf32, #tpu.memory_space<vmem>>, vector<256x72xf32>
    %96 = arith.truncf %95 : vector<256x72xf32> to vector<256x72xbf16>
    %c0_116 = arith.constant 0 : index
    %c0_117 = arith.constant 0 : index
    %97 = vector.load %arg8[%c0_116, %c0_117] : memref<72x8xbf16, #tpu.memory_space<vmem>>, vector<72x8xbf16>
    %cst_118 = arith.constant dense<0.000000e+00> : vector<256x8xf32>
    %98 = tpu.matmul %96, %97, %cst_118 {dimension_numbers = #tpu.dot_dimension_numbers<[1], [0], [0], [1], [0, 0, 1, 1], [], []>} : vector<256x72xbf16>, vector<72x8xbf16>, vector<256x8xf32> -> vector<256x8xf32>
    %c0_119 = arith.constant 0 : index
    %c0_120 = arith.constant 0 : index
    %99 = vector.load %arg9[%c0_119, %c0_120] : memref<1x8xf32, #tpu.memory_space<vmem>>, vector<1x8xf32>
    %100 = vector.broadcast %99 : vector<1x8xf32> to vector<256x8xf32>
    %101 = arith.mulf %98, %100 : vector<256x8xf32>
    %c0_121 = arith.constant 0 : index
    %c0_122 = arith.constant 0 : index
    %102 = vector.load %arg10[%c0_121, %c0_122] : memref<1x8xf32, #tpu.memory_space<vmem>>, vector<1x8xf32>
    %103 = vector.broadcast %102 : vector<1x8xf32> to vector<256x8xf32>
    %104 = arith.addf %101, %103 : vector<256x8xf32>
    %cst_123 = arith.constant 0.000000e+00 : f32
    %105 = vector.broadcast %cst_123 : f32 to vector<256x8xf32>
    %106 = arith.maximumf %104, %105 : vector<256x8xf32>
    %c0_124 = arith.constant 0 : index
    %c0_125 = arith.constant 0 : index
    %c0_126 = arith.constant 0 : index
    %107 = vector.load %arg11[%c0_124, %c0_125, %c0_126] : memref<1x256x8xf32, #tpu.memory_space<vmem>>, vector<1x256x8xf32>
    %108 = vector.shape_cast %107 : vector<1x256x8xf32> to vector<256x8xf32>
    %109 = vector.shape_cast %106 : vector<256x8xf32> to vector<1x256x8xf32>
    tpu.vector_store %arg11[%c0_124, %c0_125, %c0_126], %109 {strides = array<i32>} : memref<1x256x8xf32, #tpu.memory_space<vmem>>, vector<1x256x8xf32>,
    return
  }
  func.func @transform_0(%arg0: i32) -> (i32, i32, i32, i32) {
    %c0_i32 = arith.constant 0 : i32
    %c0_i32_0 = arith.constant 0 : i32
    %c0_i32_1 = arith.constant 0 : i32
    %c0_i32_2 = arith.constant 0 : i32
    return %arg0, %c0_i32, %c0_i32_0, %c0_i32_1 : i32, i32, i32, i32
  }
  func.func @transform_1(%arg0: i32) -> (i32, i32, i32, i32) {
    %c0_i32 = arith.constant 0 : i32
    %c0_i32_0 = arith.constant 0 : i32
    %c0_i32_1 = arith.constant 0 : i32
    %c0_i32_2 = arith.constant 0 : i32
    return %arg0, %c0_i32, %c0_i32_0, %c0_i32_1 : i32, i32, i32, i32
  }
  func.func @transform_2(%arg0: i32) -> (i32, i32) {
    %c0_i32 = arith.constant 0 : i32
    %c0_i32_0 = arith.constant 0 : i32
    %c0_i32_1 = arith.constant 0 : i32
    return %c0_i32, %c0_i32_0 : i32, i32
  }
  func.func @transform_3(%arg0: i32) -> (i32, i32) {
    %c0_i32 = arith.constant 0 : i32
    %c0_i32_0 = arith.constant 0 : i32
    %c0_i32_1 = arith.constant 0 : i32
    return %c0_i32, %c0_i32_0 : i32, i32
  }
  func.func @transform_4(%arg0: i32) -> (i32, i32) {
    %c0_i32 = arith.constant 0 : i32
    %c0_i32_0 = arith.constant 0 : i32
    %c0_i32_1 = arith.constant 0 : i32
    return %c0_i32, %c0_i32_0 : i32, i32
  }
  func.func @transform_5(%arg0: i32) -> (i32, i32) {
    %c0_i32 = arith.constant 0 : i32
    %c0_i32_0 = arith.constant 0 : i32
    %c0_i32_1 = arith.constant 0 : i32
    return %c0_i32, %c0_i32_0 : i32, i32
  }
  func.func @transform_6(%arg0: i32) -> (i32, i32) {
    %c0_i32 = arith.constant 0 : i32
    %c0_i32_0 = arith.constant 0 : i32
    %c0_i32_1 = arith.constant 0 : i32
    return %c0_i32, %c0_i32_0 : i32, i32
  }
  func.func @transform_7(%arg0: i32) -> (i32, i32) {
    %c0_i32 = arith.constant 0 : i32
    %c0_i32_0 = arith.constant 0 : i32
    %c0_i32_1 = arith.constant 0 : i32
    return %c0_i32, %c0_i32_0 : i32, i32
  }
  func.func @transform_8(%arg0: i32) -> (i32, i32) {
    %c0_i32 = arith.constant 0 : i32
    %c0_i32_0 = arith.constant 0 : i32
    %c0_i32_1 = arith.constant 0 : i32
    return %c0_i32, %c0_i32_0 : i32, i32
  }
  func.func @transform_9(%arg0: i32) -> (i32, i32) {
    %c0_i32 = arith.constant 0 : i32
    %c0_i32_0 = arith.constant 0 : i32
    %c0_i32_1 = arith.constant 0 : i32
    return %c0_i32, %c0_i32_0 : i32, i32
  }
  func.func @transform_10(%arg0: i32) -> (i32, i32, i32) {
    %c0_i32 = arith.constant 0 : i32
    %c0_i32_0 = arith.constant 0 : i32
    %c0_i32_1 = arith.constant 0 : i32
    return %arg0, %c0_i32, %c0_i32_0 : i32, i32, i32
  }
}

</mosaic_0001>

<llo_original>
// kernel: tile.8
$region0: #{tile.8}
  #allocation2 [shape = 's32[1]{0}', space=sflag, size = 0x4, scoped, tag = 'scoped memory for tile.8']
  %s0 = inlined_call_operand.hbm [shape: f32[8], index: 0, kind: input, shape index: {}]
  %s1 = inlined_call_operand.vmem [shape: f32[4,8], index: 1, kind: output, shape index: {}]
  $region1: #{tile.8} parent=0
    #allocation0 [shape = 'u8[512]{0}', space=vmem, size = 0x400, scoped, tag = 'operand span for operand 0']
    #allocation1 [shape = 's32[1]{0}', space=sflag, size = 0x4, scoped, tag = 'scoped memory for tile.8']
    %2 = vsyncpa [#allocation1], 0
    // Predicated region
    $region2: #{tile.8} parent=1 // pred_check
      _
    $region3: #{tile.8} parent=1 // pred_check_branch
      %4 = sbr.rel (0) target = $region5
    $region4: #{tile.8} parent=1 // pred_region
      %s6 = ssub.s32 16, 16
      %7 = vsyncadd [#allocation1], %s6
      %s9 = sshll.u32 [#allocation0], 4
      %s10 = int_to_ptr.vmem [resolvable:$true] %s9
      %12 = dma.hbm_to_vmem [thread:$0]  %s0, 16, %s10, [#allocation1]
    $region5: #{tile.8} parent=1 // pred_fallthru
      _
    // Predicated region
    $region6: #{tile.8} parent=1 // pred_check
      _
    $region7: #{tile.8} parent=1 // pred_check_branch
      %14 = sbr.rel (0) target = $region9
    $region8: #{tile.8} parent=1 // pred_region
      %15 = dma.done [#allocation1], 16
    $region9: #{tile.8} parent=1 // pred_fallthru
      _
    %v16 = vld [vmem:[#allocation0] ss:$0 sm:$0xff]
    %17 = vst [vmem:[%s1] sm:$0xf] %v16
    %18 = vsyncpa [#allocation1], 1

// kernel: tile.9
$region0: #{tile.9}
  %s0 = inlined_call_operand.vmem [shape: f32[4,8], index: 0, kind: input, shape index: {}]
  %s1 = inlined_call_operand.vmem [shape: f32[1,32], index: 1, kind: output, shape index: {}]
  $region1: #{tile.9} parent=0
    #allocation0 [shape = 'u8[4096]{0}', space=vmem, size = 0x1000, scoped, tag = 'scoped mem for output reshape']
    #allocation1 [shape = 'u8[4096]{0}', space=vmem, size = 0x1000, scoped, tag = 'scoped mem for input reshape']
    %s3 = sshll.u32 1, 4
    %s4 = ssub.s32 %s3, 1
    %v5 = vld [vmem:[%s0] sm:%s4]
    %6 = vst [vmem:[#allocation1] sm:%s4] %v5
    %v7 = vld [vmem:[#allocation1] sm:$0x1]
    %vm8 = vcmask 64512
    %9 = vst.msk [vmem:[#allocation0] sm:$0x1] %vm8, %v7
    %s10 = scalar_lea.vmem [#allocation1], 3
    %v11 = vld [vmem:[%s10] sm:$0x1]
    %12 = vrot.lane.b32.xlu0 %v11, 24
    %v13 = vpop.permute.xlu0 %12
    %vm14 = vcmask 261312
    %15 = vst.msk [vmem:[#allocation0] sm:$0x1] %vm14, %v13
    %s16 = scalar_lea.vmem [#allocation1], 2
    %v17 = vld [vmem:[%s16] sm:$0x1]
    %18 = vrot.lane.b32.xlu0 %v17, 16
    %v19 = vpop.permute.xlu0 %18
    %vm20 = vcmask 195712
    %21 = vst.msk [vmem:[#allocation0] sm:$0x1] %vm20, %v19
    %s22 = scalar_lea.vmem [#allocation1], 1
    %v23 = vld [vmem:[%s22] sm:$0x1]
    %24 = vrot.lane.b32.xlu0 %v23, 8
    %v25 = vpop.permute.xlu0 %24
    %vm26 = vcmask 130112
    %27 = vst.msk [vmem:[#allocation0] sm:$0x1] %vm26, %v25
    %s29 = sshll.u32 1, 1
    %s30 = ssub.s32 %s29, 1
    %v32 = vld [vmem:[#allocation0] sm:%s30]
    %s33 = sshll.u32 1, 1
    %s34 = ssub.s32 %s33, 1
    %35 = vst [vmem:[%s1] sm:%s34] %v32

// kernel: up_forward.1
$region0: #{up_forward.1}
  #allocation0 [shape = 'u32[]', space=smem, size = 0x4, offset = 0x4, fixed_abs, tag = 'smem constant byte address 0x4 - core index']
  #allocation1 [shape = 'u32[144,128]{1,0:T(1,128)}', space=vmem, size = 0x12000, scoped, tag = 'internal scratch']
  #allocation2 [shape = 'f32[34,10,16]{2,1,0:T(8,128)}', space=vmem, size = 0x44000, scoped, tag = 'scratch operand']
  #allocation3 [shape = 'f32[34,10,8]{2,1,0:T(8,128)}', space=vmem, size = 0x44000, scoped, tag = 'scratch operand']
  #allocation4 [shape = 'f32[256,144]{1,0:T(8,128)}', space=vmem, size = 0x40000, scoped, tag = 'scratch operand']
  #allocation5 [shape = 'f32[256,72]{1,0:T(8,128)}', space=vmem, size = 0x20000, scoped, tag = 'scratch operand']
  %s0 = inlined_call_operand.vmem [shape: f32[2,8,8,16], index: 0, kind: input, shape index: {}]
  %s1 = inlined_call_operand.vmem [shape: f32[2,32,8,8], index: 1, kind: input, shape index: {}]
  %s2 = inlined_call_operand.vmem [shape: bf16[16,32], index: 2, kind: input, shape index: {}]
  %s3 = inlined_call_operand.vmem [shape: f32[1,32], index: 3, kind: input, shape index: {}]
  %s4 = inlined_call_operand.vmem [shape: bf16[144,8], index: 4, kind: input, shape index: {}]
  %s5 = inlined_call_operand.vmem [shape: f32[1,8], index: 5, kind: input, shape index: {}]
  %s6 = inlined_call_operand.vmem [shape: f32[1,8], index: 6, kind: input, shape index: {}]
  %s7 = inlined_call_operand.vmem [shape: bf16[72,8], index: 7, kind: input, shape index: {}]
  %s8 = inlined_call_operand.vmem [shape: f32[1,8], index: 8, kind: input, shape index: {}]
  %s9 = inlined_call_operand.vmem [shape: f32[1,8], index: 9, kind: input, shape index: {}]
  %s10 = inlined_call_operand.vmem [shape: f32[2,256,8], index: 10, kind: output, shape index: {}]
  %s11 = sld [smem:[#allocation0]]
  $region73: #{up_forward.1} parent=0
    _
  %s13 = ssub.s32 1, %s11
  %s14 = scalar_select 0, %s13, %s11
  loop: start=0, step=1, limit=4
  $region2: #{up_forward.1} parent=0 // loop_pre_header
    _
  $region3: #{up_forward.1} parent=0 // loop_header
    %s16 = sphi 0, %s20
    %p17 = scmp.ge.s32.totalorder %s16, 4
    %s26 = sphi 0, %s28
    %s29 = sphi 0, %s26
    %s30 = sphi 0, %s29
    %s46 = sphi 0, %s30
    %s52 = sphi 0, %s54
    %s55 = sphi 0, %s52
    %s56 = sphi 0, %s55
    %s72 = sphi 0, %s56
    %s76 = sphi 0, %s76
    %s78 = sphi 0, %s76
    %s79 = sphi 0, %s78
    %s93 = sphi 0, %s79
    %s97 = sphi 0, %s97
    %s99 = sphi 0, %s97
    %s100 = sphi 0, %s99
    %s114 = sphi 0, %s100
    %s118 = sphi 0, %s118
    %s120 = sphi 0, %s118
    %s121 = sphi 0, %s120
    %s135 = sphi 0, %s121
    %s139 = sphi 0, %s139
    %s141 = sphi 0, %s139
    %s142 = sphi 0, %s141
    %s156 = sphi 0, %s142
    %s160 = sphi 0, %s160
    %s162 = sphi 0, %s160
    %s163 = sphi 0, %s162
    %s177 = sphi 0, %s163
    %s181 = sphi 0, %s181
    %s183 = sphi 0, %s181
    %s184 = sphi 0, %s183
    %s198 = sphi 0, %s184
    %s202 = sphi 0, %s202
    %s204 = sphi 0, %s202
    %s205 = sphi 0, %s204
    %s219 = sphi 0, %s205
    %s223 = sphi 0, %s223
    %s225 = sphi 0, %s223
    %s226 = sphi 0, %s225
    %s240 = sphi 0, %s226
    %s246 = sphi 0, %s248
    %s249 = sphi 0, %s246
    %s250 = sphi 0, %s249
    %s266 = sphi 0, %s250
  $region4: #{up_forward.1} parent=0 // loop_header_branch
    %19 = sbr.rel (%p17) target = $region8
  $region5: #{up_forward.1} parent=0 // loop_body
    %s21 = ssub.s32 %s16, 1
    %s22 = ssub.s32 %s16, 2
    %s23 = sadd.s32 %s16, 1
    %s24 = ssub.s32 %s16, %s23
    %p25 = scmp.eq.s32.totalorder %s24, 0
    %s27 = sadd.s32 %s26, 1
    %s28 = scalar_select %p25, %s26, %s27
    %p31 = pneg %p25
    %p32 = scmp.eq.s32.totalorder %s16, 1
    %p33 = por %p31, %p32
    %p34 = scmp.ne.s32.totalorder %s26, %s29
    %p35 = scmp.eq.s32.totalorder %s16, 0
    %p36 = por %p34, %p35
    %p37 = scmp.ne.s32.totalorder %s26, %s29
    %p38 = scmp.eq.s32.totalorder %s21, 1
    %p39 = por %p37, %p38
    %p40 = scmp.ne.s32.totalorder %s29, %s30
    %p41 = scmp.eq.s32.totalorder %s21, 0
    %p42 = por %p40, %p41
    %p43 = scmp.ne.s32.totalorder %s29, %s30
    %p44 = scmp.eq.s32.totalorder %s22, 1
    %p45 = por %p43, %p44
    %p47 = scmp.ne.s32.totalorder %s30, %s46
    %p48 = scmp.eq.s32.totalorder %s22, 0
    %p49 = por %p47, %p48
    %s50 = ssub.s32 %s16, %s23
    %p51 = scmp.eq.s32.totalorder %s50, 0
    %s53 = sadd.s32 %s52, 1
    %s54 = scalar_select %p51, %s52, %s53
    %p57 = pneg %p51
    %p58 = scmp.eq.s32.totalorder %s16, 1
    %p59 = por %p57, %p58
    %p60 = scmp.ne.s32.totalorder %s52, %s55
    %p61 = scmp.eq.s32.totalorder %s16, 0
    %p62 = por %p60, %p61
    %p63 = scmp.ne.s32.totalorder %s52, %s55
    %p64 = scmp.eq.s32.totalorder %s21, 1
    %p65 = por %p63, %p64
    %p66 = scmp.ne.s32.totalorder %s55, %s56
    %p67 = scmp.eq.s32.totalorder %s21, 0
    %p68 = por %p66, %p67
    %p69 = scmp.ne.s32.totalorder %s55, %s56
    %p70 = scmp.eq.s32.totalorder %s22, 1
    %p71 = por %p69, %p70
    %p73 = scmp.ne.s32.totalorder %s56, %s72
    %p74 = scmp.eq.s32.totalorder %s22, 0
    %p75 = por %p73, %p74
    %s77 = sadd.s32 %s76, 1
    %p80 = scmp.eq.s32.totalorder %s16, 1
    %p81 = scmp.ne.s32.totalorder %s76, %s78
    %p82 = scmp.eq.s32.totalorder %s16, 0
    %p83 = por %p81, %p82
    %p84 = scmp.ne.s32.totalorder %s76, %s78
    %p85 = scmp.eq.s32.totalorder %s21, 1
    %p86 = por %p84, %p85
    %p87 = scmp.ne.s32.totalorder %s78, %s79
    %p88 = scmp.eq.s32.totalorder %s21, 0
    %p89 = por %p87, %p88
    %p90 = scmp.ne.s32.totalorder %s78, %s79
    %p91 = scmp.eq.s32.totalorder %s22, 1
    %p92 = por %p90, %p91
    %p94 = scmp.ne.s32.totalorder %s79, %s93
    %p95 = scmp.eq.s32.totalorder %s22, 0
    %p96 = por %p94, %p95
    %s98 = sadd.s32 %s97, 1
    %p101 = scmp.eq.s32.totalorder %s16, 1
    %p102 = scmp.ne.s32.totalorder %s97, %s99
    %p103 = scmp.eq.s32.totalorder %s16, 0
    %p104 = por %p102, %p103
    %p105 = scmp.ne.s32.totalorder %s97, %s99
    %p106 = scmp.eq.s32.totalorder %s21, 1
    %p107 = por %p105, %p106
    %p108 = scmp.ne.s32.totalorder %s99, %s100
    %p109 = scmp.eq.s32.totalorder %s21, 0
    %p110 = por %p108, %p109
    %p111 = scmp.ne.s32.totalorder %s99, %s100
    %p112 = scmp.eq.s32.totalorder %s22, 1
    %p113 = por %p111, %p112
    %p115 = scmp.ne.s32.totalorder %s100, %s114
    %p116 = scmp.eq.s32.totalorder %s22, 0
    %p117 = por %p115, %p116
    %s119 = sadd.s32 %s118, 1
    %p122 = scmp.eq.s32.totalorder %s16, 1
    %p123 = scmp.ne.s32.totalorder %s118, %s120
    %p124 = scmp.eq.s32.totalorder %s16, 0
    %p125 = por %p123, %p124
    %p126 = scmp.ne.s32.totalorder %s118, %s120
    %p127 = scmp.eq.s32.totalorder %s21, 1
    %p128 = por %p126, %p127
    %p129 = scmp.ne.s32.totalorder %s120, %s121
    %p130 = scmp.eq.s32.totalorder %s21, 0
    %p131 = por %p129, %p130
    %p132 = scmp.ne.s32.totalorder %s120, %s121
    %p133 = scmp.eq.s32.totalorder %s22, 1
    %p134 = por %p132, %p133
    %p136 = scmp.ne.s32.totalorder %s121, %s135
    %p137 = scmp.eq.s32.totalorder %s22, 0
    %p138 = por %p136, %p137
    %s140 = sadd.s32 %s139, 1
    %p143 = scmp.eq.s32.totalorder %s16, 1
    %p144 = scmp.ne.s32.totalorder %s139, %s141
    %p145 = scmp.eq.s32.totalorder %s16, 0
    %p146 = por %p144, %p145
    %p147 = scmp.ne.s32.totalorder %s139, %s141
    %p148 = scmp.eq.s32.totalorder %s21, 1
    %p149 = por %p147, %p148
    %p150 = scmp.ne.s32.totalorder %s141, %s142
    %p151 = scmp.eq.s32.totalorder %s21, 0
    %p152 = por %p150, %p151
    %p153 = scmp.ne.s32.totalorder %s141, %s142
    %p154 = scmp.eq.s32.totalorder %s22, 1
    %p155 = por %p153, %p154
    %p157 = scmp.ne.s32.totalorder %s142, %s156
    %p158 = scmp.eq.s32.totalorder %s22, 0
    %p159 = por %p157, %p158
    %s161 = sadd.s32 %s160, 1
    %p164 = scmp.eq.s32.totalorder %s16, 1
    %p165 = scmp.ne.s32.totalorder %s160, %s162
    %p166 = scmp.eq.s32.totalorder %s16, 0
    %p167 = por %p165, %p166
    %p168 = scmp.ne.s32.totalorder %s160, %s162
    %p169 = scmp.eq.s32.totalorder %s21, 1
    %p170 = por %p168, %p169
    %p171 = scmp.ne.s32.totalorder %s162, %s163
    %p172 = scmp.eq.s32.totalorder %s21, 0
    %p173 = por %p171, %p172
    %p174 = scmp.ne.s32.totalorder %s162, %s163
    %p175 = scmp.eq.s32.totalorder %s22, 1
    %p176 = por %p174, %p175
    %p178 = scmp.ne.s32.totalorder %s163, %s177
    %p179 = scmp.eq.s32.totalorder %s22, 0
    %p180 = por %p178, %p179
    %s182 = sadd.s32 %s181, 1
    %p185 = scmp.eq.s32.totalorder %s16, 1
    %p186 = scmp.ne.s32.totalorder %s181, %s183
    %p187 = scmp.eq.s32.totalorder %s16, 0
    %p188 = por %p186, %p187
    %p189 = scmp.ne.s32.totalorder %s181, %s183
    %p190 = scmp.eq.s32.totalorder %s21, 1
    %p191 = por %p189, %p190
    %p192 = scmp.ne.s32.totalorder %s183, %s184
    %p193 = scmp.eq.s32.totalorder %s21, 0
    %p194 = por %p192, %p193
    %p195 = scmp.ne.s32.totalorder %s183, %s184
    %p196 = scmp.eq.s32.totalorder %s22, 1
    %p197 = por %p195, %p196
    %p199 = scmp.ne.s32.totalorder %s184, %s198
    %p200 = scmp.eq.s32.totalorder %s22, 0
    %p201 = por %p199, %p200
    %s203 = sadd.s32 %s202, 1
    %p206 = scmp.eq.s32.totalorder %s16, 1
    %p207 = scmp.ne.s32.totalorder %s202, %s204
    %p208 = scmp.eq.s32.totalorder %s16, 0
    %p209 = por %p207, %p208
    %p210 = scmp.ne.s32.totalorder %s202, %s204
    %p211 = scmp.eq.s32.totalorder %s21, 1
    %p212 = por %p210, %p211
    %p213 = scmp.ne.s32.totalorder %s204, %s205
    %p214 = scmp.eq.s32.totalorder %s21, 0
    %p215 = por %p213, %p214
    %p216 = scmp.ne.s32.totalorder %s204, %s205
    %p217 = scmp.eq.s32.totalorder %s22, 1
    %p218 = por %p216, %p217
    %p220 = scmp.ne.s32.totalorder %s205, %s219
    %p221 = scmp.eq.s32.totalorder %s22, 0
    %p222 = por %p220, %p221
    %s224 = sadd.s32 %s223, 1
    %p227 = scmp.eq.s32.totalorder %s16, 1
    %p228 = scmp.ne.s32.totalorder %s223, %s225
    %p229 = scmp.eq.s32.totalorder %s16, 0
    %p230 = por %p228, %p229
    %p231 = scmp.ne.s32.totalorder %s223, %s225
    %p232 = scmp.eq.s32.totalorder %s21, 1
    %p233 = por %p231, %p232
    %p234 = scmp.ne.s32.totalorder %s225, %s226
    %p235 = scmp.eq.s32.totalorder %s21, 0
    %p236 = por %p234, %p235
    %p237 = scmp.ne.s32.totalorder %s225, %s226
    %p238 = scmp.eq.s32.totalorder %s22, 1
    %p239 = por %p237, %p238
    %p241 = scmp.ne.s32.totalorder %s226, %s240
    %p242 = scmp.eq.s32.totalorder %s22, 0
    %p243 = por %p241, %p242
    %s244 = ssub.s32 %s16, %s23
    %p245 = scmp.eq.s32.totalorder %s244, 0
    %s247 = sadd.s32 %s246, 1
    %s248 = scalar_select %p245, %s246, %s247
    %p251 = pneg %p245
    %p252 = scmp.eq.s32.totalorder %s16, 1
    %p253 = por %p251, %p252
    %p254 = scmp.ne.s32.totalorder %s246, %s249
    %p255 = scmp.eq.s32.totalorder %s16, 0
    %p256 = por %p254, %p255
    %p257 = scmp.ne.s32.totalorder %s246, %s249
    %p258 = scmp.eq.s32.totalorder %s21, 1
    %p259 = por %p257, %p258
    %p260 = scmp.ne.s32.totalorder %s249, %s250
    %p261 = scmp.eq.s32.totalorder %s21, 0
    %p262 = por %p260, %p261
    %p263 = scmp.ne.s32.totalorder %s249, %s250
    %p264 = scmp.eq.s32.totalorder %s22, 1
    %p265 = por %p263, %p264
    %p267 = scmp.ne.s32.totalorder %s250, %s266
    %p268 = scmp.eq.s32.totalorder %s22, 0
    %p269 = por %p267, %p268
    %p270 = scmp.le.s32.totalorder 1, %s16
    %p271 = scmp.lt.s32.totalorder %s16, 3
    %p272 = pnand %p270, %p271
    %p273 = pneg %p272
    // Predicated region
    $region9: #{up_forward.1} parent=5 // pred_check
      _
    $region10: #{up_forward.1} parent=5 // pred_check_branch
      %275 = sbr.rel (%p272) target = $region12
    $region11: #{up_forward.1} parent=5 // pred_region
      %s276 = ssub.s32 %s16, 1
      // Predicated region
      $region13: #{up_forward.1} parent=11 // pred_check
        %p277 = pneg %p89
      $region14: #{up_forward.1} parent=11 // pred_check_branch
        %279 = sbr.rel (%p277) target = $region16
      $region15: #{up_forward.1} parent=11 // pred_region
        _
      $region16: #{up_forward.1} parent=11 // pred_fallthru
        _
      // Predicated region
      $region17: #{up_forward.1} parent=11 // pred_check
        %p280 = pneg %p110
      $region18: #{up_forward.1} parent=11 // pred_check_branch
        %282 = sbr.rel (%p280) target = $region20
      $region19: #{up_forward.1} parent=11 // pred_region
        _
      $region20: #{up_forward.1} parent=11 // pred_fallthru
        _
      // Predicated region
      $region21: #{up_forward.1} parent=11 // pred_check
        %p283 = pneg %p131
      $region22: #{up_forward.1} parent=11 // pred_check_branch
        %285 = sbr.rel (%p283) target = $region24
      $region23: #{up_forward.1} parent=11 // pred_region
        _
      $region24: #{up_forward.1} parent=11 // pred_fallthru
        _
      // Predicated region
      $region25: #{up_forward.1} parent=11 // pred_check
        %p286 = pneg %p152
      $region26: #{up_forward.1} parent=11 // pred_check_branch
        %288 = sbr.rel (%p286) target = $region28
      $region27: #{up_forward.1} parent=11 // pred_region
        _
      $region28: #{up_forward.1} parent=11 // pred_fallthru
        _
      // Predicated region
      $region29: #{up_forward.1} parent=11 // pred_check
        %p289 = pneg %p173
      $region30: #{up_forward.1} parent=11 // pred_check_branch
        %291 = sbr.rel (%p289) target = $region32
      $region31: #{up_forward.1} parent=11 // pred_region
        _
      $region32: #{up_forward.1} parent=11 // pred_fallthru
        _
      // Predicated region
      $region33: #{up_forward.1} parent=11 // pred_check
        %p292 = pneg %p194
      $region34: #{up_forward.1} parent=11 // pred_check_branch
        %294 = sbr.rel (%p292) target = $region36
      $region35: #{up_forward.1} parent=11 // pred_region
        _
      $region36: #{up_forward.1} parent=11 // pred_fallthru
        _
      // Predicated region
      $region37: #{up_forward.1} parent=11 // pred_check
        %p295 = pneg %p215
      $region38: #{up_forward.1} parent=11 // pred_check_branch
        %297 = sbr.rel (%p295) target = $region40
      $region39: #{up_forward.1} parent=11 // pred_region
        _
      $region40: #{up_forward.1} parent=11 // pred_fallthru
        _
      // Predicated region
      $region41: #{up_forward.1} parent=11 // pred_check
        %p298 = pneg %p236
      $region42: #{up_forward.1} parent=11 // pred_check_branch
        %300 = sbr.rel (%p298) target = $region44
      $region43: #{up_forward.1} parent=11 // pred_region
        _
      $region44: #{up_forward.1} parent=11 // pred_fallthru
        _
    $region12: #{up_forward.1} parent=5 // pred_fallthru
      _
    %p301 = scmp.lt.s32.totalorder %s16, 2
    // Predicated region
    $region45: #{up_forward.1} parent=5 // pred_check
      %p302 = pneg %p301
    $region46: #{up_forward.1} parent=5 // pred_check_branch
      %304 = sbr.rel (%p302) target = $region48
    $region47: #{up_forward.1} parent=5 // pred_region
      // Predicated region
      $region49: #{up_forward.1} parent=47 // pred_check
        %p305 = pneg %p36
      $region50: #{up_forward.1} parent=47 // pred_check_branch
        %307 = sbr.rel (%p305) target = $region52
      $region51: #{up_forward.1} parent=47 // pred_region
        %p308 = scmp.lt.s32.totalorder %s16, 1
        %s309 = scalar_select %p308, %s16, 1
        %s310 = smul.addr %s309, 8
        %s311 = smul.addr %s310, 8
        %s312 = scalar_lea.vmem %s0, %s311
      $region52: #{up_forward.1} parent=47 // pred_fallthru
        _
      // Predicated region
      $region53: #{up_forward.1} parent=47 // pred_check
        %p313 = pneg %p62
      $region54: #{up_forward.1} parent=47 // pred_check_branch
        %315 = sbr.rel (%p313) target = $region56
      $region55: #{up_forward.1} parent=47 // pred_region
        %p316 = scmp.lt.s32.totalorder %s16, 1
        %s317 = scalar_select %p316, %s16, 1
        %s318 = smul.addr %s317, 32
        %s319 = smul.addr %s318, 8
        %s320 = scalar_lea.vmem %s1, %s319
      $region56: #{up_forward.1} parent=47 // pred_fallthru
        _
    $region48: #{up_forward.1} parent=5 // pred_fallthru
      _
    %p321 = scmp.le.s32.totalorder 1, %s16
    %p322 = scmp.lt.s32.totalorder %s16, 3
    %p323 = pnand %p321, %p322
    %p324 = pneg %p323
    // Predicated region
    $region57: #{up_forward.1} parent=5 // pred_check
      _
    $region58: #{up_forward.1} parent=5 // pred_check_branch
      %326 = sbr.rel (%p323) target = $region60
    $region59: #{up_forward.1} parent=5 // pred_region
      %s327 = ssub.s32 %s16, 1
      %p328 = scmp.lt.s32.totalorder %s21, 1
      %s329 = scalar_select %p328, %s21, 1
      %s330 = smul.addr %s329, 8
      %s331 = smul.addr %s330, 8
      %s332 = scalar_lea.vmem %s0, %s331
      %p333 = pneg %p42
      %p334 = pneg %p39
      %p335 = scmp.lt.s32.totalorder %s21, 1
      %s336 = scalar_select %p335, %s21, 1
      %s337 = smul.addr %s336, 32
      %s338 = smul.addr %s337, 8
      %s339 = scalar_lea.vmem %s1, %s338
      %p340 = pneg %p68
      %p341 = pneg %p65
      %p342 = pneg %p89
      %p343 = pneg %p86
      %p344 = pneg %p110
      %p345 = pneg %p107
      %p346 = pneg %p131
      %p347 = pneg %p128
      %p348 = pneg %p152
      %p349 = pneg %p149
      %p350 = pneg %p173
      %p351 = pneg %p170
      %p352 = pneg %p194
      %p353 = pneg %p191
      %p354 = pneg %p215
      %p355 = pneg %p212
      %p356 = pneg %p236
      %p357 = pneg %p233
      %p358 = pneg %p262
      %p359 = pneg %p259
      %p360 = scmp.lt.s32.totalorder %s21, 1
      %s361 = scalar_select %p360, %s21, 1
      %s362 = smul.addr %s361, 32
      %s363 = smul.addr %s362, 8
      %s364 = scalar_lea.vmem %s10, %s363
      %p365 = scmp.lt.s32.totalorder %s21, 1
      %s366 = scalar_select %p365, %s21, 1
      %s367 = smul.addr %s366, 8
      %s368 = smul.addr %s367, 8
      %s369 = scalar_lea.vmem %s0, %s368
      %p370 = scmp.lt.s32.totalorder %s21, 1
      %s371 = scalar_select %p370, %s21, 1
      %s372 = smul.addr %s371, 32
      %s373 = smul.addr %s372, 8
      %s374 = scalar_lea.vmem %s1, %s373
      %p375 = scmp.lt.s32.totalorder %s21, 1
      %s376 = scalar_select %p375, %s21, 1
      %s377 = smul.addr %s376, 32
      %s378 = smul.addr %s377, 8
      %s379 = scalar_lea.vmem %s10, %s378
      %v381 = vld [vmem:[%s369] sm:$0xff]
      %v382 = vld [vmem:[%s369 + $0x8] sm:$0xff]
      %v383 = vld [vmem:[%s369 + $0x10] sm:$0xff]
      %v384 = vld [vmem:[%s369 + $0x18] sm:$0xff]
      %v385 = vld [vmem:[%s369 + $0x20] sm:$0xff]
      %v386 = vld [vmem:[%s369 + $0x28] sm:$0xff]
      %v387 = vld [vmem:[%s369 + $0x30] sm:$0xff]
      %v388 = vld [vmem:[%s369 + $0x38] sm:$0xff]
      %v389 = vpack.c.bf16 %v382, %v381
      %v390 = vpack.c.bf16 %v384, %v383
      %v391 = vpack.c.bf16 %v386, %v385
      %v392 = vpack.c.bf16 %v388, %v387
      %v393 = vld [vmem:[%s2] sm:$0xf]
      %v394 = vld [vmem:[%s2 + $0x4] sm:$0xf]
      %v395 = vld [vmem:[%s3] sm:$0x1]
      %v397 = vlaneseq
      %v398 = vshrl.u32 %v397, 7
      %v399 = vsub.s32 0, %v398
      %v400 = vrot.slane %v395, %v399
      %v404 = vunpack.c.l.b16 %v393
      %v405 = vunpack.c.l.b16 %v394
      %v406 = vpack.c.b16 %v405, %v404
      %vm408 = vcmask 130048
      %v410 = vsel %vm408, %v389, 0
      %v413 = vsel %vm408, %v390, 0
      %v416 = vsel %vm408, %v391, 0
      %v419 = vsel %vm408, %v392, 0
      %421 = vmatprep.subr.bf16.mxu0 0
      %422 = vmatpush1.bf16.msra.mxu0 0
      %423 = vmatprep.subr.bf16.mxu0 0
      %424 = vmatpush1.bf16.msra.mxu0 0
      %425 = vmatprep.subr.bf16.mxu0 0
      %426 = vmatpush1.bf16.msra.mxu0 0
      %427 = vmatprep.subr.bf16.mxu0 0
      %428 = vmatpush1.bf16.msra.mxu0 0
      %429 = vmatprep.subr.bf16.mxu0 0
      %430 = vmatpush1.bf16.msra.mxu0 0
      %431 = vmatprep.subr.bf16.mxu0 0
      %432 = vmatpush1.bf16.msra.mxu0 0
      %433 = vmatprep.subr.bf16.mxu0 0
      %434 = vmatpush1.bf16.msra.mxu0 0
      %435 = vmatprep.subr.bf16.mxu0 0
      %436 = vmatpush1.bf16.msra.mxu0 %v406
      %437 = vmatprep.subr.bf16.mxu0 0
      %438 = vmatpush2.bf16.msra.mxu0 0
      %439 = vmatprep.subr.bf16.mxu0 0
      %440 = vmatpush2.bf16.msra.mxu0 0
      %441 = vmatprep.subr.bf16.mxu0 0
      %442 = vmatpush2.bf16.msra.mxu0 0
      %443 = vmatprep.subr.bf16.mxu0 0
      %444 = vmatpush2.bf16.msra.mxu0 0
      %445 = vmatprep.subr.bf16.mxu0 0
      %446 = vmatpush2.bf16.msra.mxu0 0
      %447 = vmatprep.subr.bf16.mxu0 0
      %448 = vmatpush2.bf16.msra.mxu0 0
      %449 = vmatprep.subr.bf16.mxu0 0
      %450 = vmatpush2.bf16.msra.mxu0 0
      %451 = vmatprep.subr.bf16.mxu0 0
      %452 = vmatpush2.bf16.msra.mxu0 0
      %453 = vmatprep.mubr.bf16.mxu0 0
      %454 = vmatmul.mubr.bf16.gmra.mxu0 %v410
      %v455 = vpop.f32.mrf.mxu0
      %v456 = vadd.f32 %v400, %v455
      %v457 = vpop.f32.mrf.mxu0
      %v458 = vpop.f32.mrf.mxu0
      %v459 = vadd.f32 %v400, %v458
      %v460 = vpop.f32.mrf.mxu0
      %461 = vmatprep.mubr.bf16.mxu0 0
      %462 = vmatmul.mubr.bf16.gmra.mxu0 %v413
      %v463 = vpop.f32.mrf.mxu0
      %v464 = vadd.f32 %v400, %v463
      %v465 = vpop.f32.mrf.mxu0
      %v466 = vpop.f32.mrf.mxu0
      %v467 = vadd.f32 %v400, %v466
      %v468 = vpop.f32.mrf.mxu0
      %469 = vmatprep.mubr.bf16.mxu0 0
      %470 = vmatmul.mubr.bf16.gmra.mxu0 %v416
      %v471 = vpop.f32.mrf.mxu0
      %v472 = vadd.f32 %v400, %v471
      %v473 = vpop.f32.mrf.mxu0
      %v474 = vpop.f32.mrf.mxu0
      %v475 = vadd.f32 %v400, %v474
      %v476 = vpop.f32.mrf.mxu0
      %477 = vmatprep.mubr.bf16.mxu0 0
      %478 = vmatmul.mubr.bf16.gmra.mxu0 %v419
      %v479 = vpop.f32.mrf.mxu0
      %v480 = vadd.f32 %v400, %v479
      %v481 = vpop.f32.mrf.mxu0
      %v482 = vpop.f32.mrf.mxu0
      %v483 = vadd.f32 %v400, %v482
      %v484 = vpop.f32.mrf.mxu0
      %485 = vdwg.mxu0
      %494 = vrot.lane.b32.xlu0 %v456, 120
      %v495 = vpop.permute.xlu0 %494
      %496 = vrot.lane.b32.xlu0 %v459, 120
      %v497 = vpop.permute.xlu0 %496
      %498 = vrot.lane.b32.xlu0 %v464, 120
      %v499 = vpop.permute.xlu0 %498
      %500 = vrot.lane.b32.xlu0 %v467, 120
      %v501 = vpop.permute.xlu0 %500
      %502 = vrot.lane.b32.xlu0 %v472, 120
      %v503 = vpop.permute.xlu0 %502
      %504 = vrot.lane.b32.xlu0 %v475, 120
      %v505 = vpop.permute.xlu0 %504
      %506 = vrot.lane.b32.xlu0 %v480, 120
      %v507 = vpop.permute.xlu0 %506
      %508 = vrot.lane.b32.xlu0 %v483, 120
      %v509 = vpop.permute.xlu0 %508
      %510 = vrot.lane.b32.xlu0 %v456, 112
      %v511 = vpop.permute.xlu0 %510
      %512 = vrot.lane.b32.xlu0 %v459, 112
      %v513 = vpop.permute.xlu0 %512
      %514 = vrot.lane.b32.xlu0 %v464, 112
      %v515 = vpop.permute.xlu0 %514
      %516 = vrot.lane.b32.xlu0 %v467, 112
      %v517 = vpop.permute.xlu0 %516
      %518 = vrot.lane.b32.xlu0 %v472, 112
      %v519 = vpop.permute.xlu0 %518
      %520 = vrot.lane.b32.xlu0 %v475, 112
      %v521 = vpop.permute.xlu0 %520
      %522 = vrot.lane.b32.xlu0 %v480, 112
      %v523 = vpop.permute.xlu0 %522
      %524 = vrot.lane.b32.xlu0 %v483, 112
      %v525 = vpop.permute.xlu0 %524
      %526 = vrot.lane.b32.xlu0 %v456, 104
      %v527 = vpop.permute.xlu0 %526
      %528 = vrot.lane.b32.xlu0 %v459, 104
      %v529 = vpop.permute.xlu0 %528
      %530 = vrot.lane.b32.xlu0 %v464, 104
      %v531 = vpop.permute.xlu0 %530
      %532 = vrot.lane.b32.xlu0 %v467, 104
      %v533 = vpop.permute.xlu0 %532
      %534 = vrot.lane.b32.xlu0 %v472, 104
      %v535 = vpop.permute.xlu0 %534
      %536 = vrot.lane.b32.xlu0 %v475, 104
      %v537 = vpop.permute.xlu0 %536
      %538 = vrot.lane.b32.xlu0 %v480, 104
      %v539 = vpop.permute.xlu0 %538
      %540 = vrot.lane.b32.xlu0 %v483, 104
      %v541 = vpop.permute.xlu0 %540
      %542 = vst.msk [vmem:[#allocation2] sm:$0xff] %vm408, 0.0
      %vm543 = vcmask 123904
      %544 = vst.msk [vmem:[#allocation2 + $0x8] sm:$0x3] %vm543, 0.0
      %545 = vst.msk [vmem:[#allocation2 + $0x10] sm:$0xff] %vm408, 0.0
      %546 = vst.msk [vmem:[#allocation2 + $0x18] sm:$0x3] %vm543, 0.0
      %547 = vst.msk [vmem:[#allocation2 + $0x20] sm:$0xff] %vm408, 0.0
      %548 = vst.msk [vmem:[#allocation2 + $0x28] sm:$0x3] %vm543, 0.0
      %549 = vst.msk [vmem:[#allocation2 + $0x30] sm:$0xff] %vm408, 0.0
      %550 = vst.msk [vmem:[#allocation2 + $0x38] sm:$0x3] %vm543, 0.0
      %551 = vst.msk [vmem:[#allocation2 + $0x40] sm:$0xff] %vm408, 0.0
      %552 = vst.msk [vmem:[#allocation2 + $0x48] sm:$0x3] %vm543, 0.0
      %553 = vst.msk [vmem:[#allocation2 + $0x50] sm:$0xff] %vm408, 0.0
      %554 = vst.msk [vmem:[#allocation2 + $0x58] sm:$0x3] %vm543, 0.0
      %555 = vst.msk [vmem:[#allocation2 + $0x60] sm:$0xff] %vm408, 0.0
      %556 = vst.msk [vmem:[#allocation2 + $0x68] sm:$0x3] %vm543, 0.0
      %557 = vst.msk [vmem:[#allocation2 + $0x70] sm:$0xff] %vm408, 0.0
      %558 = vst.msk [vmem:[#allocation2 + $0x78] sm:$0x3] %vm543, 0.0
      %559 = vst.msk [vmem:[#allocation2 + $0x80] sm:$0xff] %vm408, 0.0
      %560 = vst.msk [vmem:[#allocation2 + $0x88] sm:$0x3] %vm543, 0.0
      %561 = vst.msk [vmem:[#allocation2 + $0x90] sm:$0xff] %vm408, 0.0
      %562 = vst.msk [vmem:[#allocation2 + $0x98] sm:$0x3] %vm543, 0.0
      %563 = vst.msk [vmem:[#allocation2 + $0xa0] sm:$0xff] %vm408, 0.0
      %564 = vst.msk [vmem:[#allocation2 + $0xa8] sm:$0x3] %vm543, 0.0
      %565 = vst.msk [vmem:[#allocation2 + $0xb0] sm:$0xff] %vm408, 0.0
      %566 = vst.msk [vmem:[#allocation2 + $0xb8] sm:$0x3] %vm543, 0.0
      %567 = vst.msk [vmem:[#allocation2 + $0xc0] sm:$0xff] %vm408, 0.0
      %568 = vst.msk [vmem:[#allocation2 + $0xc8] sm:$0x3] %vm543, 0.0
      %569 = vst.msk [vmem:[#allocation2 + $0xd0] sm:$0xff] %vm408, 0.0
      %570 = vst.msk [vmem:[#allocation2 + $0xd8] sm:$0x3] %vm543, 0.0
      %571 = vst.msk [vmem:[#allocation2 + $0xe0] sm:$0xff] %vm408, 0.0
      %572 = vst.msk [vmem:[#allocation2 + $0xe8] sm:$0x3] %vm543, 0.0
      %573 = vst.msk [vmem:[#allocation2 + $0xf0] sm:$0xff] %vm408, 0.0
      %574 = vst.msk [vmem:[#allocation2 + $0xf8] sm:$0x3] %vm543, 0.0
      %575 = vst.msk [vmem:[#allocation2 + $0x100] sm:$0xff] %vm408, 0.0
      %576 = vst.msk [vmem:[#allocation2 + $0x108] sm:$0x3] %vm543, 0.0
      %577 = vst.msk [vmem:[#allocation2 + $0x110] sm:$0xff] %vm408, 0.0
      %578 = vst.msk [vmem:[#allocation2 + $0x118] sm:$0x3] %vm543, 0.0
      %579 = vst.msk [vmem:[#allocation2 + $0x120] sm:$0xff] %vm408, 0.0
      %580 = vst.msk [vmem:[#allocation2 + $0x128] sm:$0x3] %vm543, 0.0
      %581 = vst.msk [vmem:[#allocation2 + $0x130] sm:$0xff] %vm408, 0.0
      %582 = vst.msk [vmem:[#allocation2 + $0x138] sm:$0x3] %vm543, 0.0
      %583 = vst.msk [vmem:[#allocation2 + $0x140] sm:$0xff] %vm408, 0.0
      %584 = vst.msk [vmem:[#allocation2 + $0x148] sm:$0x3] %vm543, 0.0
      %585 = vst.msk [vmem:[#allocation2 + $0x150] sm:$0xff] %vm408, 0.0
      %586 = vst.msk [vmem:[#allocation2 + $0x158] sm:$0x3] %vm543, 0.0
      %587 = vst.msk [vmem:[#allocation2 + $0x160] sm:$0xff] %vm408, 0.0
      %588 = vst.msk [vmem:[#allocation2 + $0x168] sm:$0x3] %vm543, 0.0
      %589 = vst.msk [vmem:[#allocation2 + $0x170] sm:$0xff] %vm408, 0.0
      %590 = vst.msk [vmem:[#allocation2 + $0x178] sm:$0x3] %vm543, 0.0
      %591 = vst.msk [vmem:[#allocation2 + $0x180] sm:$0xff] %vm408, 0.0
      %592 = vst.msk [vmem:[#allocation2 + $0x188] sm:$0x3] %vm543, 0.0
      %593 = vst.msk [vmem:[#allocation2 + $0x190] sm:$0xff] %vm408, 0.0
      %594 = vst.msk [vmem:[#allocation2 + $0x198] sm:$0x3] %vm543, 0.0
      %595 = vst.msk [vmem:[#allocation2 + $0x1a0] sm:$0xff] %vm408, 0.0
      %596 = vst.msk [vmem:[#allocation2 + $0x1a8] sm:$0x3] %vm543, 0.0
      %597 = vst.msk [vmem:[#allocation2 + $0x1b0] sm:$0xff] %vm408, 0.0
      %598 = vst.msk [vmem:[#allocation2 + $0x1b8] sm:$0x3] %vm543, 0.0
      %599 = vst.msk [vmem:[#allocation2 + $0x1c0] sm:$0xff] %vm408, 0.0
      %600 = vst.msk [vmem:[#allocation2 + $0x1c8] sm:$0x3] %vm543, 0.0
      %601 = vst.msk [vmem:[#allocation2 + $0x1d0] sm:$0xff] %vm408, 0.0
      %602 = vst.msk [vmem:[#allocation2 + $0x1d8] sm:$0x3] %vm543, 0.0
      %603 = vst.msk [vmem:[#allocation2 + $0x1e0] sm:$0xff] %vm408, 0.0
      %604 = vst.msk [vmem:[#allocation2 + $0x1e8] sm:$0x3] %vm543, 0.0
      %605 = vst.msk [vmem:[#allocation2 + $0x1f0] sm:$0xff] %vm408, 0.0
      %606 = vst.msk [vmem:[#allocation2 + $0x1f8] sm:$0x3] %vm543, 0.0
      %607 = vst.msk [vmem:[#allocation2 + $0x200] sm:$0xff] %vm408, 0.0
      %608 = vst.msk [vmem:[#allocation2 + $0x208] sm:$0x3] %vm543, 0.0
      %609 = vst.msk [vmem:[#allocation2 + $0x210] sm:$0xff] %vm408, 0.0
      %610 = vst.msk [vmem:[#allocation2 + $0x218] sm:$0x3] %vm543, 0.0
      %v611 = vld [vmem:[%s374] sm:$0xff]
      %v612 = vld [vmem:[%s374 + $0x8] sm:$0xff]
      %v613 = vld [vmem:[%s374 + $0x10] sm:$0xff]
      %v614 = vld [vmem:[%s374 + $0x18] sm:$0xff]
      %v615 = vld [vmem:[%s374 + $0x20] sm:$0xff]
      %v616 = vld [vmem:[%s374 + $0x28] sm:$0xff]
      %v617 = vld [vmem:[%s374 + $0x30] sm:$0xff]
      %v618 = vld [vmem:[%s374 + $0x38] sm:$0xff]
      %v619 = vld [vmem:[%s374 + $0x40] sm:$0xff]
      %v620 = vld [vmem:[%s374 + $0x48] sm:$0xff]
      %v621 = vld [vmem:[%s374 + $0x50] sm:$0xff]
      %v622 = vld [vmem:[%s374 + $0x58] sm:$0xff]
      %v623 = vld [vmem:[%s374 + $0x60] sm:$0xff]
      %v624 = vld [vmem:[%s374 + $0x68] sm:$0xff]
      %v625 = vld [vmem:[%s374 + $0x70] sm:$0xff]
      %v626 = vld [vmem:[%s374 + $0x78] sm:$0xff]
      %v627 = vld [vmem:[%s374 + $0x80] sm:$0xff]
      %v628 = vld [vmem:[%s374 + $0x88] sm:$0xff]
      %v629 = vld [vmem:[%s374 + $0x90] sm:$0xff]
      %v630 = vld [vmem:[%s374 + $0x98] sm:$0xff]
      %v631 = vld [vmem:[%s374 + $0xa0] sm:$0xff]
      %v632 = vld [vmem:[%s374 + $0xa8] sm:$0xff]
      %v633 = vld [vmem:[%s374 + $0xb0] sm:$0xff]
      %v634 = vld [vmem:[%s374 + $0xb8] sm:$0xff]
      %v635 = vld [vmem:[%s374 + $0xc0] sm:$0xff]
      %v636 = vld [vmem:[%s374 + $0xc8] sm:$0xff]
      %v637 = vld [vmem:[%s374 + $0xd0] sm:$0xff]
      %v638 = vld [vmem:[%s374 + $0xd8] sm:$0xff]
      %v639 = vld [vmem:[%s374 + $0xe0] sm:$0xff]
      %v640 = vld [vmem:[%s374 + $0xe8] sm:$0xff]
      %v641 = vld [vmem:[%s374 + $0xf0] sm:$0xff]
      %v642 = vld [vmem:[%s374 + $0xf8] sm:$0xff]
      %s643 = scalar_lea.vmem [#allocation2], 16
      %vm644 = vcmask 64512
      %645 = vst.msk [vmem:[%s643 + $0x1] sm:$0xff] %vm644, %v611
      %646 = vst.msk [vmem:[%s643 + $0x11] sm:$0xff] %vm644, %v612
      %647 = vst.msk [vmem:[%s643 + $0x21] sm:$0xff] %vm644, %v613
      %648 = vst.msk [vmem:[%s643 + $0x31] sm:$0xff] %vm644, %v614
      %649 = vst.msk [vmem:[%s643 + $0x41] sm:$0xff] %vm644, %v615
      %650 = vst.msk [vmem:[%s643 + $0x51] sm:$0xff] %vm644, %v616
      %651 = vst.msk [vmem:[%s643 + $0x61] sm:$0xff] %vm644, %v617
      %652 = vst.msk [vmem:[%s643 + $0x71] sm:$0xff] %vm644, %v618
      %653 = vst.msk [vmem:[%s643 + $0x81] sm:$0xff] %vm644, %v619
      %654 = vst.msk [vmem:[%s643 + $0x91] sm:$0xff] %vm644, %v620
      %655 = vst.msk [vmem:[%s643 + $0xa1] sm:$0xff] %vm644, %v621
      %656 = vst.msk [vmem:[%s643 + $0xb1] sm:$0xff] %vm644, %v622
      %657 = vst.msk [vmem:[%s643 + $0xc1] sm:$0xff] %vm644, %v623
      %658 = vst.msk [vmem:[%s643 + $0xd1] sm:$0xff] %vm644, %v624
      %659 = vst.msk [vmem:[%s643 + $0xe1] sm:$0xff] %vm644, %v625
      %660 = vst.msk [vmem:[%s643 + $0xf1] sm:$0xff] %vm644, %v626
      %661 = vst.msk [vmem:[%s643 + $0x101] sm:$0xff] %vm644, %v627
      %662 = vst.msk [vmem:[%s643 + $0x111] sm:$0xff] %vm644, %v628
      %663 = vst.msk [vmem:[%s643 + $0x121] sm:$0xff] %vm644, %v629
      %664 = vst.msk [vmem:[%s643 + $0x131] sm:$0xff] %vm644, %v630
      %665 = vst.msk [vmem:[%s643 + $0x141] sm:$0xff] %vm644, %v631
      %666 = vst.msk [vmem:[%s643 + $0x151] sm:$0xff] %vm644, %v632
      %667 = vst.msk [vmem:[%s643 + $0x161] sm:$0xff] %vm644, %v633
      %668 = vst.msk [vmem:[%s643 + $0x171] sm:$0xff] %vm644, %v634
      %669 = vst.msk [vmem:[%s643 + $0x181] sm:$0xff] %vm644, %v635
      %670 = vst.msk [vmem:[%s643 + $0x191] sm:$0xff] %vm644, %v636
      %671 = vst.msk [vmem:[%s643 + $0x1a1] sm:$0xff] %vm644, %v637
      %672 = vst.msk [vmem:[%s643 + $0x1b1] sm:$0xff] %vm644, %v638
      %673 = vst.msk [vmem:[%s643 + $0x1c1] sm:$0xff] %vm644, %v639
      %674 = vst.msk [vmem:[%s643 + $0x1d1] sm:$0xff] %vm644, %v640
      %675 = vst.msk [vmem:[%s643 + $0x1e1] sm:$0xff] %vm644, %v641
      %676 = vst.msk [vmem:[%s643 + $0x1f1] sm:$0xff] %vm644, %v642
      %677 = vrot.lane.b32.xlu0 %v456, 8
      %v678 = vpop.permute.xlu0 %677
      %679 = vrot.lane.b32.xlu0 %v495, 8
      %v680 = vpop.permute.xlu0 %679
      %681 = vrot.lane.b32.xlu0 %v511, 8
      %v682 = vpop.permute.xlu0 %681
      %683 = vrot.lane.b32.xlu0 %v527, 8
      %v684 = vpop.permute.xlu0 %683
      %685 = vrot.lane.b32.xlu0 %v459, 8
      %v686 = vpop.permute.xlu0 %685
      %687 = vrot.lane.b32.xlu0 %v497, 8
      %v688 = vpop.permute.xlu0 %687
      %689 = vrot.lane.b32.xlu0 %v513, 8
      %v690 = vpop.permute.xlu0 %689
      %691 = vrot.lane.b32.xlu0 %v529, 8
      %v692 = vpop.permute.xlu0 %691
      %693 = vrot.lane.b32.xlu0 %v464, 8
      %v694 = vpop.permute.xlu0 %693
      %695 = vrot.lane.b32.xlu0 %v499, 8
      %v696 = vpop.permute.xlu0 %695
      %697 = vrot.lane.b32.xlu0 %v515, 8
      %v698 = vpop.permute.xlu0 %697
      %699 = vrot.lane.b32.xlu0 %v531, 8
      %v700 = vpop.permute.xlu0 %699
      %701 = vrot.lane.b32.xlu0 %v467, 8
      %v702 = vpop.permute.xlu0 %701
      %703 = vrot.lane.b32.xlu0 %v501, 8
      %v704 = vpop.permute.xlu0 %703
      %705 = vrot.lane.b32.xlu0 %v517, 8
      %v706 = vpop.permute.xlu0 %705
      %707 = vrot.lane.b32.xlu0 %v533, 8
      %v708 = vpop.permute.xlu0 %707
      %709 = vrot.lane.b32.xlu0 %v472, 8
      %v710 = vpop.permute.xlu0 %709
      %711 = vrot.lane.b32.xlu0 %v503, 8
      %v712 = vpop.permute.xlu0 %711
      %713 = vrot.lane.b32.xlu0 %v519, 8
      %v714 = vpop.permute.xlu0 %713
      %715 = vrot.lane.b32.xlu0 %v535, 8
      %v716 = vpop.permute.xlu0 %715
      %717 = vrot.lane.b32.xlu0 %v475, 8
      %v718 = vpop.permute.xlu0 %717
      %719 = vrot.lane.b32.xlu0 %v505, 8
      %v720 = vpop.permute.xlu0 %719
      %721 = vrot.lane.b32.xlu0 %v521, 8
      %v722 = vpop.permute.xlu0 %721
      %723 = vrot.lane.b32.xlu0 %v537, 8
      %v724 = vpop.permute.xlu0 %723
      %725 = vrot.lane.b32.xlu0 %v480, 8
      %v726 = vpop.permute.xlu0 %725
      %727 = vrot.lane.b32.xlu0 %v507, 8
      %v728 = vpop.permute.xlu0 %727
      %729 = vrot.lane.b32.xlu0 %v523, 8
      %v730 = vpop.permute.xlu0 %729
      %731 = vrot.lane.b32.xlu0 %v539, 8
      %v732 = vpop.permute.xlu0 %731
      %733 = vrot.lane.b32.xlu0 %v483, 8
      %v734 = vpop.permute.xlu0 %733
      %735 = vrot.lane.b32.xlu0 %v509, 8
      %v736 = vpop.permute.xlu0 %735
      %737 = vrot.lane.b32.xlu0 %v525, 8
      %v738 = vpop.permute.xlu0 %737
      %739 = vrot.lane.b32.xlu0 %v541, 8
      %v740 = vpop.permute.xlu0 %739
      %vm773 = vcmask 130112
      %774 = vst.msk [vmem:[%s643 + $0x1] sm:$0xff] %vm773, %v678
      %775 = vst.msk [vmem:[%s643 + $0x11] sm:$0xff] %vm773, %v680
      %776 = vst.msk [vmem:[%s643 + $0x21] sm:$0xff] %vm773, %v682
      %777 = vst.msk [vmem:[%s643 + $0x31] sm:$0xff] %vm773, %v684
      %778 = vst.msk [vmem:[%s643 + $0x41] sm:$0xff] %vm773, %v686
      %779 = vst.msk [vmem:[%s643 + $0x51] sm:$0xff] %vm773, %v688
      %780 = vst.msk [vmem:[%s643 + $0x61] sm:$0xff] %vm773, %v690
      %781 = vst.msk [vmem:[%s643 + $0x71] sm:$0xff] %vm773, %v692
      %782 = vst.msk [vmem:[%s643 + $0x81] sm:$0xff] %vm773, %v694
      %783 = vst.msk [vmem:[%s643 + $0x91] sm:$0xff] %vm773, %v696
      %784 = vst.msk [vmem:[%s643 + $0xa1] sm:$0xff] %vm773, %v698
      %785 = vst.msk [vmem:[%s643 + $0xb1] sm:$0xff] %vm773, %v700
      %786 = vst.msk [vmem:[%s643 + $0xc1] sm:$0xff] %vm773, %v702
      %787 = vst.msk [vmem:[%s643 + $0xd1] sm:$0xff] %vm773, %v704
      %788 = vst.msk [vmem:[%s643 + $0xe1] sm:$0xff] %vm773, %v706
      %789 = vst.msk [vmem:[%s643 + $0xf1] sm:$0xff] %vm773, %v708
      %790 = vst.msk [vmem:[%s643 + $0x101] sm:$0xff] %vm773, %v710
      %791 = vst.msk [vmem:[%s643 + $0x111] sm:$0xff] %vm773, %v712
      %792 = vst.msk [vmem:[%s643 + $0x121] sm:$0xff] %vm773, %v714
      %793 = vst.msk [vmem:[%s643 + $0x131] sm:$0xff] %vm773, %v716
      %794 = vst.msk [vmem:[%s643 + $0x141] sm:$0xff] %vm773, %v718
      %795 = vst.msk [vmem:[%s643 + $0x151] sm:$0xff] %vm773, %v720
      %796 = vst.msk [vmem:[%s643 + $0x161] sm:$0xff] %vm773, %v722
      %797 = vst.msk [vmem:[%s643 + $0x171] sm:$0xff] %vm773, %v724
      %798 = vst.msk [vmem:[%s643 + $0x181] sm:$0xff] %vm773, %v726
      %799 = vst.msk [vmem:[%s643 + $0x191] sm:$0xff] %vm773, %v728
      %800 = vst.msk [vmem:[%s643 + $0x1a1] sm:$0xff] %vm773, %v730
      %801 = vst.msk [vmem:[%s643 + $0x1b1] sm:$0xff] %vm773, %v732
      %802 = vst.msk [vmem:[%s643 + $0x1c1] sm:$0xff] %vm773, %v734
      %803 = vst.msk [vmem:[%s643 + $0x1d1] sm:$0xff] %vm773, %v736
      %804 = vst.msk [vmem:[%s643 + $0x1e1] sm:$0xff] %vm773, %v738
      %805 = vst.msk [vmem:[%s643 + $0x1f1] sm:$0xff] %vm773, %v740
      %v806 = vld [vmem:[#allocation2] sm:$0xff]
      %v807 = vld [vmem:[#allocation2 + $0x10] sm:$0xff]
      %v808 = vld [vmem:[#allocation2 + $0x20] sm:$0xff]
      %v809 = vld [vmem:[#allocation2 + $0x30] sm:$0xff]
      %v810 = vld [vmem:[#allocation2 + $0x40] sm:$0xff]
      %v811 = vld [vmem:[#allocation2 + $0x50] sm:$0xff]
      %v812 = vld [vmem:[#allocation2 + $0x60] sm:$0xff]
      %v813 = vld [vmem:[#allocation2 + $0x70] sm:$0xff]
      %v814 = vld [vmem:[#allocation2 + $0x80] sm:$0xff]
      %v815 = vld [vmem:[#allocation2 + $0x90] sm:$0xff]
      %v816 = vld [vmem:[#allocation2 + $0xa0] sm:$0xff]
      %v817 = vld [vmem:[#allocation2 + $0xb0] sm:$0xff]
      %v818 = vld [vmem:[#allocation2 + $0xc0] sm:$0xff]
      %v819 = vld [vmem:[#allocation2 + $0xd0] sm:$0xff]
      %v820 = vld [vmem:[#allocation2 + $0xe0] sm:$0xff]
      %v821 = vld [vmem:[#allocation2 + $0xf0] sm:$0xff]
      %v822 = vld [vmem:[#allocation2 + $0x100] sm:$0xff]
      %v823 = vld [vmem:[#allocation2 + $0x110] sm:$0xff]
      %v824 = vld [vmem:[#allocation2 + $0x120] sm:$0xff]
      %v825 = vld [vmem:[#allocation2 + $0x130] sm:$0xff]
      %v826 = vld [vmem:[#allocation2 + $0x140] sm:$0xff]
      %v827 = vld [vmem:[#allocation2 + $0x150] sm:$0xff]
      %v828 = vld [vmem:[#allocation2 + $0x160] sm:$0xff]
      %v829 = vld [vmem:[#allocation2 + $0x170] sm:$0xff]
      %v830 = vld [vmem:[#allocation2 + $0x180] sm:$0xff]
      %v831 = vld [vmem:[#allocation2 + $0x190] sm:$0xff]
      %v832 = vld [vmem:[#allocation2 + $0x1a0] sm:$0xff]
      %v833 = vld [vmem:[#allocation2 + $0x1b0] sm:$0xff]
      %v834 = vld [vmem:[#allocation2 + $0x1c0] sm:$0xff]
      %v835 = vld [vmem:[#allocation2 + $0x1d0] sm:$0xff]
      %v836 = vld [vmem:[#allocation2 + $0x1e0] sm:$0xff]
      %v837 = vld [vmem:[#allocation2 + $0x1f0] sm:$0xff]
      %838 = vst.msk [vmem:[#allocation4] sm:$0xff] %vm408, %v806
      %839 = vst.msk [vmem:[#allocation4 + $0x10] sm:$0xff] %vm408, %v807
      %840 = vst.msk [vmem:[#allocation4 + $0x20] sm:$0xff] %vm408, %v808
      %841 = vst.msk [vmem:[#allocation4 + $0x30] sm:$0xff] %vm408, %v809
      %842 = vst.msk [vmem:[#allocation4 + $0x40] sm:$0xff] %vm408, %v810
      %843 = vst.msk [vmem:[#allocation4 + $0x50] sm:$0xff] %vm408, %v811
      %844 = vst.msk [vmem:[#allocation4 + $0x60] sm:$0xff] %vm408, %v812
      %845 = vst.msk [vmem:[#allocation4 + $0x70] sm:$0xff] %vm408, %v813
      %846 = vst.msk [vmem:[#allocation4 + $0x80] sm:$0xff] %vm408, %v814
      %847 = vst.msk [vmem:[#allocation4 + $0x90] sm:$0xff] %vm408, %v815
      %848 = vst.msk [vmem:[#allocation4 + $0xa0] sm:$0xff] %vm408, %v816
      %849 = vst.msk [vmem:[#allocation4 + $0xb0] sm:$0xff] %vm408, %v817
      %850 = vst.msk [vmem:[#allocation4 + $0xc0] sm:$0xff] %vm408, %v818
      %851 = vst.msk [vmem:[#allocation4 + $0xd0] sm:$0xff] %vm408, %v819
      %852 = vst.msk [vmem:[#allocation4 + $0xe0] sm:$0xff] %vm408, %v820
      %853 = vst.msk [vmem:[#allocation4 + $0xf0] sm:$0xff] %vm408, %v821
      %854 = vst.msk [vmem:[#allocation4 + $0x100] sm:$0xff] %vm408, %v822
      %855 = vst.msk [vmem:[#allocation4 + $0x110] sm:$0xff] %vm408, %v823
      %856 = vst.msk [vmem:[#allocation4 + $0x120] sm:$0xff] %vm408, %v824
      %857 = vst.msk [vmem:[#allocation4 + $0x130] sm:$0xff] %vm408, %v825
      %858 = vst.msk [vmem:[#allocation4 + $0x140] sm:$0xff] %vm408, %v826
      %859 = vst.msk [vmem:[#allocation4 + $0x150] sm:$0xff] %vm408, %v827
      %860 = vst.msk [vmem:[#allocation4 + $0x160] sm:$0xff] %vm408, %v828
      %861 = vst.msk [vmem:[#allocation4 + $0x170] sm:$0xff] %vm408, %v829
      %862 = vst.msk [vmem:[#allocation4 + $0x180] sm:$0xff] %vm408, %v830
      %863 = vst.msk [vmem:[#allocation4 + $0x190] sm:$0xff] %vm408, %v831
      %864 = vst.msk [vmem:[#allocation4 + $0x1a0] sm:$0xff] %vm408, %v832
      %865 = vst.msk [vmem:[#allocation4 + $0x1b0] sm:$0xff] %vm408, %v833
      %866 = vst.msk [vmem:[#allocation4 + $0x1c0] sm:$0xff] %vm408, %v834
      %867 = vst.msk [vmem:[#allocation4 + $0x1d0] sm:$0xff] %vm408, %v835
      %868 = vst.msk [vmem:[#allocation4 + $0x1e0] sm:$0xff] %vm408, %v836
      %869 = vst.msk [vmem:[#allocation4 + $0x1f0] sm:$0xff] %vm408, %v837
      %v870 = vld [vmem:[#allocation2 + $0x1] sm:$0xff]
      %v871 = vld [vmem:[#allocation2 + $0x11] sm:$0xff]
      %v872 = vld [vmem:[#allocation2 + $0x21] sm:$0xff]
      %v873 = vld [vmem:[#allocation2 + $0x31] sm:$0xff]
      %v874 = vld [vmem:[#allocation2 + $0x41] sm:$0xff]
      %v875 = vld [vmem:[#allocation2 + $0x51] sm:$0xff]
      %v876 = vld [vmem:[#allocation2 + $0x61] sm:$0xff]
      %v877 = vld [vmem:[#allocation2 + $0x71] sm:$0xff]
      %v878 = vld [vmem:[#allocation2 + $0x81] sm:$0xff]
      %v879 = vld [vmem:[#allocation2 + $0x91] sm:$0xff]
      %v880 = vld [vmem:[#allocation2 + $0xa1] sm:$0xff]
      %v881 = vld [vmem:[#allocation2 + $0xb1] sm:$0xff]
      %v882 = vld [vmem:[#allocation2 + $0xc1] sm:$0xff]
      %v883 = vld [vmem:[#allocation2 + $0xd1] sm:$0xff]
      %v884 = vld [vmem:[#allocation2 + $0xe1] sm:$0xff]
      %v885 = vld [vmem:[#allocation2 + $0xf1] sm:$0xff]
      %v886 = vld [vmem:[#allocation2 + $0x101] sm:$0xff]
      %v887 = vld [vmem:[#allocation2 + $0x111] sm:$0xff]
      %v888 = vld [vmem:[#allocation2 + $0x121] sm:$0xff]
      %v889 = vld [vmem:[#allocation2 + $0x131] sm:$0xff]
      %v890 = vld [vmem:[#allocation2 + $0x141] sm:$0xff]
      %v891 = vld [vmem:[#allocation2 + $0x151] sm:$0xff]
      %v892 = vld [vmem:[#allocation2 + $0x161] sm:$0xff]
      %v893 = vld [vmem:[#allocation2 + $0x171] sm:$0xff]
      %v894 = vld [vmem:[#allocation2 + $0x181] sm:$0xff]
      %v895 = vld [vmem:[#allocation2 + $0x191] sm:$0xff]
      %v896 = vld [vmem:[#allocation2 + $0x1a1] sm:$0xff]
      %v897 = vld [vmem:[#allocation2 + $0x1b1] sm:$0xff]
      %v898 = vld [vmem:[#allocation2 + $0x1c1] sm:$0xff]
      %v899 = vld [vmem:[#allocation2 + $0x1d1] sm:$0xff]
      %v900 = vld [vmem:[#allocation2 + $0x1e1] sm:$0xff]
      %v901 = vld [vmem:[#allocation2 + $0x1f1] sm:$0xff]
      %934 = vrot.lane.b32.xlu0 %v870, 16
      %v935 = vpop.permute.xlu0 %934
      %936 = vrot.lane.b32.xlu0 %v871, 16
      %v937 = vpop.permute.xlu0 %936
      %938 = vrot.lane.b32.xlu0 %v872, 16
      %v939 = vpop.permute.xlu0 %938
      %940 = vrot.lane.b32.xlu0 %v873, 16
      %v941 = vpop.permute.xlu0 %940
      %942 = vrot.lane.b32.xlu0 %v874, 16
      %v943 = vpop.permute.xlu0 %942
      %944 = vrot.lane.b32.xlu0 %v875, 16
      %v945 = vpop.permute.xlu0 %944
      %946 = vrot.lane.b32.xlu0 %v876, 16
      %v947 = vpop.permute.xlu0 %946
      %948 = vrot.lane.b32.xlu0 %v877, 16
      %v949 = vpop.permute.xlu0 %948
      %950 = vrot.lane.b32.xlu0 %v878, 16
      %v951 = vpop.permute.xlu0 %950
      %952 = vrot.lane.b32.xlu0 %v879, 16
      %v953 = vpop.permute.xlu0 %952
      %954 = vrot.lane.b32.xlu0 %v880, 16
      %v955 = vpop.permute.xlu0 %954
      %956 = vrot.lane.b32.xlu0 %v881, 16
      %v957 = vpop.permute.xlu0 %956
      %958 = vrot.lane.b32.xlu0 %v882, 16
      %v959 = vpop.permute.xlu0 %958
      %960 = vrot.lane.b32.xlu0 %v883, 16
      %v961 = vpop.permute.xlu0 %960
      %962 = vrot.lane.b32.xlu0 %v884, 16
      %v963 = vpop.permute.xlu0 %962
      %964 = vrot.lane.b32.xlu0 %v885, 16
      %v965 = vpop.permute.xlu0 %964
      %966 = vrot.lane.b32.xlu0 %v886, 16
      %v967 = vpop.permute.xlu0 %966
      %968 = vrot.lane.b32.xlu0 %v887, 16
      %v969 = vpop.permute.xlu0 %968
      %970 = vrot.lane.b32.xlu0 %v888, 16
      %v971 = vpop.permute.xlu0 %970
      %972 = vrot.lane.b32.xlu0 %v889, 16
      %v973 = vpop.permute.xlu0 %972
      %974 = vrot.lane.b32.xlu0 %v890, 16
      %v975 = vpop.permute.xlu0 %974
      %976 = vrot.lane.b32.xlu0 %v891, 16
      %v977 = vpop.permute.xlu0 %976
      %978 = vrot.lane.b32.xlu0 %v892, 16
      %v979 = vpop.permute.xlu0 %978
      %980 = vrot.lane.b32.xlu0 %v893, 16
      %v981 = vpop.permute.xlu0 %980
      %982 = vrot.lane.b32.xlu0 %v894, 16
      %v983 = vpop.permute.xlu0 %982
      %984 = vrot.lane.b32.xlu0 %v895, 16
      %v985 = vpop.permute.xlu0 %984
      %986 = vrot.lane.b32.xlu0 %v896, 16
      %v987 = vpop.permute.xlu0 %986
      %988 = vrot.lane.b32.xlu0 %v897, 16
      %v989 = vpop.permute.xlu0 %988
      %990 = vrot.lane.b32.xlu0 %v898, 16
      %v991 = vpop.permute.xlu0 %990
      %992 = vrot.lane.b32.xlu0 %v899, 16
      %v993 = vpop.permute.xlu0 %992
      %994 = vrot.lane.b32.xlu0 %v900, 16
      %v995 = vpop.permute.xlu0 %994
      %996 = vrot.lane.b32.xlu0 %v901, 16
      %v997 = vpop.permute.xlu0 %996
      %vm1030 = vcmask 261248
      %1031 = vst.msk [vmem:[#allocation4] sm:$0xff] %vm1030, %v935
      %1032 = vst.msk [vmem:[#allocation4 + $0x10] sm:$0xff] %vm1030, %v937
      %1033 = vst.msk [vmem:[#allocation4 + $0x20] sm:$0xff] %vm1030, %v939
      %1034 = vst.msk [vmem:[#allocation4 + $0x30] sm:$0xff] %vm1030, %v941
      %1035 = vst.msk [vmem:[#allocation4 + $0x40] sm:$0xff] %vm1030, %v943
      %1036 = vst.msk [vmem:[#allocation4 + $0x50] sm:$0xff] %vm1030, %v945
      %1037 = vst.msk [vmem:[#allocation4 + $0x60] sm:$0xff] %vm1030, %v947
      %1038 = vst.msk [vmem:[#allocation4 + $0x70] sm:$0xff] %vm1030, %v949
      %1039 = vst.msk [vmem:[#allocation4 + $0x80] sm:$0xff] %vm1030, %v951
      %1040 = vst.msk [vmem:[#allocation4 + $0x90] sm:$0xff] %vm1030, %v953
      %1041 = vst.msk [vmem:[#allocation4 + $0xa0] sm:$0xff] %vm1030, %v955
      %1042 = vst.msk [vmem:[#allocation4 + $0xb0] sm:$0xff] %vm1030, %v957
      %1043 = vst.msk [vmem:[#allocation4 + $0xc0] sm:$0xff] %vm1030, %v959
      %1044 = vst.msk [vmem:[#allocation4 + $0xd0] sm:$0xff] %vm1030, %v961
      %1045 = vst.msk [vmem:[#allocation4 + $0xe0] sm:$0xff] %vm1030, %v963
      %1046 = vst.msk [vmem:[#allocation4 + $0xf0] sm:$0xff] %vm1030, %v965
      %1047 = vst.msk [vmem:[#allocation4 + $0x100] sm:$0xff] %vm1030, %v967
      %1048 = vst.msk [vmem:[#allocation4 + $0x110] sm:$0xff] %vm1030, %v969
      %1049 = vst.msk [vmem:[#allocation4 + $0x120] sm:$0xff] %vm1030, %v971
      %1050 = vst.msk [vmem:[#allocation4 + $0x130] sm:$0xff] %vm1030, %v973
      %1051 = vst.msk [vmem:[#allocation4 + $0x140] sm:$0xff] %vm1030, %v975
      %1052 = vst.msk [vmem:[#allocation4 + $0x150] sm:$0xff] %vm1030, %v977
      %1053 = vst.msk [vmem:[#allocation4 + $0x160] sm:$0xff] %vm1030, %v979
      %1054 = vst.msk [vmem:[#allocation4 + $0x170] sm:$0xff] %vm1030, %v981
      %1055 = vst.msk [vmem:[#allocation4 + $0x180] sm:$0xff] %vm1030, %v983
      %1056 = vst.msk [vmem:[#allocation4 + $0x190] sm:$0xff] %vm1030, %v985
      %1057 = vst.msk [vmem:[#allocation4 + $0x1a0] sm:$0xff] %vm1030, %v987
      %1058 = vst.msk [vmem:[#allocation4 + $0x1b0] sm:$0xff] %vm1030, %v989
      %1059 = vst.msk [vmem:[#allocation4 + $0x1c0] sm:$0xff] %vm1030, %v991
      %1060 = vst.msk [vmem:[#allocation4 + $0x1d0] sm:$0xff] %vm1030, %v993
      %1061 = vst.msk [vmem:[#allocation4 + $0x1e0] sm:$0xff] %vm1030, %v995
      %1062 = vst.msk [vmem:[#allocation4 + $0x1f0] sm:$0xff] %vm1030, %v997
      %v1063 = vld [vmem:[#allocation2 + $0x2] sm:$0xff]
      %v1064 = vld [vmem:[#allocation2 + $0x12] sm:$0xff]
      %v1065 = vld [vmem:[#allocation2 + $0x22] sm:$0xff]
      %v1066 = vld [vmem:[#allocation2 + $0x32] sm:$0xff]
      %v1067 = vld [vmem:[#allocation2 + $0x42] sm:$0xff]
      %v1068 = vld [vmem:[#allocation2 + $0x52] sm:$0xff]
      %v1069 = vld [vmem:[#allocation2 + $0x62] sm:$0xff]
      %v1070 = vld [vmem:[#allocation2 + $0x72] sm:$0xff]
      %v1071 = vld [vmem:[#allocation2 + $0x82] sm:$0xff]
      %v1072 = vld [vmem:[#allocation2 + $0x92] sm:$0xff]
      %v1073 = vld [vmem:[#allocation2 + $0xa2] sm:$0xff]
      %v1074 = vld [vmem:[#allocation2 + $0xb2] sm:$0xff]
      %v1075 = vld [vmem:[#allocation2 + $0xc2] sm:$0xff]
      %v1076 = vld [vmem:[#allocation2 + $0xd2] sm:$0xff]
      %v1077 = vld [vmem:[#allocation2 + $0xe2] sm:$0xff]
      %v1078 = vld [vmem:[#allocation2 + $0xf2] sm:$0xff]
      %v1079 = vld [vmem:[#allocation2 + $0x102] sm:$0xff]
      %v1080 = vld [vmem:[#allocation2 + $0x112] sm:$0xff]
      %v1081 = vld [vmem:[#allocation2 + $0x122] sm:$0xff]
      %v1082 = vld [vmem:[#allocation2 + $0x132] sm:$0xff]
      %v1083 = vld [vmem:[#allocation2 + $0x142] sm:$0xff]
      %v1084 = vld [vmem:[#allocation2 + $0x152] sm:$0xff]
      %v1085 = vld [vmem:[#allocation2 + $0x162] sm:$0xff]
      %v1086 = vld [vmem:[#allocation2 + $0x172] sm:$0xff]
      %v1087 = vld [vmem:[#allocation2 + $0x182] sm:$0xff]
      %v1088 = vld [vmem:[#allocation2 + $0x192] sm:$0xff]
      %v1089 = vld [vmem:[#allocation2 + $0x1a2] sm:$0xff]
      %v1090 = vld [vmem:[#allocation2 + $0x1b2] sm:$0xff]
      %v1091 = vld [vmem:[#allocation2 + $0x1c2] sm:$0xff]
      %v1092 = vld [vmem:[#allocation2 + $0x1d2] sm:$0xff]
      %v1093 = vld [vmem:[#allocation2 + $0x1e2] sm:$0xff]
      %v1094 = vld [vmem:[#allocation2 + $0x1f2] sm:$0xff]
      %1127 = vrot.lane.b32.xlu0 %v1063, 32
      %v1128 = vpop.permute.xlu0 %1127
      %1129 = vrot.lane.b32.xlu0 %v1064, 32
      %v1130 = vpop.permute.xlu0 %1129
      %1131 = vrot.lane.b32.xlu0 %v1065, 32
      %v1132 = vpop.permute.xlu0 %1131
      %1133 = vrot.lane.b32.xlu0 %v1066, 32
      %v1134 = vpop.permute.xlu0 %1133
      %1135 = vrot.lane.b32.xlu0 %v1067, 32
      %v1136 = vpop.permute.xlu0 %1135
      %1137 = vrot.lane.b32.xlu0 %v1068, 32
      %v1138 = vpop.permute.xlu0 %1137
      %1139 = vrot.lane.b32.xlu0 %v1069, 32
      %v1140 = vpop.permute.xlu0 %1139
      %1141 = vrot.lane.b32.xlu0 %v1070, 32
      %v1142 = vpop.permute.xlu0 %1141
      %1143 = vrot.lane.b32.xlu0 %v1071, 32
      %v1144 = vpop.permute.xlu0 %1143
      %1145 = vrot.lane.b32.xlu0 %v1072, 32
      %v1146 = vpop.permute.xlu0 %1145
      %1147 = vrot.lane.b32.xlu0 %v1073, 32
      %v1148 = vpop.permute.xlu0 %1147
      %1149 = vrot.lane.b32.xlu0 %v1074, 32
      %v1150 = vpop.permute.xlu0 %1149
      %1151 = vrot.lane.b32.xlu0 %v1075, 32
      %v1152 = vpop.permute.xlu0 %1151
      %1153 = vrot.lane.b32.xlu0 %v1076, 32
      %v1154 = vpop.permute.xlu0 %1153
      %1155 = vrot.lane.b32.xlu0 %v1077, 32
      %v1156 = vpop.permute.xlu0 %1155
      %1157 = vrot.lane.b32.xlu0 %v1078, 32
      %v1158 = vpop.permute.xlu0 %1157
      %1159 = vrot.lane.b32.xlu0 %v1079, 32
      %v1160 = vpop.permute.xlu0 %1159
      %1161 = vrot.lane.b32.xlu0 %v1080, 32
      %v1162 = vpop.permute.xlu0 %1161
      %1163 = vrot.lane.b32.xlu0 %v1081, 32
      %v1164 = vpop.permute.xlu0 %1163
      %1165 = vrot.lane.b32.xlu0 %v1082, 32
      %v1166 = vpop.permute.xlu0 %1165
      %1167 = vrot.lane.b32.xlu0 %v1083, 32
      %v1168 = vpop.permute.xlu0 %1167
      %1169 = vrot.lane.b32.xlu0 %v1084, 32
      %v1170 = vpop.permute.xlu0 %1169
      %1171 = vrot.lane.b32.xlu0 %v1085, 32
      %v1172 = vpop.permute.xlu0 %1171
      %1173 = vrot.lane.b32.xlu0 %v1086, 32
      %v1174 = vpop.permute.xlu0 %1173
      %1175 = vrot.lane.b32.xlu0 %v1087, 32
      %v1176 = vpop.permute.xlu0 %1175
      %1177 = vrot.lane.b32.xlu0 %v1088, 32
      %v1178 = vpop.permute.xlu0 %1177
      %1179 = vrot.lane.b32.xlu0 %v1089, 32
      %v1180 = vpop.permute.xlu0 %1179
      %1181 = vrot.lane.b32.xlu0 %v1090, 32
      %v1182 = vpop.permute.xlu0 %1181
      %1183 = vrot.lane.b32.xlu0 %v1091, 32
      %v1184 = vpop.permute.xlu0 %1183
      %1185 = vrot.lane.b32.xlu0 %v1092, 32
      %v1186 = vpop.permute.xlu0 %1185
      %1187 = vrot.lane.b32.xlu0 %v1093, 32
      %v1188 = vpop.permute.xlu0 %1187
      %1189 = vrot.lane.b32.xlu0 %v1094, 32
      %v1190 = vpop.permute.xlu0 %1189
      %vm1223 = vcmask 392448
      %1224 = vst.msk [vmem:[#allocation4] sm:$0xff] %vm1223, %v1128
      %1225 = vst.msk [vmem:[#allocation4 + $0x10] sm:$0xff] %vm1223, %v1130
      %1226 = vst.msk [vmem:[#allocation4 + $0x20] sm:$0xff] %vm1223, %v1132
      %1227 = vst.msk [vmem:[#allocation4 + $0x30] sm:$0xff] %vm1223, %v1134
      %1228 = vst.msk [vmem:[#allocation4 + $0x40] sm:$0xff] %vm1223, %v1136
      %1229 = vst.msk [vmem:[#allocation4 + $0x50] sm:$0xff] %vm1223, %v1138
      %1230 = vst.msk [vmem:[#allocation4 + $0x60] sm:$0xff] %vm1223, %v1140
      %1231 = vst.msk [vmem:[#allocation4 + $0x70] sm:$0xff] %vm1223, %v1142
      %1232 = vst.msk [vmem:[#allocation4 + $0x80] sm:$0xff] %vm1223, %v1144
      %1233 = vst.msk [vmem:[#allocation4 + $0x90] sm:$0xff] %vm1223, %v1146
      %1234 = vst.msk [vmem:[#allocation4 + $0xa0] sm:$0xff] %vm1223, %v1148
      %1235 = vst.msk [vmem:[#allocation4 + $0xb0] sm:$0xff] %vm1223, %v1150
      %1236 = vst.msk [vmem:[#allocation4 + $0xc0] sm:$0xff] %vm1223, %v1152
      %1237 = vst.msk [vmem:[#allocation4 + $0xd0] sm:$0xff] %vm1223, %v1154
      %1238 = vst.msk [vmem:[#allocation4 + $0xe0] sm:$0xff] %vm1223, %v1156
      %1239 = vst.msk [vmem:[#allocation4 + $0xf0] sm:$0xff] %vm1223, %v1158
      %1240 = vst.msk [vmem:[#allocation4 + $0x100] sm:$0xff] %vm1223, %v1160
      %1241 = vst.msk [vmem:[#allocation4 + $0x110] sm:$0xff] %vm1223, %v1162
      %1242 = vst.msk [vmem:[#allocation4 + $0x120] sm:$0xff] %vm1223, %v1164
      %1243 = vst.msk [vmem:[#allocation4 + $0x130] sm:$0xff] %vm1223, %v1166
      %1244 = vst.msk [vmem:[#allocation4 + $0x140] sm:$0xff] %vm1223, %v1168
      %1245 = vst.msk [vmem:[#allocation4 + $0x150] sm:$0xff] %vm1223, %v1170
      %1246 = vst.msk [vmem:[#allocation4 + $0x160] sm:$0xff] %vm1223, %v1172
      %1247 = vst.msk [vmem:[#allocation4 + $0x170] sm:$0xff] %vm1223, %v1174
      %1248 = vst.msk [vmem:[#allocation4 + $0x180] sm:$0xff] %vm1223, %v1176
      %1249 = vst.msk [vmem:[#allocation4 + $0x190] sm:$0xff] %vm1223, %v1178
      %1250 = vst.msk [vmem:[#allocation4 + $0x1a0] sm:$0xff] %vm1223, %v1180
      %1251 = vst.msk [vmem:[#allocation4 + $0x1b0] sm:$0xff] %vm1223, %v1182
      %1252 = vst.msk [vmem:[#allocation4 + $0x1c0] sm:$0xff] %vm1223, %v1184
      %1253 = vst.msk [vmem:[#allocation4 + $0x1d0] sm:$0xff] %vm1223, %v1186
      %1254 = vst.msk [vmem:[#allocation4 + $0x1e0] sm:$0xff] %vm1223, %v1188
      %1255 = vst.msk [vmem:[#allocation4 + $0x1f0] sm:$0xff] %vm1223, %v1190
      %v1256 = vld [vmem:[%s643] sm:$0xff]
      %v1257 = vld [vmem:[%s643 + $0x10] sm:$0xff]
      %v1258 = vld [vmem:[%s643 + $0x20] sm:$0xff]
      %v1259 = vld [vmem:[%s643 + $0x30] sm:$0xff]
      %v1260 = vld [vmem:[%s643 + $0x40] sm:$0xff]
      %v1261 = vld [vmem:[%s643 + $0x50] sm:$0xff]
      %v1262 = vld [vmem:[%s643 + $0x60] sm:$0xff]
      %v1263 = vld [vmem:[%s643 + $0x70] sm:$0xff]
      %v1264 = vld [vmem:[%s643 + $0x80] sm:$0xff]
      %v1265 = vld [vmem:[%s643 + $0x90] sm:$0xff]
      %v1266 = vld [vmem:[%s643 + $0xa0] sm:$0xff]
      %v1267 = vld [vmem:[%s643 + $0xb0] sm:$0xff]
      %v1268 = vld [vmem:[%s643 + $0xc0] sm:$0xff]
      %v1269 = vld [vmem:[%s643 + $0xd0] sm:$0xff]
      %v1270 = vld [vmem:[%s643 + $0xe0] sm:$0xff]
      %v1271 = vld [vmem:[%s643 + $0xf0] sm:$0xff]
      %v1272 = vld [vmem:[%s643 + $0x100] sm:$0xff]
      %v1273 = vld [vmem:[%s643 + $0x110] sm:$0xff]
      %v1274 = vld [vmem:[%s643 + $0x120] sm:$0xff]
      %v1275 = vld [vmem:[%s643 + $0x130] sm:$0xff]
      %v1276 = vld [vmem:[%s643 + $0x140] sm:$0xff]
      %v1277 = vld [vmem:[%s643 + $0x150] sm:$0xff]
      %v1278 = vld [vmem:[%s643 + $0x160] sm:$0xff]
      %v1279 = vld [vmem:[%s643 + $0x170] sm:$0xff]
      %v1280 = vld [vmem:[%s643 + $0x180] sm:$0xff]
      %v1281 = vld [vmem:[%s643 + $0x190] sm:$0xff]
      %v1282 = vld [vmem:[%s643 + $0x1a0] sm:$0xff]
      %v1283 = vld [vmem:[%s643 + $0x1b0] sm:$0xff]
      %v1284 = vld [vmem:[%s643 + $0x1c0] sm:$0xff]
      %v1285 = vld [vmem:[%s643 + $0x1d0] sm:$0xff]
      %v1286 = vld [vmem:[%s643 + $0x1e0] sm:$0xff]
      %v1287 = vld [vmem:[%s643 + $0x1f0] sm:$0xff]
      %1320 = vrot.lane.b32.xlu0 %v1256, 48
      %v1321 = vpop.permute.xlu0 %1320
      %1322 = vrot.lane.b32.xlu0 %v1257, 48
      %v1323 = vpop.permute.xlu0 %1322
      %1324 = vrot.lane.b32.xlu0 %v1258, 48
      %v1325 = vpop.permute.xlu0 %1324
      %1326 = vrot.lane.b32.xlu0 %v1259, 48
      %v1327 = vpop.permute.xlu0 %1326
      %1328 = vrot.lane.b32.xlu0 %v1260, 48
      %v1329 = vpop.permute.xlu0 %1328
      %1330 = vrot.lane.b32.xlu0 %v1261, 48
      %v1331 = vpop.permute.xlu0 %1330
      %1332 = vrot.lane.b32.xlu0 %v1262, 48
      %v1333 = vpop.permute.xlu0 %1332
      %1334 = vrot.lane.b32.xlu0 %v1263, 48
      %v1335 = vpop.permute.xlu0 %1334
      %1336 = vrot.lane.b32.xlu0 %v1264, 48
      %v1337 = vpop.permute.xlu0 %1336
      %1338 = vrot.lane.b32.xlu0 %v1265, 48
      %v1339 = vpop.permute.xlu0 %1338
      %1340 = vrot.lane.b32.xlu0 %v1266, 48
      %v1341 = vpop.permute.xlu0 %1340
      %1342 = vrot.lane.b32.xlu0 %v1267, 48
      %v1343 = vpop.permute.xlu0 %1342
      %1344 = vrot.lane.b32.xlu0 %v1268, 48
      %v1345 = vpop.permute.xlu0 %1344
      %1346 = vrot.lane.b32.xlu0 %v1269, 48
      %v1347 = vpop.permute.xlu0 %1346
      %1348 = vrot.lane.b32.xlu0 %v1270, 48
      %v1349 = vpop.permute.xlu0 %1348
      %1350 = vrot.lane.b32.xlu0 %v1271, 48
      %v1351 = vpop.permute.xlu0 %1350
      %1352 = vrot.lane.b32.xlu0 %v1272, 48
      %v1353 = vpop.permute.xlu0 %1352
      %1354 = vrot.lane.b32.xlu0 %v1273, 48
      %v1355 = vpop.permute.xlu0 %1354
      %1356 = vrot.lane.b32.xlu0 %v1274, 48
      %v1357 = vpop.permute.xlu0 %1356
      %1358 = vrot.lane.b32.xlu0 %v1275, 48
      %v1359 = vpop.permute.xlu0 %1358
      %1360 = vrot.lane.b32.xlu0 %v1276, 48
      %v1361 = vpop.permute.xlu0 %1360
      %1362 = vrot.lane.b32.xlu0 %v1277, 48
      %v1363 = vpop.permute.xlu0 %1362
      %1364 = vrot.lane.b32.xlu0 %v1278, 48
      %v1365 = vpop.permute.xlu0 %1364
      %1366 = vrot.lane.b32.xlu0 %v1279, 48
      %v1367 = vpop.permute.xlu0 %1366
      %1368 = vrot.lane.b32.xlu0 %v1280, 48
      %v1369 = vpop.permute.xlu0 %1368
      %1370 = vrot.lane.b32.xlu0 %v1281, 48
      %v1371 = vpop.permute.xlu0 %1370
      %1372 = vrot.lane.b32.xlu0 %v1282, 48
      %v1373 = vpop.permute.xlu0 %1372
      %1374 = vrot.lane.b32.xlu0 %v1283, 48
      %v1375 = vpop.permute.xlu0 %1374
      %1376 = vrot.lane.b32.xlu0 %v1284, 48
      %v1377 = vpop.permute.xlu0 %1376
      %1378 = vrot.lane.b32.xlu0 %v1285, 48
      %v1379 = vpop.permute.xlu0 %1378
      %1380 = vrot.lane.b32.xlu0 %v1286, 48
      %v1381 = vpop.permute.xlu0 %1380
      %1382 = vrot.lane.b32.xlu0 %v1287, 48
      %v1383 = vpop.permute.xlu0 %1382
      %vm1416 = vcmask 523648
      %1417 = vst.msk [vmem:[#allocation4] sm:$0xff] %vm1416, %v1321
      %1418 = vst.msk [vmem:[#allocation4 + $0x10] sm:$0xff] %vm1416, %v1323
      %1419 = vst.msk [vmem:[#allocation4 + $0x20] sm:$0xff] %vm1416, %v1325
      %1420 = vst.msk [vmem:[#allocation4 + $0x30] sm:$0xff] %vm1416, %v1327
      %1421 = vst.msk [vmem:[#allocation4 + $0x40] sm:$0xff] %vm1416, %v1329
      %1422 = vst.msk [vmem:[#allocation4 + $0x50] sm:$0xff] %vm1416, %v1331
      %1423 = vst.msk [vmem:[#allocation4 + $0x60] sm:$0xff] %vm1416, %v1333
      %1424 = vst.msk [vmem:[#allocation4 + $0x70] sm:$0xff] %vm1416, %v1335
      %1425 = vst.msk [vmem:[#allocation4 + $0x80] sm:$0xff] %vm1416, %v1337
      %1426 = vst.msk [vmem:[#allocation4 + $0x90] sm:$0xff] %vm1416, %v1339
      %1427 = vst.msk [vmem:[#allocation4 + $0xa0] sm:$0xff] %vm1416, %v1341
      %1428 = vst.msk [vmem:[#allocation4 + $0xb0] sm:$0xff] %vm1416, %v1343
      %1429 = vst.msk [vmem:[#allocation4 + $0xc0] sm:$0xff] %vm1416, %v1345
      %1430 = vst.msk [vmem:[#allocation4 + $0xd0] sm:$0xff] %vm1416, %v1347
      %1431 = vst.msk [vmem:[#allocation4 + $0xe0] sm:$0xff] %vm1416, %v1349
      %1432 = vst.msk [vmem:[#allocation4 + $0xf0] sm:$0xff] %vm1416, %v1351
      %1433 = vst.msk [vmem:[#allocation4 + $0x100] sm:$0xff] %vm1416, %v1353
      %1434 = vst.msk [vmem:[#allocation4 + $0x110] sm:$0xff] %vm1416, %v1355
      %1435 = vst.msk [vmem:[#allocation4 + $0x120] sm:$0xff] %vm1416, %v1357
      %1436 = vst.msk [vmem:[#allocation4 + $0x130] sm:$0xff] %vm1416, %v1359
      %1437 = vst.msk [vmem:[#allocation4 + $0x140] sm:$0xff] %vm1416, %v1361
      %1438 = vst.msk [vmem:[#allocation4 + $0x150] sm:$0xff] %vm1416, %v1363
      %1439 = vst.msk [vmem:[#allocation4 + $0x160] sm:$0xff] %vm1416, %v1365
      %1440 = vst.msk [vmem:[#allocation4 + $0x170] sm:$0xff] %vm1416, %v1367
      %1441 = vst.msk [vmem:[#allocation4 + $0x180] sm:$0xff] %vm1416, %v1369
      %1442 = vst.msk [vmem:[#allocation4 + $0x190] sm:$0xff] %vm1416, %v1371
      %1443 = vst.msk [vmem:[#allocation4 + $0x1a0] sm:$0xff] %vm1416, %v1373
      %1444 = vst.msk [vmem:[#allocation4 + $0x1b0] sm:$0xff] %vm1416, %v1375
      %1445 = vst.msk [vmem:[#allocation4 + $0x1c0] sm:$0xff] %vm1416, %v1377
      %1446 = vst.msk [vmem:[#allocation4 + $0x1d0] sm:$0xff] %vm1416, %v1379
      %1447 = vst.msk [vmem:[#allocation4 + $0x1e0] sm:$0xff] %vm1416, %v1381
      %1448 = vst.msk [vmem:[#allocation4 + $0x1f0] sm:$0xff] %vm1416, %v1383
      %v1449 = vld [vmem:[%s643 + $0x1] sm:$0xff]
      %v1450 = vld [vmem:[%s643 + $0x11] sm:$0xff]
      %v1451 = vld [vmem:[%s643 + $0x21] sm:$0xff]
      %v1452 = vld [vmem:[%s643 + $0x31] sm:$0xff]
      %v1453 = vld [vmem:[%s643 + $0x41] sm:$0xff]
      %v1454 = vld [vmem:[%s643 + $0x51] sm:$0xff]
      %v1455 = vld [vmem:[%s643 + $0x61] sm:$0xff]
      %v1456 = vld [vmem:[%s643 + $0x71] sm:$0xff]
      %v1457 = vld [vmem:[%s643 + $0x81] sm:$0xff]
      %v1458 = vld [vmem:[%s643 + $0x91] sm:$0xff]
      %v1459 = vld [vmem:[%s643 + $0xa1] sm:$0xff]
      %v1460 = vld [vmem:[%s643 + $0xb1] sm:$0xff]
      %v1461 = vld [vmem:[%s643 + $0xc1] sm:$0xff]
      %v1462 = vld [vmem:[%s643 + $0xd1] sm:$0xff]
      %v1463 = vld [vmem:[%s643 + $0xe1] sm:$0xff]
      %v1464 = vld [vmem:[%s643 + $0xf1] sm:$0xff]
      %v1465 = vld [vmem:[%s643 + $0x101] sm:$0xff]
      %v1466 = vld [vmem:[%s643 + $0x111] sm:$0xff]
      %v1467 = vld [vmem:[%s643 + $0x121] sm:$0xff]
      %v1468 = vld [vmem:[%s643 + $0x131] sm:$0xff]
      %v1469 = vld [vmem:[%s643 + $0x141] sm:$0xff]
      %v1470 = vld [vmem:[%s643 + $0x151] sm:$0xff]
      %v1471 = vld [vmem:[%s643 + $0x161] sm:$0xff]
      %v1472 = vld [vmem:[%s643 + $0x171] sm:$0xff]
      %v1473 = vld [vmem:[%s643 + $0x181] sm:$0xff]
      %v1474 = vld [vmem:[%s643 + $0x191] sm:$0xff]
      %v1475 = vld [vmem:[%s643 + $0x1a1] sm:$0xff]
      %v1476 = vld [vmem:[%s643 + $0x1b1] sm:$0xff]
      %v1477 = vld [vmem:[%s643 + $0x1c1] sm:$0xff]
      %v1478 = vld [vmem:[%s643 + $0x1d1] sm:$0xff]
      %v1479 = vld [vmem:[%s643 + $0x1e1] sm:$0xff]
      %v1480 = vld [vmem:[%s643 + $0x1f1] sm:$0xff]
      %1513 = vrot.lane.b32.xlu0 %v1449, 64
      %v1514 = vpop.permute.xlu0 %1513
      %1515 = vrot.lane.b32.xlu0 %v1450, 64
      %v1516 = vpop.permute.xlu0 %1515
      %1517 = vrot.lane.b32.xlu0 %v1451, 64
      %v1518 = vpop.permute.xlu0 %1517
      %1519 = vrot.lane.b32.xlu0 %v1452, 64
      %v1520 = vpop.permute.xlu0 %1519
      %1521 = vrot.lane.b32.xlu0 %v1453, 64
      %v1522 = vpop.permute.xlu0 %1521
      %1523 = vrot.lane.b32.xlu0 %v1454, 64
      %v1524 = vpop.permute.xlu0 %1523
      %1525 = vrot.lane.b32.xlu0 %v1455, 64
      %v1526 = vpop.permute.xlu0 %1525
      %1527 = vrot.lane.b32.xlu0 %v1456, 64
      %v1528 = vpop.permute.xlu0 %1527
      %1529 = vrot.lane.b32.xlu0 %v1457, 64
      %v1530 = vpop.permute.xlu0 %1529
      %1531 = vrot.lane.b32.xlu0 %v1458, 64
      %v1532 = vpop.permute.xlu0 %1531
      %1533 = vrot.lane.b32.xlu0 %v1459, 64
      %v1534 = vpop.permute.xlu0 %1533
      %1535 = vrot.lane.b32.xlu0 %v1460, 64
      %v1536 = vpop.permute.xlu0 %1535
      %1537 = vrot.lane.b32.xlu0 %v1461, 64
      %v1538 = vpop.permute.xlu0 %1537
      %1539 = vrot.lane.b32.xlu0 %v1462, 64
      %v1540 = vpop.permute.xlu0 %1539
      %1541 = vrot.lane.b32.xlu0 %v1463, 64
      %v1542 = vpop.permute.xlu0 %1541
      %1543 = vrot.lane.b32.xlu0 %v1464, 64
      %v1544 = vpop.permute.xlu0 %1543
      %1545 = vrot.lane.b32.xlu0 %v1465, 64
      %v1546 = vpop.permute.xlu0 %1545
      %1547 = vrot.lane.b32.xlu0 %v1466, 64
      %v1548 = vpop.permute.xlu0 %1547
      %1549 = vrot.lane.b32.xlu0 %v1467, 64
      %v1550 = vpop.permute.xlu0 %1549
      %1551 = vrot.lane.b32.xlu0 %v1468, 64
      %v1552 = vpop.permute.xlu0 %1551
      %1553 = vrot.lane.b32.xlu0 %v1469, 64
      %v1554 = vpop.permute.xlu0 %1553
      %1555 = vrot.lane.b32.xlu0 %v1470, 64
      %v1556 = vpop.permute.xlu0 %1555
      %1557 = vrot.lane.b32.xlu0 %v1471, 64
      %v1558 = vpop.permute.xlu0 %1557
      %1559 = vrot.lane.b32.xlu0 %v1472, 64
      %v1560 = vpop.permute.xlu0 %1559
      %1561 = vrot.lane.b32.xlu0 %v1473, 64
      %v1562 = vpop.permute.xlu0 %1561
      %1563 = vrot.lane.b32.xlu0 %v1474, 64
      %v1564 = vpop.permute.xlu0 %1563
      %1565 = vrot.lane.b32.xlu0 %v1475, 64
      %v1566 = vpop.permute.xlu0 %1565
      %1567 = vrot.lane.b32.xlu0 %v1476, 64
      %v1568 = vpop.permute.xlu0 %1567
      %1569 = vrot.lane.b32.xlu0 %v1477, 64
      %v1570 = vpop.permute.xlu0 %1569
      %1571 = vrot.lane.b32.xlu0 %v1478, 64
      %v1572 = vpop.permute.xlu0 %1571
      %1573 = vrot.lane.b32.xlu0 %v1479, 64
      %v1574 = vpop.permute.xlu0 %1573
      %1575 = vrot.lane.b32.xlu0 %v1480, 64
      %v1576 = vpop.permute.xlu0 %1575
      %vm1609 = vcmask 654848
      %1610 = vst.msk [vmem:[#allocation4] sm:$0xff] %vm1609, %v1514
      %1611 = vst.msk [vmem:[#allocation4 + $0x10] sm:$0xff] %vm1609, %v1516
      %1612 = vst.msk [vmem:[#allocation4 + $0x20] sm:$0xff] %vm1609, %v1518
      %1613 = vst.msk [vmem:[#allocation4 + $0x30] sm:$0xff] %vm1609, %v1520
      %1614 = vst.msk [vmem:[#allocation4 + $0x40] sm:$0xff] %vm1609, %v1522
      %1615 = vst.msk [vmem:[#allocation4 + $0x50] sm:$0xff] %vm1609, %v1524
      %1616 = vst.msk [vmem:[#allocation4 + $0x60] sm:$0xff] %vm1609, %v1526
      %1617 = vst.msk [vmem:[#allocation4 + $0x70] sm:$0xff] %vm1609, %v1528
      %1618 = vst.msk [vmem:[#allocation4 + $0x80] sm:$0xff] %vm1609, %v1530
      %1619 = vst.msk [vmem:[#allocation4 + $0x90] sm:$0xff] %vm1609, %v1532
      %1620 = vst.msk [vmem:[#allocation4 + $0xa0] sm:$0xff] %vm1609, %v1534
      %1621 = vst.msk [vmem:[#allocation4 + $0xb0] sm:$0xff] %vm1609, %v1536
      %1622 = vst.msk [vmem:[#allocation4 + $0xc0] sm:$0xff] %vm1609, %v1538
      %1623 = vst.msk [vmem:[#allocation4 + $0xd0] sm:$0xff] %vm1609, %v1540
      %1624 = vst.msk [vmem:[#allocation4 + $0xe0] sm:$0xff] %vm1609, %v1542
      %1625 = vst.msk [vmem:[#allocation4 + $0xf0] sm:$0xff] %vm1609, %v1544
      %1626 = vst.msk [vmem:[#allocation4 + $0x100] sm:$0xff] %vm1609, %v1546
      %1627 = vst.msk [vmem:[#allocation4 + $0x110] sm:$0xff] %vm1609, %v1548
      %1628 = vst.msk [vmem:[#allocation4 + $0x120] sm:$0xff] %vm1609, %v1550
      %1629 = vst.msk [vmem:[#allocation4 + $0x130] sm:$0xff] %vm1609, %v1552
      %1630 = vst.msk [vmem:[#allocation4 + $0x140] sm:$0xff] %vm1609, %v1554
      %1631 = vst.msk [vmem:[#allocation4 + $0x150] sm:$0xff] %vm1609, %v1556
      %1632 = vst.msk [vmem:[#allocation4 + $0x160] sm:$0xff] %vm1609, %v1558
      %1633 = vst.msk [vmem:[#allocation4 + $0x170] sm:$0xff] %vm1609, %v1560
      %1634 = vst.msk [vmem:[#allocation4 + $0x180] sm:$0xff] %vm1609, %v1562
      %1635 = vst.msk [vmem:[#allocation4 + $0x190] sm:$0xff] %vm1609, %v1564
      %1636 = vst.msk [vmem:[#allocation4 + $0x1a0] sm:$0xff] %vm1609, %v1566
      %1637 = vst.msk [vmem:[#allocation4 + $0x1b0] sm:$0xff] %vm1609, %v1568
      %1638 = vst.msk [vmem:[#allocation4 + $0x1c0] sm:$0xff] %vm1609, %v1570
      %1639 = vst.msk [vmem:[#allocation4 + $0x1d0] sm:$0xff] %vm1609, %v1572
      %1640 = vst.msk [vmem:[#allocation4 + $0x1e0] sm:$0xff] %vm1609, %v1574
      %1641 = vst.msk [vmem:[#allocation4 + $0x1f0] sm:$0xff] %vm1609, %v1576
      %v1642 = vld [vmem:[%s643 + $0x2] sm:$0xff]
      %v1643 = vld [vmem:[%s643 + $0x12] sm:$0xff]
      %v1644 = vld [vmem:[%s643 + $0x22] sm:$0xff]
      %v1645 = vld [vmem:[%s643 + $0x32] sm:$0xff]
      %v1646 = vld [vmem:[%s643 + $0x42] sm:$0xff]
      %v1647 = vld [vmem:[%s643 + $0x52] sm:$0xff]
      %v1648 = vld [vmem:[%s643 + $0x62] sm:$0xff]
      %v1649 = vld [vmem:[%s643 + $0x72] sm:$0xff]
      %v1650 = vld [vmem:[%s643 + $0x82] sm:$0xff]
      %v1651 = vld [vmem:[%s643 + $0x92] sm:$0xff]
      %v1652 = vld [vmem:[%s643 + $0xa2] sm:$0xff]
      %v1653 = vld [vmem:[%s643 + $0xb2] sm:$0xff]
      %v1654 = vld [vmem:[%s643 + $0xc2] sm:$0xff]
      %v1655 = vld [vmem:[%s643 + $0xd2] sm:$0xff]
      %v1656 = vld [vmem:[%s643 + $0xe2] sm:$0xff]
      %v1657 = vld [vmem:[%s643 + $0xf2] sm:$0xff]
      %v1658 = vld [vmem:[%s643 + $0x102] sm:$0xff]
      %v1659 = vld [vmem:[%s643 + $0x112] sm:$0xff]
      %v1660 = vld [vmem:[%s643 + $0x122] sm:$0xff]
      %v1661 = vld [vmem:[%s643 + $0x132] sm:$0xff]
      %v1662 = vld [vmem:[%s643 + $0x142] sm:$0xff]
      %v1663 = vld [vmem:[%s643 + $0x152] sm:$0xff]
      %v1664 = vld [vmem:[%s643 + $0x162] sm:$0xff]
      %v1665 = vld [vmem:[%s643 + $0x172] sm:$0xff]
      %v1666 = vld [vmem:[%s643 + $0x182] sm:$0xff]
      %v1667 = vld [vmem:[%s643 + $0x192] sm:$0xff]
      %v1668 = vld [vmem:[%s643 + $0x1a2] sm:$0xff]
      %v1669 = vld [vmem:[%s643 + $0x1b2] sm:$0xff]
      %v1670 = vld [vmem:[%s643 + $0x1c2] sm:$0xff]
      %v1671 = vld [vmem:[%s643 + $0x1d2] sm:$0xff]
      %v1672 = vld [vmem:[%s643 + $0x1e2] sm:$0xff]
      %v1673 = vld [vmem:[%s643 + $0x1f2] sm:$0xff]
      %1706 = vrot.lane.b32.xlu0 %v1642, 80
      %v1707 = vpop.permute.xlu0 %1706
      %1708 = vrot.lane.b32.xlu0 %v1643, 80
      %v1709 = vpop.permute.xlu0 %1708
      %1710 = vrot.lane.b32.xlu0 %v1644, 80
      %v1711 = vpop.permute.xlu0 %1710
      %1712 = vrot.lane.b32.xlu0 %v1645, 80
      %v1713 = vpop.permute.xlu0 %1712
      %1714 = vrot.lane.b32.xlu0 %v1646, 80
      %v1715 = vpop.permute.xlu0 %1714
      %1716 = vrot.lane.b32.xlu0 %v1647, 80
      %v1717 = vpop.permute.xlu0 %1716
      %1718 = vrot.lane.b32.xlu0 %v1648, 80
      %v1719 = vpop.permute.xlu0 %1718
      %1720 = vrot.lane.b32.xlu0 %v1649, 80
      %v1721 = vpop.permute.xlu0 %1720
      %1722 = vrot.lane.b32.xlu0 %v1650, 80
      %v1723 = vpop.permute.xlu0 %1722
      %1724 = vrot.lane.b32.xlu0 %v1651, 80
      %v1725 = vpop.permute.xlu0 %1724
      %1726 = vrot.lane.b32.xlu0 %v1652, 80
      %v1727 = vpop.permute.xlu0 %1726
      %1728 = vrot.lane.b32.xlu0 %v1653, 80
      %v1729 = vpop.permute.xlu0 %1728
      %1730 = vrot.lane.b32.xlu0 %v1654, 80
      %v1731 = vpop.permute.xlu0 %1730
      %1732 = vrot.lane.b32.xlu0 %v1655, 80
      %v1733 = vpop.permute.xlu0 %1732
      %1734 = vrot.lane.b32.xlu0 %v1656, 80
      %v1735 = vpop.permute.xlu0 %1734
      %1736 = vrot.lane.b32.xlu0 %v1657, 80
      %v1737 = vpop.permute.xlu0 %1736
      %1738 = vrot.lane.b32.xlu0 %v1658, 80
      %v1739 = vpop.permute.xlu0 %1738
      %1740 = vrot.lane.b32.xlu0 %v1659, 80
      %v1741 = vpop.permute.xlu0 %1740
      %1742 = vrot.lane.b32.xlu0 %v1660, 80
      %v1743 = vpop.permute.xlu0 %1742
      %1744 = vrot.lane.b32.xlu0 %v1661, 80
      %v1745 = vpop.permute.xlu0 %1744
      %1746 = vrot.lane.b32.xlu0 %v1662, 80
      %v1747 = vpop.permute.xlu0 %1746
      %1748 = vrot.lane.b32.xlu0 %v1663, 80
      %v1749 = vpop.permute.xlu0 %1748
      %1750 = vrot.lane.b32.xlu0 %v1664, 80
      %v1751 = vpop.permute.xlu0 %1750
      %1752 = vrot.lane.b32.xlu0 %v1665, 80
      %v1753 = vpop.permute.xlu0 %1752
      %1754 = vrot.lane.b32.xlu0 %v1666, 80
      %v1755 = vpop.permute.xlu0 %1754
      %1756 = vrot.lane.b32.xlu0 %v1667, 80
      %v1757 = vpop.permute.xlu0 %1756
      %1758 = vrot.lane.b32.xlu0 %v1668, 80
      %v1759 = vpop.permute.xlu0 %1758
      %1760 = vrot.lane.b32.xlu0 %v1669, 80
      %v1761 = vpop.permute.xlu0 %1760
      %1762 = vrot.lane.b32.xlu0 %v1670, 80
      %v1763 = vpop.permute.xlu0 %1762
      %1764 = vrot.lane.b32.xlu0 %v1671, 80
      %v1765 = vpop.permute.xlu0 %1764
      %1766 = vrot.lane.b32.xlu0 %v1672, 80
      %v1767 = vpop.permute.xlu0 %1766
      %1768 = vrot.lane.b32.xlu0 %v1673, 80
      %v1769 = vpop.permute.xlu0 %1768
      %vm1802 = vcmask 786048
      %1803 = vst.msk [vmem:[#allocation4] sm:$0xff] %vm1802, %v1707
      %1804 = vst.msk [vmem:[#allocation4 + $0x10] sm:$0xff] %vm1802, %v1709
      %1805 = vst.msk [vmem:[#allocation4 + $0x20] sm:$0xff] %vm1802, %v1711
      %1806 = vst.msk [vmem:[#allocation4 + $0x30] sm:$0xff] %vm1802, %v1713
      %1807 = vst.msk [vmem:[#allocation4 + $0x40] sm:$0xff] %vm1802, %v1715
      %1808 = vst.msk [vmem:[#allocation4 + $0x50] sm:$0xff] %vm1802, %v1717
      %1809 = vst.msk [vmem:[#allocation4 + $0x60] sm:$0xff] %vm1802, %v1719
      %1810 = vst.msk [vmem:[#allocation4 + $0x70] sm:$0xff] %vm1802, %v1721
      %1811 = vst.msk [vmem:[#allocation4 + $0x80] sm:$0xff] %vm1802, %v1723
      %1812 = vst.msk [vmem:[#allocation4 + $0x90] sm:$0xff] %vm1802, %v1725
      %1813 = vst.msk [vmem:[#allocation4 + $0xa0] sm:$0xff] %vm1802, %v1727
      %1814 = vst.msk [vmem:[#allocation4 + $0xb0] sm:$0xff] %vm1802, %v1729
      %1815 = vst.msk [vmem:[#allocation4 + $0xc0] sm:$0xff] %vm1802, %v1731
      %1816 = vst.msk [vmem:[#allocation4 + $0xd0] sm:$0xff] %vm1802, %v1733
      %1817 = vst.msk [vmem:[#allocation4 + $0xe0] sm:$0xff] %vm1802, %v1735
      %1818 = vst.msk [vmem:[#allocation4 + $0xf0] sm:$0xff] %vm1802, %v1737
      %1819 = vst.msk [vmem:[#allocation4 + $0x100] sm:$0xff] %vm1802, %v1739
      %1820 = vst.msk [vmem:[#allocation4 + $0x110] sm:$0xff] %vm1802, %v1741
      %1821 = vst.msk [vmem:[#allocation4 + $0x120] sm:$0xff] %vm1802, %v1743
      %1822 = vst.msk [vmem:[#allocation4 + $0x130] sm:$0xff] %vm1802, %v1745
      %1823 = vst.msk [vmem:[#allocation4 + $0x140] sm:$0xff] %vm1802, %v1747
      %1824 = vst.msk [vmem:[#allocation4 + $0x150] sm:$0xff] %vm1802, %v1749
      %1825 = vst.msk [vmem:[#allocation4 + $0x160] sm:$0xff] %vm1802, %v1751
      %1826 = vst.msk [vmem:[#allocation4 + $0x170] sm:$0xff] %vm1802, %v1753
      %1827 = vst.msk [vmem:[#allocation4 + $0x180] sm:$0xff] %vm1802, %v1755
      %1828 = vst.msk [vmem:[#allocation4 + $0x190] sm:$0xff] %vm1802, %v1757
      %1829 = vst.msk [vmem:[#allocation4 + $0x1a0] sm:$0xff] %vm1802, %v1759
      %1830 = vst.msk [vmem:[#allocation4 + $0x1b0] sm:$0xff] %vm1802, %v1761
      %1831 = vst.msk [vmem:[#allocation4 + $0x1c0] sm:$0xff] %vm1802, %v1763
      %1832 = vst.msk [vmem:[#allocation4 + $0x1d0] sm:$0xff] %vm1802, %v1765
      %1833 = vst.msk [vmem:[#allocation4 + $0x1e0] sm:$0xff] %vm1802, %v1767
      %1834 = vst.msk [vmem:[#allocation4 + $0x1f0] sm:$0xff] %vm1802, %v1769
      %s1835 = scalar_lea.vmem [#allocation2], 32
      %v1836 = vld [vmem:[%s1835] sm:$0xff]
      %v1837 = vld [vmem:[%s1835 + $0x10] sm:$0xff]
      %v1838 = vld [vmem:[%s1835 + $0x20] sm:$0xff]
      %v1839 = vld [vmem:[%s1835 + $0x30] sm:$0xff]
      %v1840 = vld [vmem:[%s1835 + $0x40] sm:$0xff]
      %v1841 = vld [vmem:[%s1835 + $0x50] sm:$0xff]
      %v1842 = vld [vmem:[%s1835 + $0x60] sm:$0xff]
      %v1843 = vld [vmem:[%s1835 + $0x70] sm:$0xff]
      %v1844 = vld [vmem:[%s1835 + $0x80] sm:$0xff]
      %v1845 = vld [vmem:[%s1835 + $0x90] sm:$0xff]
      %v1846 = vld [vmem:[%s1835 + $0xa0] sm:$0xff]
      %v1847 = vld [vmem:[%s1835 + $0xb0] sm:$0xff]
      %v1848 = vld [vmem:[%s1835 + $0xc0] sm:$0xff]
      %v1849 = vld [vmem:[%s1835 + $0xd0] sm:$0xff]
      %v1850 = vld [vmem:[%s1835 + $0xe0] sm:$0xff]
      %v1851 = vld [vmem:[%s1835 + $0xf0] sm:$0xff]
      %v1852 = vld [vmem:[%s1835 + $0x100] sm:$0xff]
      %v1853 = vld [vmem:[%s1835 + $0x110] sm:$0xff]
      %v1854 = vld [vmem:[%s1835 + $0x120] sm:$0xff]
      %v1855 = vld [vmem:[%s1835 + $0x130] sm:$0xff]
      %v1856 = vld [vmem:[%s1835 + $0x140] sm:$0xff]
      %v1857 = vld [vmem:[%s1835 + $0x150] sm:$0xff]
      %v1858 = vld [vmem:[%s1835 + $0x160] sm:$0xff]
      %v1859 = vld [vmem:[%s1835 + $0x170] sm:$0xff]
      %v1860 = vld [vmem:[%s1835 + $0x180] sm:$0xff]
      %v1861 = vld [vmem:[%s1835 + $0x190] sm:$0xff]
      %v1862 = vld [vmem:[%s1835 + $0x1a0] sm:$0xff]
      %v1863 = vld [vmem:[%s1835 + $0x1b0] sm:$0xff]
      %v1864 = vld [vmem:[%s1835 + $0x1c0] sm:$0xff]
      %v1865 = vld [vmem:[%s1835 + $0x1d0] sm:$0xff]
      %v1866 = vld [vmem:[%s1835 + $0x1e0] sm:$0xff]
      %v1867 = vld [vmem:[%s1835 + $0x1f0] sm:$0xff]
      %1900 = vrot.lane.b32.xlu0 %v1836, 96
      %v1901 = vpop.permute.xlu0 %1900
      %1902 = vrot.lane.b32.xlu0 %v1837, 96
      %v1903 = vpop.permute.xlu0 %1902
      %1904 = vrot.lane.b32.xlu0 %v1838, 96
      %v1905 = vpop.permute.xlu0 %1904
      %1906 = vrot.lane.b32.xlu0 %v1839, 96
      %v1907 = vpop.permute.xlu0 %1906
      %1908 = vrot.lane.b32.xlu0 %v1840, 96
      %v1909 = vpop.permute.xlu0 %1908
      %1910 = vrot.lane.b32.xlu0 %v1841, 96
      %v1911 = vpop.permute.xlu0 %1910
      %1912 = vrot.lane.b32.xlu0 %v1842, 96
      %v1913 = vpop.permute.xlu0 %1912
      %1914 = vrot.lane.b32.xlu0 %v1843, 96
      %v1915 = vpop.permute.xlu0 %1914
      %1916 = vrot.lane.b32.xlu0 %v1844, 96
      %v1917 = vpop.permute.xlu0 %1916
      %1918 = vrot.lane.b32.xlu0 %v1845, 96
      %v1919 = vpop.permute.xlu0 %1918
      %1920 = vrot.lane.b32.xlu0 %v1846, 96
      %v1921 = vpop.permute.xlu0 %1920
      %1922 = vrot.lane.b32.xlu0 %v1847, 96
      %v1923 = vpop.permute.xlu0 %1922
      %1924 = vrot.lane.b32.xlu0 %v1848, 96
      %v1925 = vpop.permute.xlu0 %1924
      %1926 = vrot.lane.b32.xlu0 %v1849, 96
      %v1927 = vpop.permute.xlu0 %1926
      %1928 = vrot.lane.b32.xlu0 %v1850, 96
      %v1929 = vpop.permute.xlu0 %1928
      %1930 = vrot.lane.b32.xlu0 %v1851, 96
      %v1931 = vpop.permute.xlu0 %1930
      %1932 = vrot.lane.b32.xlu0 %v1852, 96
      %v1933 = vpop.permute.xlu0 %1932
      %1934 = vrot.lane.b32.xlu0 %v1853, 96
      %v1935 = vpop.permute.xlu0 %1934
      %1936 = vrot.lane.b32.xlu0 %v1854, 96
      %v1937 = vpop.permute.xlu0 %1936
      %1938 = vrot.lane.b32.xlu0 %v1855, 96
      %v1939 = vpop.permute.xlu0 %1938
      %1940 = vrot.lane.b32.xlu0 %v1856, 96
      %v1941 = vpop.permute.xlu0 %1940
      %1942 = vrot.lane.b32.xlu0 %v1857, 96
      %v1943 = vpop.permute.xlu0 %1942
      %1944 = vrot.lane.b32.xlu0 %v1858, 96
      %v1945 = vpop.permute.xlu0 %1944
      %1946 = vrot.lane.b32.xlu0 %v1859, 96
      %v1947 = vpop.permute.xlu0 %1946
      %1948 = vrot.lane.b32.xlu0 %v1860, 96
      %v1949 = vpop.permute.xlu0 %1948
      %1950 = vrot.lane.b32.xlu0 %v1861, 96
      %v1951 = vpop.permute.xlu0 %1950
      %1952 = vrot.lane.b32.xlu0 %v1862, 96
      %v1953 = vpop.permute.xlu0 %1952
      %1954 = vrot.lane.b32.xlu0 %v1863, 96
      %v1955 = vpop.permute.xlu0 %1954
      %1956 = vrot.lane.b32.xlu0 %v1864, 96
      %v1957 = vpop.permute.xlu0 %1956
      %1958 = vrot.lane.b32.xlu0 %v1865, 96
      %v1959 = vpop.permute.xlu0 %1958
      %1960 = vrot.lane.b32.xlu0 %v1866, 96
      %v1961 = vpop.permute.xlu0 %1960
      %1962 = vrot.lane.b32.xlu0 %v1867, 96
      %v1963 = vpop.permute.xlu0 %1962
      %vm1996 = vcmask 917248
      %1997 = vst.msk [vmem:[#allocation4] sm:$0xff] %vm1996, %v1901
      %1998 = vst.msk [vmem:[#allocation4 + $0x10] sm:$0xff] %vm1996, %v1903
      %1999 = vst.msk [vmem:[#allocation4 + $0x20] sm:$0xff] %vm1996, %v1905
      %2000 = vst.msk [vmem:[#allocation4 + $0x30] sm:$0xff] %vm1996, %v1907
      %2001 = vst.msk [vmem:[#allocation4 + $0x40] sm:$0xff] %vm1996, %v1909
      %2002 = vst.msk [vmem:[#allocation4 + $0x50] sm:$0xff] %vm1996, %v1911
      %2003 = vst.msk [vmem:[#allocation4 + $0x60] sm:$0xff] %vm1996, %v1913
      %2004 = vst.msk [vmem:[#allocation4 + $0x70] sm:$0xff] %vm1996, %v1915
      %2005 = vst.msk [vmem:[#allocation4 + $0x80] sm:$0xff] %vm1996, %v1917
      %2006 = vst.msk [vmem:[#allocation4 + $0x90] sm:$0xff] %vm1996, %v1919
      %2007 = vst.msk [vmem:[#allocation4 + $0xa0] sm:$0xff] %vm1996, %v1921
      %2008 = vst.msk [vmem:[#allocation4 + $0xb0] sm:$0xff] %vm1996, %v1923
      %2009 = vst.msk [vmem:[#allocation4 + $0xc0] sm:$0xff] %vm1996, %v1925
      %2010 = vst.msk [vmem:[#allocation4 + $0xd0] sm:$0xff] %vm1996, %v1927
      %2011 = vst.msk [vmem:[#allocation4 + $0xe0] sm:$0xff] %vm1996, %v1929
      %2012 = vst.msk [vmem:[#allocation4 + $0xf0] sm:$0xff] %vm1996, %v1931
      %2013 = vst.msk [vmem:[#allocation4 + $0x100] sm:$0xff] %vm1996, %v1933
      %2014 = vst.msk [vmem:[#allocation4 + $0x110] sm:$0xff] %vm1996, %v1935
      %2015 = vst.msk [vmem:[#allocation4 + $0x120] sm:$0xff] %vm1996, %v1937
      %2016 = vst.msk [vmem:[#allocation4 + $0x130] sm:$0xff] %vm1996, %v1939
      %2017 = vst.msk [vmem:[#allocation4 + $0x140] sm:$0xff] %vm1996, %v1941
      %2018 = vst.msk [vmem:[#allocation4 + $0x150] sm:$0xff] %vm1996, %v1943
      %2019 = vst.msk [vmem:[#allocation4 + $0x160] sm:$0xff] %vm1996, %v1945
      %2020 = vst.msk [vmem:[#allocation4 + $0x170] sm:$0xff] %vm1996, %v1947
      %2021 = vst.msk [vmem:[#allocation4 + $0x180] sm:$0xff] %vm1996, %v1949
      %2022 = vst.msk [vmem:[#allocation4 + $0x190] sm:$0xff] %vm1996, %v1951
      %2023 = vst.msk [vmem:[#allocation4 + $0x1a0] sm:$0xff] %vm1996, %v1953
      %2024 = vst.msk [vmem:[#allocation4 + $0x1b0] sm:$0xff] %vm1996, %v1955
      %2025 = vst.msk [vmem:[#allocation4 + $0x1c0] sm:$0xff] %vm1996, %v1957
      %2026 = vst.msk [vmem:[#allocation4 + $0x1d0] sm:$0xff] %vm1996, %v1959
      %2027 = vst.msk [vmem:[#allocation4 + $0x1e0] sm:$0xff] %vm1996, %v1961
      %2028 = vst.msk [vmem:[#allocation4 + $0x1f0] sm:$0xff] %vm1996, %v1963
      %v2029 = vld [vmem:[%s1835 + $0x1] sm:$0xff]
      %v2030 = vld [vmem:[%s1835 + $0x11] sm:$0xff]
      %v2031 = vld [vmem:[%s1835 + $0x21] sm:$0xff]
      %v2032 = vld [vmem:[%s1835 + $0x31] sm:$0xff]
      %v2033 = vld [vmem:[%s1835 + $0x41] sm:$0xff]
      %v2034 = vld [vmem:[%s1835 + $0x51] sm:$0xff]
      %v2035 = vld [vmem:[%s1835 + $0x61] sm:$0xff]
      %v2036 = vld [vmem:[%s1835 + $0x71] sm:$0xff]
      %v2037 = vld [vmem:[%s1835 + $0x81] sm:$0xff]
      %v2038 = vld [vmem:[%s1835 + $0x91] sm:$0xff]
      %v2039 = vld [vmem:[%s1835 + $0xa1] sm:$0xff]
      %v2040 = vld [vmem:[%s1835 + $0xb1] sm:$0xff]
      %v2041 = vld [vmem:[%s1835 + $0xc1] sm:$0xff]
      %v2042 = vld [vmem:[%s1835 + $0xd1] sm:$0xff]
      %v2043 = vld [vmem:[%s1835 + $0xe1] sm:$0xff]
      %v2044 = vld [vmem:[%s1835 + $0xf1] sm:$0xff]
      %v2045 = vld [vmem:[%s1835 + $0x101] sm:$0xff]
      %v2046 = vld [vmem:[%s1835 + $0x111] sm:$0xff]
      %v2047 = vld [vmem:[%s1835 + $0x121] sm:$0xff]
      %v2048 = vld [vmem:[%s1835 + $0x131] sm:$0xff]
      %v2049 = vld [vmem:[%s1835 + $0x141] sm:$0xff]
      %v2050 = vld [vmem:[%s1835 + $0x151] sm:$0xff]
      %v2051 = vld [vmem:[%s1835 + $0x161] sm:$0xff]
      %v2052 = vld [vmem:[%s1835 + $0x171] sm:$0xff]
      %v2053 = vld [vmem:[%s1835 + $0x181] sm:$0xff]
      %v2054 = vld [vmem:[%s1835 + $0x191] sm:$0xff]
      %v2055 = vld [vmem:[%s1835 + $0x1a1] sm:$0xff]
      %v2056 = vld [vmem:[%s1835 + $0x1b1] sm:$0xff]
      %v2057 = vld [vmem:[%s1835 + $0x1c1] sm:$0xff]
      %v2058 = vld [vmem:[%s1835 + $0x1d1] sm:$0xff]
      %v2059 = vld [vmem:[%s1835 + $0x1e1] sm:$0xff]
      %v2060 = vld [vmem:[%s1835 + $0x1f1] sm:$0xff]
      %2093 = vrot.lane.b32.xlu0 %v2029, 112
      %v2094 = vpop.permute.xlu0 %2093
      %2095 = vrot.lane.b32.xlu0 %v2030, 112
      %v2096 = vpop.permute.xlu0 %2095
      %2097 = vrot.lane.b32.xlu0 %v2031, 112
      %v2098 = vpop.permute.xlu0 %2097
      %2099 = vrot.lane.b32.xlu0 %v2032, 112
      %v2100 = vpop.permute.xlu0 %2099
      %2101 = vrot.lane.b32.xlu0 %v2033, 112
      %v2102 = vpop.permute.xlu0 %2101
      %2103 = vrot.lane.b32.xlu0 %v2034, 112
      %v2104 = vpop.permute.xlu0 %2103
      %2105 = vrot.lane.b32.xlu0 %v2035, 112
      %v2106 = vpop.permute.xlu0 %2105
      %2107 = vrot.lane.b32.xlu0 %v2036, 112
      %v2108 = vpop.permute.xlu0 %2107
      %2109 = vrot.lane.b32.xlu0 %v2037, 112
      %v2110 = vpop.permute.xlu0 %2109
      %2111 = vrot.lane.b32.xlu0 %v2038, 112
      %v2112 = vpop.permute.xlu0 %2111
      %2113 = vrot.lane.b32.xlu0 %v2039, 112
      %v2114 = vpop.permute.xlu0 %2113
      %2115 = vrot.lane.b32.xlu0 %v2040, 112
      %v2116 = vpop.permute.xlu0 %2115
      %2117 = vrot.lane.b32.xlu0 %v2041, 112
      %v2118 = vpop.permute.xlu0 %2117
      %2119 = vrot.lane.b32.xlu0 %v2042, 112
      %v2120 = vpop.permute.xlu0 %2119
      %2121 = vrot.lane.b32.xlu0 %v2043, 112
      %v2122 = vpop.permute.xlu0 %2121
      %2123 = vrot.lane.b32.xlu0 %v2044, 112
      %v2124 = vpop.permute.xlu0 %2123
      %2125 = vrot.lane.b32.xlu0 %v2045, 112
      %v2126 = vpop.permute.xlu0 %2125
      %2127 = vrot.lane.b32.xlu0 %v2046, 112
      %v2128 = vpop.permute.xlu0 %2127
      %2129 = vrot.lane.b32.xlu0 %v2047, 112
      %v2130 = vpop.permute.xlu0 %2129
      %2131 = vrot.lane.b32.xlu0 %v2048, 112
      %v2132 = vpop.permute.xlu0 %2131
      %2133 = vrot.lane.b32.xlu0 %v2049, 112
      %v2134 = vpop.permute.xlu0 %2133
      %2135 = vrot.lane.b32.xlu0 %v2050, 112
      %v2136 = vpop.permute.xlu0 %2135
      %2137 = vrot.lane.b32.xlu0 %v2051, 112
      %v2138 = vpop.permute.xlu0 %2137
      %2139 = vrot.lane.b32.xlu0 %v2052, 112
      %v2140 = vpop.permute.xlu0 %2139
      %2141 = vrot.lane.b32.xlu0 %v2053, 112
      %v2142 = vpop.permute.xlu0 %2141
      %2143 = vrot.lane.b32.xlu0 %v2054, 112
      %v2144 = vpop.permute.xlu0 %2143
      %2145 = vrot.lane.b32.xlu0 %v2055, 112
      %v2146 = vpop.permute.xlu0 %2145
      %2147 = vrot.lane.b32.xlu0 %v2056, 112
      %v2148 = vpop.permute.xlu0 %2147
      %2149 = vrot.lane.b32.xlu0 %v2057, 112
      %v2150 = vpop.permute.xlu0 %2149
      %2151 = vrot.lane.b32.xlu0 %v2058, 112
      %v2152 = vpop.permute.xlu0 %2151
      %2153 = vrot.lane.b32.xlu0 %v2059, 112
      %v2154 = vpop.permute.xlu0 %2153
      %2155 = vrot.lane.b32.xlu0 %v2060, 112
      %v2156 = vpop.permute.xlu0 %2155
      %vm2189 = vcmask 1048448
      %2190 = vst.msk [vmem:[#allocation4] sm:$0xff] %vm2189, %v2094
      %2191 = vst.msk [vmem:[#allocation4 + $0x10] sm:$0xff] %vm2189, %v2096
      %2192 = vst.msk [vmem:[#allocation4 + $0x20] sm:$0xff] %vm2189, %v2098
      %2193 = vst.msk [vmem:[#allocation4 + $0x30] sm:$0xff] %vm2189, %v2100
      %2194 = vst.msk [vmem:[#allocation4 + $0x40] sm:$0xff] %vm2189, %v2102
      %2195 = vst.msk [vmem:[#allocation4 + $0x50] sm:$0xff] %vm2189, %v2104
      %2196 = vst.msk [vmem:[#allocation4 + $0x60] sm:$0xff] %vm2189, %v2106
      %2197 = vst.msk [vmem:[#allocation4 + $0x70] sm:$0xff] %vm2189, %v2108
      %2198 = vst.msk [vmem:[#allocation4 + $0x80] sm:$0xff] %vm2189, %v2110
      %2199 = vst.msk [vmem:[#allocation4 + $0x90] sm:$0xff] %vm2189, %v2112
      %2200 = vst.msk [vmem:[#allocation4 + $0xa0] sm:$0xff] %vm2189, %v2114
      %2201 = vst.msk [vmem:[#allocation4 + $0xb0] sm:$0xff] %vm2189, %v2116
      %2202 = vst.msk [vmem:[#allocation4 + $0xc0] sm:$0xff] %vm2189, %v2118
      %2203 = vst.msk [vmem:[#allocation4 + $0xd0] sm:$0xff] %vm2189, %v2120
      %2204 = vst.msk [vmem:[#allocation4 + $0xe0] sm:$0xff] %vm2189, %v2122
      %2205 = vst.msk [vmem:[#allocation4 + $0xf0] sm:$0xff] %vm2189, %v2124
      %2206 = vst.msk [vmem:[#allocation4 + $0x100] sm:$0xff] %vm2189, %v2126
      %2207 = vst.msk [vmem:[#allocation4 + $0x110] sm:$0xff] %vm2189, %v2128
      %2208 = vst.msk [vmem:[#allocation4 + $0x120] sm:$0xff] %vm2189, %v2130
      %2209 = vst.msk [vmem:[#allocation4 + $0x130] sm:$0xff] %vm2189, %v2132
      %2210 = vst.msk [vmem:[#allocation4 + $0x140] sm:$0xff] %vm2189, %v2134
      %2211 = vst.msk [vmem:[#allocation4 + $0x150] sm:$0xff] %vm2189, %v2136
      %2212 = vst.msk [vmem:[#allocation4 + $0x160] sm:$0xff] %vm2189, %v2138
      %2213 = vst.msk [vmem:[#allocation4 + $0x170] sm:$0xff] %vm2189, %v2140
      %2214 = vst.msk [vmem:[#allocation4 + $0x180] sm:$0xff] %vm2189, %v2142
      %2215 = vst.msk [vmem:[#allocation4 + $0x190] sm:$0xff] %vm2189, %v2144
      %2216 = vst.msk [vmem:[#allocation4 + $0x1a0] sm:$0xff] %vm2189, %v2146
      %2217 = vst.msk [vmem:[#allocation4 + $0x1b0] sm:$0xff] %vm2189, %v2148
      %2218 = vst.msk [vmem:[#allocation4 + $0x1c0] sm:$0xff] %vm2189, %v2150
      %2219 = vst.msk [vmem:[#allocation4 + $0x1d0] sm:$0xff] %vm2189, %v2152
      %2220 = vst.msk [vmem:[#allocation4 + $0x1e0] sm:$0xff] %vm2189, %v2154
      %2221 = vst.msk [vmem:[#allocation4 + $0x1f0] sm:$0xff] %vm2189, %v2156
      %v2222 = vld [vmem:[%s1835 + $0x2] sm:$0xff]
      %v2223 = vld [vmem:[%s1835 + $0x12] sm:$0xff]
      %v2224 = vld [vmem:[%s1835 + $0x22] sm:$0xff]
      %v2225 = vld [vmem:[%s1835 + $0x32] sm:$0xff]
      %v2226 = vld [vmem:[%s1835 + $0x42] sm:$0xff]
      %v2227 = vld [vmem:[%s1835 + $0x52] sm:$0xff]
      %v2228 = vld [vmem:[%s1835 + $0x62] sm:$0xff]
      %v2229 = vld [vmem:[%s1835 + $0x72] sm:$0xff]
      %v2230 = vld [vmem:[%s1835 + $0x82] sm:$0xff]
      %v2231 = vld [vmem:[%s1835 + $0x92] sm:$0xff]
      %v2232 = vld [vmem:[%s1835 + $0xa2] sm:$0xff]
      %v2233 = vld [vmem:[%s1835 + $0xb2] sm:$0xff]
      %v2234 = vld [vmem:[%s1835 + $0xc2] sm:$0xff]
      %v2235 = vld [vmem:[%s1835 + $0xd2] sm:$0xff]
      %v2236 = vld [vmem:[%s1835 + $0xe2] sm:$0xff]
      %v2237 = vld [vmem:[%s1835 + $0xf2] sm:$0xff]
      %v2238 = vld [vmem:[%s1835 + $0x102] sm:$0xff]
      %v2239 = vld [vmem:[%s1835 + $0x112] sm:$0xff]
      %v2240 = vld [vmem:[%s1835 + $0x122] sm:$0xff]
      %v2241 = vld [vmem:[%s1835 + $0x132] sm:$0xff]
      %v2242 = vld [vmem:[%s1835 + $0x142] sm:$0xff]
      %v2243 = vld [vmem:[%s1835 + $0x152] sm:$0xff]
      %v2244 = vld [vmem:[%s1835 + $0x162] sm:$0xff]
      %v2245 = vld [vmem:[%s1835 + $0x172] sm:$0xff]
      %v2246 = vld [vmem:[%s1835 + $0x182] sm:$0xff]
      %v2247 = vld [vmem:[%s1835 + $0x192] sm:$0xff]
      %v2248 = vld [vmem:[%s1835 + $0x1a2] sm:$0xff]
      %v2249 = vld [vmem:[%s1835 + $0x1b2] sm:$0xff]
      %v2250 = vld [vmem:[%s1835 + $0x1c2] sm:$0xff]
      %v2251 = vld [vmem:[%s1835 + $0x1d2] sm:$0xff]
      %v2252 = vld [vmem:[%s1835 + $0x1e2] sm:$0xff]
      %v2253 = vld [vmem:[%s1835 + $0x1f2] sm:$0xff]
      %2254 = vst.msk [vmem:[#allocation4 + $0x8] sm:$0xff] %vm408, %v2222
      %2255 = vst.msk [vmem:[#allocation4 + $0x18] sm:$0xff] %vm408, %v2223
      %2256 = vst.msk [vmem:[#allocation4 + $0x28] sm:$0xff] %vm408, %v2224
      %2257 = vst.msk [vmem:[#allocation4 + $0x38] sm:$0xff] %vm408, %v2225
      %2258 = vst.msk [vmem:[#allocation4 + $0x48] sm:$0xff] %vm408, %v2226
      %2259 = vst.msk [vmem:[#allocation4 + $0x58] sm:$0xff] %vm408, %v2227
      %2260 = vst.msk [vmem:[#allocation4 + $0x68] sm:$0xff] %vm408, %v2228
      %2261 = vst.msk [vmem:[#allocation4 + $0x78] sm:$0xff] %vm408, %v2229
      %2262 = vst.msk [vmem:[#allocation4 + $0x88] sm:$0xff] %vm408, %v2230
      %2263 = vst.msk [vmem:[#allocation4 + $0x98] sm:$0xff] %vm408, %v2231
      %2264 = vst.msk [vmem:[#allocation4 + $0xa8] sm:$0xff] %vm408, %v2232
      %2265 = vst.msk [vmem:[#allocation4 + $0xb8] sm:$0xff] %vm408, %v2233
      %2266 = vst.msk [vmem:[#allocation4 + $0xc8] sm:$0xff] %vm408, %v2234
      %2267 = vst.msk [vmem:[#allocation4 + $0xd8] sm:$0xff] %vm408, %v2235
      %2268 = vst.msk [vmem:[#allocation4 + $0xe8] sm:$0xff] %vm408, %v2236
      %2269 = vst.msk [vmem:[#allocation4 + $0xf8] sm:$0xff] %vm408, %v2237
      %2270 = vst.msk [vmem:[#allocation4 + $0x108] sm:$0xff] %vm408, %v2238
      %2271 = vst.msk [vmem:[#allocation4 + $0x118] sm:$0xff] %vm408, %v2239
      %2272 = vst.msk [vmem:[#allocation4 + $0x128] sm:$0xff] %vm408, %v2240
      %2273 = vst.msk [vmem:[#allocation4 + $0x138] sm:$0xff] %vm408, %v2241
      %2274 = vst.msk [vmem:[#allocation4 + $0x148] sm:$0xff] %vm408, %v2242
      %2275 = vst.msk [vmem:[#allocation4 + $0x158] sm:$0xff] %vm408, %v2243
      %2276 = vst.msk [vmem:[#allocation4 + $0x168] sm:$0xff] %vm408, %v2244
      %2277 = vst.msk [vmem:[#allocation4 + $0x178] sm:$0xff] %vm408, %v2245
      %2278 = vst.msk [vmem:[#allocation4 + $0x188] sm:$0xff] %vm408, %v2246
      %2279 = vst.msk [vmem:[#allocation4 + $0x198] sm:$0xff] %vm408, %v2247
      %2280 = vst.msk [vmem:[#allocation4 + $0x1a8] sm:$0xff] %vm408, %v2248
      %2281 = vst.msk [vmem:[#allocation4 + $0x1b8] sm:$0xff] %vm408, %v2249
      %2282 = vst.msk [vmem:[#allocation4 + $0x1c8] sm:$0xff] %vm408, %v2250
      %2283 = vst.msk [vmem:[#allocation4 + $0x1d8] sm:$0xff] %vm408, %v2251
      %2284 = vst.msk [vmem:[#allocation4 + $0x1e8] sm:$0xff] %vm408, %v2252
      %2285 = vst.msk [vmem:[#allocation4 + $0x1f8] sm:$0xff] %vm408, %v2253
      %v2286 = vld [vmem:[#allocation4] sm:$0xff]
      %v2287 = vld [vmem:[#allocation4 + $0x8] sm:$0xff]
      %v2288 = vld [vmem:[#allocation4 + $0x10] sm:$0xff]
      %v2289 = vld [vmem:[#allocation4 + $0x18] sm:$0xff]
      %v2290 = vld [vmem:[#allocation4 + $0x20] sm:$0xff]
      %v2291 = vld [vmem:[#allocation4 + $0x28] sm:$0xff]
      %v2292 = vld [vmem:[#allocation4 + $0x30] sm:$0xff]
      %v2293 = vld [vmem:[#allocation4 + $0x38] sm:$0xff]
      %v2294 = vld [vmem:[#allocation4 + $0x40] sm:$0xff]
      %v2295 = vld [vmem:[#allocation4 + $0x48] sm:$0xff]
      %v2296 = vld [vmem:[#allocation4 + $0x50] sm:$0xff]
      %v2297 = vld [vmem:[#allocation4 + $0x58] sm:$0xff]
      %v2298 = vld [vmem:[#allocation4 + $0x60] sm:$0xff]
      %v2299 = vld [vmem:[#allocation4 + $0x68] sm:$0xff]
      %v2300 = vld [vmem:[#allocation4 + $0x70] sm:$0xff]
      %v2301 = vld [vmem:[#allocation4 + $0x78] sm:$0xff]
      %v2302 = vld [vmem:[#allocation4 + $0x80] sm:$0xff]
      %v2303 = vld [vmem:[#allocation4 + $0x88] sm:$0xff]
      %v2304 = vld [vmem:[#allocation4 + $0x90] sm:$0xff]
      %v2305 = vld [vmem:[#allocation4 + $0x98] sm:$0xff]
      %v2306 = vld [vmem:[#allocation4 + $0xa0] sm:$0xff]
      %v2307 = vld [vmem:[#allocation4 + $0xa8] sm:$0xff]
      %v2308 = vld [vmem:[#allocation4 + $0xb0] sm:$0xff]
      %v2309 = vld [vmem:[#allocation4 + $0xb8] sm:$0xff]
      %v2310 = vld [vmem:[#allocation4 + $0xc0] sm:$0xff]
      %v2311 = vld [vmem:[#allocation4 + $0xc8] sm:$0xff]
      %v2312 = vld [vmem:[#allocation4 + $0xd0] sm:$0xff]
      %v2313 = vld [vmem:[#allocation4 + $0xd8] sm:$0xff]
      %v2314 = vld [vmem:[#allocation4 + $0xe0] sm:$0xff]
      %v2315 = vld [vmem:[#allocation4 + $0xe8] sm:$0xff]
      %v2316 = vld [vmem:[#allocation4 + $0xf0] sm:$0xff]
      %v2317 = vld [vmem:[#allocation4 + $0xf8] sm:$0xff]
      %v2318 = vld [vmem:[#allocation4 + $0x100] sm:$0xff]
      %v2319 = vld [vmem:[#allocation4 + $0x108] sm:$0xff]
      %v2320 = vld [vmem:[#allocation4 + $0x110] sm:$0xff]
      %v2321 = vld [vmem:[#allocation4 + $0x118] sm:$0xff]
      %v2322 = vld [vmem:[#allocation4 + $0x120] sm:$0xff]
      %v2323 = vld [vmem:[#allocation4 + $0x128] sm:$0xff]
      %v2324 = vld [vmem:[#allocation4 + $0x130] sm:$0xff]
      %v2325 = vld [vmem:[#allocation4 + $0x138] sm:$0xff]
      %v2326 = vld [vmem:[#allocation4 + $0x140] sm:$0xff]
      %v2327 = vld [vmem:[#allocation4 + $0x148] sm:$0xff]
      %v2328 = vld [vmem:[#allocation4 + $0x150] sm:$0xff]
      %v2329 = vld [vmem:[#allocation4 + $0x158] sm:$0xff]
      %v2330 = vld [vmem:[#allocation4 + $0x160] sm:$0xff]
      %v2331 = vld [vmem:[#allocation4 + $0x168] sm:$0xff]
      %v2332 = vld [vmem:[#allocation4 + $0x170] sm:$0xff]
      %v2333 = vld [vmem:[#allocation4 + $0x178] sm:$0xff]
      %v2334 = vld [vmem:[#allocation4 + $0x180] sm:$0xff]
      %v2335 = vld [vmem:[#allocation4 + $0x188] sm:$0xff]
      %v2336 = vld [vmem:[#allocation4 + $0x190] sm:$0xff]
      %v2337 = vld [vmem:[#allocation4 + $0x198] sm:$0xff]
      %v2338 = vld [vmem:[#allocation4 + $0x1a0] sm:$0xff]
      %v2339 = vld [vmem:[#allocation4 + $0x1a8] sm:$0xff]
      %v2340 = vld [vmem:[#allocation4 + $0x1b0] sm:$0xff]
      %v2341 = vld [vmem:[#allocation4 + $0x1b8] sm:$0xff]
      %v2342 = vld [vmem:[#allocation4 + $0x1c0] sm:$0xff]
      %v2343 = vld [vmem:[#allocation4 + $0x1c8] sm:$0xff]
      %v2344 = vld [vmem:[#allocation4 + $0x1d0] sm:$0xff]
      %v2345 = vld [vmem:[#allocation4 + $0x1d8] sm:$0xff]
      %v2346 = vld [vmem:[#allocation4 + $0x1e0] sm:$0xff]
      %v2347 = vld [vmem:[#allocation4 + $0x1e8] sm:$0xff]
      %v2348 = vld [vmem:[#allocation4 + $0x1f0] sm:$0xff]
      %v2349 = vld [vmem:[#allocation4 + $0x1f8] sm:$0xff]
      %v2350 = vpack.c.bf16 %v2288, %v2286
      %v2351 = vpack.c.bf16 %v2289, %v2287
      %v2352 = vpack.c.bf16 %v2292, %v2290
      %v2353 = vpack.c.bf16 %v2293, %v2291
      %v2354 = vpack.c.bf16 %v2296, %v2294
      %v2355 = vpack.c.bf16 %v2297, %v2295
      %v2356 = vpack.c.bf16 %v2300, %v2298
      %v2357 = vpack.c.bf16 %v2301, %v2299
      %v2358 = vpack.c.bf16 %v2304, %v2302
      %v2359 = vpack.c.bf16 %v2305, %v2303
      %v2360 = vpack.c.bf16 %v2308, %v2306
      %v2361 = vpack.c.bf16 %v2309, %v2307
      %v2362 = vpack.c.bf16 %v2312, %v2310
      %v2363 = vpack.c.bf16 %v2313, %v2311
      %v2364 = vpack.c.bf16 %v2316, %v2314
      %v2365 = vpack.c.bf16 %v2317, %v2315
      %v2366 = vpack.c.bf16 %v2320, %v2318
      %v2367 = vpack.c.bf16 %v2321, %v2319
      %v2368 = vpack.c.bf16 %v2324, %v2322
      %v2369 = vpack.c.bf16 %v2325, %v2323
      %v2370 = vpack.c.bf16 %v2328, %v2326
      %v2371 = vpack.c.bf16 %v2329, %v2327
      %v2372 = vpack.c.bf16 %v2332, %v2330
      %v2373 = vpack.c.bf16 %v2333, %v2331
      %v2374 = vpack.c.bf16 %v2336, %v2334
      %v2375 = vpack.c.bf16 %v2337, %v2335
      %v2376 = vpack.c.bf16 %v2340, %v2338
      %v2377 = vpack.c.bf16 %v2341, %v2339
      %v2378 = vpack.c.bf16 %v2344, %v2342
      %v2379 = vpack.c.bf16 %v2345, %v2343
      %v2380 = vpack.c.bf16 %v2348, %v2346
      %v2381 = vpack.c.bf16 %v2349, %v2347
      %v2382 = vld [vmem:[%s4] sm:$0xf]
      %v2383 = vld [vmem:[%s4 + $0x4] sm:$0xf]
      %v2384 = vld [vmem:[%s4 + $0x8] sm:$0xf]
      %v2385 = vld [vmem:[%s4 + $0xc] sm:$0xf]
      %v2386 = vld [vmem:[%s4 + $0x10] sm:$0xf]
      %v2387 = vld [vmem:[%s4 + $0x14] sm:$0xf]
      %v2388 = vld [vmem:[%s4 + $0x18] sm:$0xf]
      %v2389 = vld [vmem:[%s4 + $0x1c] sm:$0xf]
      %v2390 = vld [vmem:[%s4 + $0x20] sm:$0xf]
      %v2391 = vld [vmem:[%s4 + $0x24] sm:$0xf]
      %v2392 = vld [vmem:[%s4 + $0x28] sm:$0xf]
      %v2393 = vld [vmem:[%s4 + $0x2c] sm:$0xf]
      %v2394 = vld [vmem:[%s4 + $0x30] sm:$0xf]
      %v2395 = vld [vmem:[%s4 + $0x34] sm:$0xf]
      %v2396 = vld [vmem:[%s4 + $0x38] sm:$0xf]
      %v2397 = vld [vmem:[%s4 + $0x3c] sm:$0xf]
      %v2398 = vld [vmem:[%s4 + $0x40] sm:$0xf]
      %v2399 = vld [vmem:[%s4 + $0x44] sm:$0xf]
      %v2418 = vunpack.c.l.b16 %v2382
      %v2419 = vunpack.c.l.b16 %v2383
      %v2420 = vunpack.c.l.b16 %v2384
      %v2421 = vunpack.c.l.b16 %v2385
      %v2422 = vunpack.c.l.b16 %v2386
      %v2423 = vunpack.c.l.b16 %v2387
      %v2424 = vunpack.c.l.b16 %v2388
      %v2425 = vunpack.c.l.b16 %v2389
      %v2426 = vunpack.c.l.b16 %v2390
      %v2427 = vunpack.c.l.b16 %v2391
      %v2428 = vunpack.c.l.b16 %v2392
      %v2429 = vunpack.c.l.b16 %v2393
      %v2430 = vunpack.c.l.b16 %v2394
      %v2431 = vunpack.c.l.b16 %v2395
      %v2432 = vunpack.c.l.b16 %v2396
      %v2433 = vunpack.c.l.b16 %v2397
      %v2434 = vunpack.c.l.b16 %v2398
      %v2435 = vunpack.c.l.b16 %v2399
      %v2436 = vpack.c.b16 %v2419, %v2418
      %v2437 = vpack.c.b16 %v2421, %v2420
      %v2438 = vpack.c.b16 %v2423, %v2422
      %v2439 = vpack.c.b16 %v2425, %v2424
      %v2440 = vpack.c.b16 %v2427, %v2426
      %v2441 = vpack.c.b16 %v2429, %v2428
      %v2442 = vpack.c.b16 %v2431, %v2430
      %v2443 = vpack.c.b16 %v2433, %v2432
      %v2444 = vpack.c.b16 %v2435, %v2434
      %v2455 = vsel %vm408, %v2351, 0
      %v2458 = vsel %vm408, %v2353, 0
      %v2461 = vsel %vm408, %v2355, 0
      %v2464 = vsel %vm408, %v2357, 0
      %v2467 = vsel %vm408, %v2359, 0
      %v2470 = vsel %vm408, %v2361, 0
      %v2473 = vsel %vm408, %v2363, 0
      %v2476 = vsel %vm408, %v2365, 0
      %v2479 = vsel %vm408, %v2367, 0
      %v2482 = vsel %vm408, %v2369, 0
      %v2485 = vsel %vm408, %v2371, 0
      %v2488 = vsel %vm408, %v2373, 0
      %v2491 = vsel %vm408, %v2375, 0
      %v2494 = vsel %vm408, %v2377, 0
      %v2497 = vsel %vm408, %v2379, 0
      %v2500 = vsel %vm408, %v2381, 0
      %2502 = vmatprep.subr.bf16.mxu0 0
      %2503 = vmatpush1.bf16.msra.mxu0 %v2443
      %2504 = vmatprep.subr.bf16.mxu0 0
      %2505 = vmatpush1.bf16.msra.mxu0 %v2442
      %2506 = vmatprep.subr.bf16.mxu0 0
      %2507 = vmatpush1.bf16.msra.mxu0 %v2441
      %2508 = vmatprep.subr.bf16.mxu0 0
      %2509 = vmatpush1.bf16.msra.mxu0 %v2440
      %2510 = vmatprep.subr.bf16.mxu0 0
      %2511 = vmatpush1.bf16.msra.mxu0 %v2439
      %2512 = vmatprep.subr.bf16.mxu0 0
      %2513 = vmatpush1.bf16.msra.mxu0 %v2438
      %2514 = vmatprep.subr.bf16.mxu0 0
      %2515 = vmatpush1.bf16.msra.mxu0 %v2437
      %2516 = vmatprep.subr.bf16.mxu0 0
      %2517 = vmatpush1.bf16.msra.mxu0 %v2436
      %2518 = vmatprep.subr.bf16.mxu0 0
      %2519 = vmatpush2.bf16.msra.mxu0 0
      %2520 = vmatprep.subr.bf16.mxu0 0
      %2521 = vmatpush2.bf16.msra.mxu0 0
      %2522 = vmatprep.subr.bf16.mxu0 0
      %2523 = vmatpush2.bf16.msra.mxu0 0
      %2524 = vmatprep.subr.bf16.mxu0 0
      %2525 = vmatpush2.bf16.msra.mxu0 0
      %2526 = vmatprep.subr.bf16.mxu0 0
      %2527 = vmatpush2.bf16.msra.mxu0 0
      %2528 = vmatprep.subr.bf16.mxu0 0
      %2529 = vmatpush2.bf16.msra.mxu0 0
      %2530 = vmatprep.subr.bf16.mxu0 0
      %2531 = vmatpush2.bf16.msra.mxu0 0
      %2532 = vmatprep.subr.bf16.mxu0 0
      %2533 = vmatpush2.bf16.msra.mxu0 %v2444
      %2534 = vmatprep.mubr.bf16.mxu0 %v2455
      %2535 = vmatmul.mubr.bf16.gmra.mxu0 %v2350
      %v2536 = vpop.f32.mrf.mxu0
      %v2537 = vadd.f32 0.0, %v2536
      %v2538 = vpop.f32.mrf.mxu0
      %v2539 = vpop.f32.mrf.mxu0
      %v2540 = vadd.f32 0.0, %v2539
      %v2541 = vpop.f32.mrf.mxu0
      %2542 = vmatprep.mubr.bf16.mxu0 %v2458
      %2543 = vmatmul.mubr.bf16.gmra.mxu0 %v2352
      %v2544 = vpop.f32.mrf.mxu0
      %v2545 = vadd.f32 0.0, %v2544
      %v2546 = vpop.f32.mrf.mxu0
      %v2547 = vpop.f32.mrf.mxu0
      %v2548 = vadd.f32 0.0, %v2547
      %v2549 = vpop.f32.mrf.mxu0
      %2550 = vmatprep.mubr.bf16.mxu0 %v2461
      %2551 = vmatmul.mubr.bf16.gmra.mxu0 %v2354
      %v2552 = vpop.f32.mrf.mxu0
      %v2553 = vadd.f32 0.0, %v2552
      %v2554 = vpop.f32.mrf.mxu0
      %v2555 = vpop.f32.mrf.mxu0
      %v2556 = vadd.f32 0.0, %v2555
      %v2557 = vpop.f32.mrf.mxu0
      %2558 = vmatprep.mubr.bf16.mxu0 %v2464
      %2559 = vmatmul.mubr.bf16.gmra.mxu0 %v2356
      %v2560 = vpop.f32.mrf.mxu0
      %v2561 = vadd.f32 0.0, %v2560
      %v2562 = vpop.f32.mrf.mxu0
      %v2563 = vpop.f32.mrf.mxu0
      %v2564 = vadd.f32 0.0, %v2563
      %v2565 = vpop.f32.mrf.mxu0
      %2566 = vmatprep.mubr.bf16.mxu0 %v2467
      %2567 = vmatmul.mubr.bf16.gmra.mxu0 %v2358
      %v2568 = vpop.f32.mrf.mxu0
      %v2569 = vadd.f32 0.0, %v2568
      %v2570 = vpop.f32.mrf.mxu0
      %v2571 = vpop.f32.mrf.mxu0
      %v2572 = vadd.f32 0.0, %v2571
      %v2573 = vpop.f32.mrf.mxu0
      %2574 = vmatprep.mubr.bf16.mxu0 %v2470
      %2575 = vmatmul.mubr.bf16.gmra.mxu0 %v2360
      %v2576 = vpop.f32.mrf.mxu0
      %v2577 = vadd.f32 0.0, %v2576
      %v2578 = vpop.f32.mrf.mxu0
      %v2579 = vpop.f32.mrf.mxu0
      %v2580 = vadd.f32 0.0, %v2579
      %v2581 = vpop.f32.mrf.mxu0
      %2582 = vmatprep.mubr.bf16.mxu0 %v2473
      %2583 = vmatmul.mubr.bf16.gmra.mxu0 %v2362
      %v2584 = vpop.f32.mrf.mxu0
      %v2585 = vadd.f32 0.0, %v2584
      %v2586 = vpop.f32.mrf.mxu0
      %v2587 = vpop.f32.mrf.mxu0
      %v2588 = vadd.f32 0.0, %v2587
      %v2589 = vpop.f32.mrf.mxu0
      %2590 = vmatprep.mubr.bf16.mxu0 %v2476
      %2591 = vmatmul.mubr.bf16.gmra.mxu0 %v2364
      %v2592 = vpop.f32.mrf.mxu0
      %v2593 = vadd.f32 0.0, %v2592
      %v2594 = vpop.f32.mrf.mxu0
      %v2595 = vpop.f32.mrf.mxu0
      %v2596 = vadd.f32 0.0, %v2595
      %v2597 = vpop.f32.mrf.mxu0
      %2598 = vmatprep.mubr.bf16.mxu0 %v2479
      %2599 = vmatmul.mubr.bf16.gmra.mxu0 %v2366
      %v2600 = vpop.f32.mrf.mxu0
      %v2601 = vadd.f32 0.0, %v2600
      %v2602 = vpop.f32.mrf.mxu0
      %v2603 = vpop.f32.mrf.mxu0
      %v2604 = vadd.f32 0.0, %v2603
      %v2605 = vpop.f32.mrf.mxu0
      %2606 = vmatprep.mubr.bf16.mxu0 %v2482
      %2607 = vmatmul.mubr.bf16.gmra.mxu0 %v2368
      %v2608 = vpop.f32.mrf.mxu0
      %v2609 = vadd.f32 0.0, %v2608
      %v2610 = vpop.f32.mrf.mxu0
      %v2611 = vpop.f32.mrf.mxu0
      %v2612 = vadd.f32 0.0, %v2611
      %v2613 = vpop.f32.mrf.mxu0
      %2614 = vmatprep.mubr.bf16.mxu0 %v2485
      %2615 = vmatmul.mubr.bf16.gmra.mxu0 %v2370
      %v2616 = vpop.f32.mrf.mxu0
      %v2617 = vadd.f32 0.0, %v2616
      %v2618 = vpop.f32.mrf.mxu0
      %v2619 = vpop.f32.mrf.mxu0
      %v2620 = vadd.f32 0.0, %v2619
      %v2621 = vpop.f32.mrf.mxu0
      %2622 = vmatprep.mubr.bf16.mxu0 %v2488
      %2623 = vmatmul.mubr.bf16.gmra.mxu0 %v2372
      %v2624 = vpop.f32.mrf.mxu0
      %v2625 = vadd.f32 0.0, %v2624
      %v2626 = vpop.f32.mrf.mxu0
      %v2627 = vpop.f32.mrf.mxu0
      %v2628 = vadd.f32 0.0, %v2627
      %v2629 = vpop.f32.mrf.mxu0
      %2630 = vmatprep.mubr.bf16.mxu0 %v2491
      %2631 = vmatmul.mubr.bf16.gmra.mxu0 %v2374
      %v2632 = vpop.f32.mrf.mxu0
      %v2633 = vadd.f32 0.0, %v2632
      %v2634 = vpop.f32.mrf.mxu0
      %v2635 = vpop.f32.mrf.mxu0
      %v2636 = vadd.f32 0.0, %v2635
      %v2637 = vpop.f32.mrf.mxu0
      %2638 = vmatprep.mubr.bf16.mxu0 %v2494
      %2639 = vmatmul.mubr.bf16.gmra.mxu0 %v2376
      %v2640 = vpop.f32.mrf.mxu0
      %v2641 = vadd.f32 0.0, %v2640
      %v2642 = vpop.f32.mrf.mxu0
      %v2643 = vpop.f32.mrf.mxu0
      %v2644 = vadd.f32 0.0, %v2643
      %v2645 = vpop.f32.mrf.mxu0
      %2646 = vmatprep.mubr.bf16.mxu0 %v2497
      %2647 = vmatmul.mubr.bf16.gmra.mxu0 %v2378
      %v2648 = vpop.f32.mrf.mxu0
      %v2649 = vadd.f32 0.0, %v2648
      %v2650 = vpop.f32.mrf.mxu0
      %v2651 = vpop.f32.mrf.mxu0
      %v2652 = vadd.f32 0.0, %v2651
      %v2653 = vpop.f32.mrf.mxu0
      %2654 = vmatprep.mubr.bf16.mxu0 %v2500
      %2655 = vmatmul.mubr.bf16.gmra.mxu0 %v2380
      %v2656 = vpop.f32.mrf.mxu0
      %v2657 = vadd.f32 0.0, %v2656
      %v2658 = vpop.f32.mrf.mxu0
      %v2659 = vpop.f32.mrf.mxu0
      %v2660 = vadd.f32 0.0, %v2659
      %v2661 = vpop.f32.mrf.mxu0
      %2662 = vdwg.mxu0
      %v2663 = vld [vmem:[%s5] sm:$0x1]
      %v2665 = vlaneseq
      %v2666 = vshrl.u32 %v2665, 7
      %v2667 = vsub.s32 0, %v2666
      %v2668 = vrot.slane %v2663, %v2667
      %v2670 = vmul.f32 %v2537, %v2668
      %v2671 = vmul.f32 %v2540, %v2668
      %v2672 = vmul.f32 %v2545, %v2668
      %v2673 = vmul.f32 %v2548, %v2668
      %v2674 = vmul.f32 %v2553, %v2668
      %v2675 = vmul.f32 %v2556, %v2668
      %v2676 = vmul.f32 %v2561, %v2668
      %v2677 = vmul.f32 %v2564, %v2668
      %v2678 = vmul.f32 %v2569, %v2668
      %v2679 = vmul.f32 %v2572, %v2668
      %v2680 = vmul.f32 %v2577, %v2668
      %v2681 = vmul.f32 %v2580, %v2668
      %v2682 = vmul.f32 %v2585, %v2668
      %v2683 = vmul.f32 %v2588, %v2668
      %v2684 = vmul.f32 %v2593, %v2668
      %v2685 = vmul.f32 %v2596, %v2668
      %v2686 = vmul.f32 %v2601, %v2668
      %v2687 = vmul.f32 %v2604, %v2668
      %v2688 = vmul.f32 %v2609, %v2668
      %v2689 = vmul.f32 %v2612, %v2668
      %v2690 = vmul.f32 %v2617, %v2668
      %v2691 = vmul.f32 %v2620, %v2668
      %v2692 = vmul.f32 %v2625, %v2668
      %v2693 = vmul.f32 %v2628, %v2668
      %v2694 = vmul.f32 %v2633, %v2668
      %v2695 = vmul.f32 %v2636, %v2668
      %v2696 = vmul.f32 %v2641, %v2668
      %v2697 = vmul.f32 %v2644, %v2668
      %v2698 = vmul.f32 %v2649, %v2668
      %v2699 = vmul.f32 %v2652, %v2668
      %v2700 = vmul.f32 %v2657, %v2668
      %v2701 = vmul.f32 %v2660, %v2668
      %v2702 = vld [vmem:[%s6] sm:$0x1]
      %v2704 = vlaneseq
      %v2705 = vshrl.u32 %v2704, 7
      %v2706 = vsub.s32 0, %v2705
      %v2707 = vrot.slane %v2702, %v2706
      %v2709 = vadd.f32 %v2670, %v2707
      %v2710 = vadd.f32 %v2671, %v2707
      %v2711 = vadd.f32 %v2672, %v2707
      %v2712 = vadd.f32 %v2673, %v2707
      %v2713 = vadd.f32 %v2674, %v2707
      %v2714 = vadd.f32 %v2675, %v2707
      %v2715 = vadd.f32 %v2676, %v2707
      %v2716 = vadd.f32 %v2677, %v2707
      %v2717 = vadd.f32 %v2678, %v2707
      %v2718 = vadd.f32 %v2679, %v2707
      %v2719 = vadd.f32 %v2680, %v2707
      %v2720 = vadd.f32 %v2681, %v2707
      %v2721 = vadd.f32 %v2682, %v2707
      %v2722 = vadd.f32 %v2683, %v2707
      %v2723 = vadd.f32 %v2684, %v2707
      %v2724 = vadd.f32 %v2685, %v2707
      %v2725 = vadd.f32 %v2686, %v2707
      %v2726 = vadd.f32 %v2687, %v2707
      %v2727 = vadd.f32 %v2688, %v2707
      %v2728 = vadd.f32 %v2689, %v2707
      %v2729 = vadd.f32 %v2690, %v2707
      %v2730 = vadd.f32 %v2691, %v2707
      %v2731 = vadd.f32 %v2692, %v2707
      %v2732 = vadd.f32 %v2693, %v2707
      %v2733 = vadd.f32 %v2694, %v2707
      %v2734 = vadd.f32 %v2695, %v2707
      %v2735 = vadd.f32 %v2696, %v2707
      %v2736 = vadd.f32 %v2697, %v2707
      %v2737 = vadd.f32 %v2698, %v2707
      %v2738 = vadd.f32 %v2699, %v2707
      %v2739 = vadd.f32 %v2700, %v2707
      %v2740 = vadd.f32 %v2701, %v2707
      %v2741 = vmax.f32 %v2709, 0.0
      %v2742 = vmax.f32 %v2710, 0.0
      %v2743 = vmax.f32 %v2711, 0.0
      %v2744 = vmax.f32 %v2712, 0.0
      %v2745 = vmax.f32 %v2713, 0.0
      %v2746 = vmax.f32 %v2714, 0.0
      %v2747 = vmax.f32 %v2715, 0.0
      %v2748 = vmax.f32 %v2716, 0.0
      %v2749 = vmax.f32 %v2717, 0.0
      %v2750 = vmax.f32 %v2718, 0.0
      %v2751 = vmax.f32 %v2719, 0.0
      %v2752 = vmax.f32 %v2720, 0.0
      %v2753 = vmax.f32 %v2721, 0.0
      %v2754 = vmax.f32 %v2722, 0.0
      %v2755 = vmax.f32 %v2723, 0.0
      %v2756 = vmax.f32 %v2724, 0.0
      %v2757 = vmax.f32 %v2725, 0.0
      %v2758 = vmax.f32 %v2726, 0.0
      %v2759 = vmax.f32 %v2727, 0.0
      %v2760 = vmax.f32 %v2728, 0.0
      %v2761 = vmax.f32 %v2729, 0.0
      %v2762 = vmax.f32 %v2730, 0.0
      %v2763 = vmax.f32 %v2731, 0.0
      %v2764 = vmax.f32 %v2732, 0.0
      %v2765 = vmax.f32 %v2733, 0.0
      %v2766 = vmax.f32 %v2734, 0.0
      %v2767 = vmax.f32 %v2735, 0.0
      %v2768 = vmax.f32 %v2736, 0.0
      %v2769 = vmax.f32 %v2737, 0.0
      %v2770 = vmax.f32 %v2738, 0.0
      %v2771 = vmax.f32 %v2739, 0.0
      %v2772 = vmax.f32 %v2740, 0.0
      %2773 = vst.msk [vmem:[#allocation3] sm:$0xff] %vm644, 0.0
      %vm2774 = vcmask 58368
      %2775 = vst.msk [vmem:[#allocation3 + $0x8] sm:$0x3] %vm2774, 0.0
      %2776 = vst.msk [vmem:[#allocation3 + $0x10] sm:$0xff] %vm644, 0.0
      %2777 = vst.msk [vmem:[#allocation3 + $0x18] sm:$0x3] %vm2774, 0.0
      %2778 = vst.msk [vmem:[#allocation3 + $0x20] sm:$0xff] %vm644, 0.0
      %2779 = vst.msk [vmem:[#allocation3 + $0x28] sm:$0x3] %vm2774, 0.0
      %2780 = vst.msk [vmem:[#allocation3 + $0x30] sm:$0xff] %vm644, 0.0
      %2781 = vst.msk [vmem:[#allocation3 + $0x38] sm:$0x3] %vm2774, 0.0
      %2782 = vst.msk [vmem:[#allocation3 + $0x40] sm:$0xff] %vm644, 0.0
      %2783 = vst.msk [vmem:[#allocation3 + $0x48] sm:$0x3] %vm2774, 0.0
      %2784 = vst.msk [vmem:[#allocation3 + $0x50] sm:$0xff] %vm644, 0.0
      %2785 = vst.msk [vmem:[#allocation3 + $0x58] sm:$0x3] %vm2774, 0.0
      %2786 = vst.msk [vmem:[#allocation3 + $0x60] sm:$0xff] %vm644, 0.0
      %2787 = vst.msk [vmem:[#allocation3 + $0x68] sm:$0x3] %vm2774, 0.0
      %2788 = vst.msk [vmem:[#allocation3 + $0x70] sm:$0xff] %vm644, 0.0
      %2789 = vst.msk [vmem:[#allocation3 + $0x78] sm:$0x3] %vm2774, 0.0
      %2790 = vst.msk [vmem:[#allocation3 + $0x80] sm:$0xff] %vm644, 0.0
      %2791 = vst.msk [vmem:[#allocation3 + $0x88] sm:$0x3] %vm2774, 0.0
      %2792 = vst.msk [vmem:[#allocation3 + $0x90] sm:$0xff] %vm644, 0.0
      %2793 = vst.msk [vmem:[#allocation3 + $0x98] sm:$0x3] %vm2774, 0.0
      %2794 = vst.msk [vmem:[#allocation3 + $0xa0] sm:$0xff] %vm644, 0.0
      %2795 = vst.msk [vmem:[#allocation3 + $0xa8] sm:$0x3] %vm2774, 0.0
      %2796 = vst.msk [vmem:[#allocation3 + $0xb0] sm:$0xff] %vm644, 0.0
      %2797 = vst.msk [vmem:[#allocation3 + $0xb8] sm:$0x3] %vm2774, 0.0
      %2798 = vst.msk [vmem:[#allocation3 + $0xc0] sm:$0xff] %vm644, 0.0
      %2799 = vst.msk [vmem:[#allocation3 + $0xc8] sm:$0x3] %vm2774, 0.0
      %2800 = vst.msk [vmem:[#allocation3 + $0xd0] sm:$0xff] %vm644, 0.0
      %2801 = vst.msk [vmem:[#allocation3 + $0xd8] sm:$0x3] %vm2774, 0.0
      %2802 = vst.msk [vmem:[#allocation3 + $0xe0] sm:$0xff] %vm644, 0.0
      %2803 = vst.msk [vmem:[#allocation3 + $0xe8] sm:$0x3] %vm2774, 0.0
      %2804 = vst.msk [vmem:[#allocation3 + $0xf0] sm:$0xff] %vm644, 0.0
      %2805 = vst.msk [vmem:[#allocation3 + $0xf8] sm:$0x3] %vm2774, 0.0
      %2806 = vst.msk [vmem:[#allocation3 + $0x100] sm:$0xff] %vm644, 0.0
      %2807 = vst.msk [vmem:[#allocation3 + $0x108] sm:$0x3] %vm2774, 0.0
      %2808 = vst.msk [vmem:[#allocation3 + $0x110] sm:$0xff] %vm644, 0.0
      %2809 = vst.msk [vmem:[#allocation3 + $0x118] sm:$0x3] %vm2774, 0.0
      %2810 = vst.msk [vmem:[#allocation3 + $0x120] sm:$0xff] %vm644, 0.0
      %2811 = vst.msk [vmem:[#allocation3 + $0x128] sm:$0x3] %vm2774, 0.0
      %2812 = vst.msk [vmem:[#allocation3 + $0x130] sm:$0xff] %vm644, 0.0
      %2813 = vst.msk [vmem:[#allocation3 + $0x138] sm:$0x3] %vm2774, 0.0
      %2814 = vst.msk [vmem:[#allocation3 + $0x140] sm:$0xff] %vm644, 0.0
      %2815 = vst.msk [vmem:[#allocation3 + $0x148] sm:$0x3] %vm2774, 0.0
      %2816 = vst.msk [vmem:[#allocation3 + $0x150] sm:$0xff] %vm644, 0.0
      %2817 = vst.msk [vmem:[#allocation3 + $0x158] sm:$0x3] %vm2774, 0.0
      %2818 = vst.msk [vmem:[#allocation3 + $0x160] sm:$0xff] %vm644, 0.0
      %2819 = vst.msk [vmem:[#allocation3 + $0x168] sm:$0x3] %vm2774, 0.0
      %2820 = vst.msk [vmem:[#allocation3 + $0x170] sm:$0xff] %vm644, 0.0
      %2821 = vst.msk [vmem:[#allocation3 + $0x178] sm:$0x3] %vm2774, 0.0
      %2822 = vst.msk [vmem:[#allocation3 + $0x180] sm:$0xff] %vm644, 0.0
      %2823 = vst.msk [vmem:[#allocation3 + $0x188] sm:$0x3] %vm2774, 0.0
      %2824 = vst.msk [vmem:[#allocation3 + $0x190] sm:$0xff] %vm644, 0.0
      %2825 = vst.msk [vmem:[#allocation3 + $0x198] sm:$0x3] %vm2774, 0.0
      %2826 = vst.msk [vmem:[#allocation3 + $0x1a0] sm:$0xff] %vm644, 0.0
      %2827 = vst.msk [vmem:[#allocation3 + $0x1a8] sm:$0x3] %vm2774, 0.0
      %2828 = vst.msk [vmem:[#allocation3 + $0x1b0] sm:$0xff] %vm644, 0.0
      %2829 = vst.msk [vmem:[#allocation3 + $0x1b8] sm:$0x3] %vm2774, 0.0
      %2830 = vst.msk [vmem:[#allocation3 + $0x1c0] sm:$0xff] %vm644, 0.0
      %2831 = vst.msk [vmem:[#allocation3 + $0x1c8] sm:$0x3] %vm2774, 0.0
      %2832 = vst.msk [vmem:[#allocation3 + $0x1d0] sm:$0xff] %vm644, 0.0
      %2833 = vst.msk [vmem:[#allocation3 + $0x1d8] sm:$0x3] %vm2774, 0.0
      %2834 = vst.msk [vmem:[#allocation3 + $0x1e0] sm:$0xff] %vm644, 0.0
      %2835 = vst.msk [vmem:[#allocation3 + $0x1e8] sm:$0x3] %vm2774, 0.0
      %2836 = vst.msk [vmem:[#allocation3 + $0x1f0] sm:$0xff] %vm644, 0.0
      %2837 = vst.msk [vmem:[#allocation3 + $0x1f8] sm:$0x3] %vm2774, 0.0
      %2838 = vst.msk [vmem:[#allocation3 + $0x200] sm:$0xff] %vm644, 0.0
      %2839 = vst.msk [vmem:[#allocation3 + $0x208] sm:$0x3] %vm2774, 0.0
      %2840 = vst.msk [vmem:[#allocation3 + $0x210] sm:$0xff] %vm644, 0.0
      %2841 = vst.msk [vmem:[#allocation3 + $0x218] sm:$0x3] %vm2774, 0.0
      %s2842 = scalar_lea.vmem [#allocation3], 16
      %2843 = vst.msk [vmem:[%s2842 + $0x1] sm:$0xff] %vm644, %v2741
      %2844 = vst.msk [vmem:[%s2842 + $0x11] sm:$0xff] %vm644, %v2742
      %2845 = vst.msk [vmem:[%s2842 + $0x21] sm:$0xff] %vm644, %v2743
      %2846 = vst.msk [vmem:[%s2842 + $0x31] sm:$0xff] %vm644, %v2744
      %2847 = vst.msk [vmem:[%s2842 + $0x41] sm:$0xff] %vm644, %v2745
      %2848 = vst.msk [vmem:[%s2842 + $0x51] sm:$0xff] %vm644, %v2746
      %2849 = vst.msk [vmem:[%s2842 + $0x61] sm:$0xff] %vm644, %v2747
      %2850 = vst.msk [vmem:[%s2842 + $0x71] sm:$0xff] %vm644, %v2748
      %2851 = vst.msk [vmem:[%s2842 + $0x81] sm:$0xff] %vm644, %v2749
      %2852 = vst.msk [vmem:[%s2842 + $0x91] sm:$0xff] %vm644, %v2750
      %2853 = vst.msk [vmem:[%s2842 + $0xa1] sm:$0xff] %vm644, %v2751
      %2854 = vst.msk [vmem:[%s2842 + $0xb1] sm:$0xff] %vm644, %v2752
      %2855 = vst.msk [vmem:[%s2842 + $0xc1] sm:$0xff] %vm644, %v2753
      %2856 = vst.msk [vmem:[%s2842 + $0xd1] sm:$0xff] %vm644, %v2754
      %2857 = vst.msk [vmem:[%s2842 + $0xe1] sm:$0xff] %vm644, %v2755
      %2858 = vst.msk [vmem:[%s2842 + $0xf1] sm:$0xff] %vm644, %v2756
      %2859 = vst.msk [vmem:[%s2842 + $0x101] sm:$0xff] %vm644, %v2757
      %2860 = vst.msk [vmem:[%s2842 + $0x111] sm:$0xff] %vm644, %v2758
      %2861 = vst.msk [vmem:[%s2842 + $0x121] sm:$0xff] %vm644, %v2759
      %2862 = vst.msk [vmem:[%s2842 + $0x131] sm:$0xff] %vm644, %v2760
      %2863 = vst.msk [vmem:[%s2842 + $0x141] sm:$0xff] %vm644, %v2761
      %2864 = vst.msk [vmem:[%s2842 + $0x151] sm:$0xff] %vm644, %v2762
      %2865 = vst.msk [vmem:[%s2842 + $0x161] sm:$0xff] %vm644, %v2763
      %2866 = vst.msk [vmem:[%s2842 + $0x171] sm:$0xff] %vm644, %v2764
      %2867 = vst.msk [vmem:[%s2842 + $0x181] sm:$0xff] %vm644, %v2765
      %2868 = vst.msk [vmem:[%s2842 + $0x191] sm:$0xff] %vm644, %v2766
      %2869 = vst.msk [vmem:[%s2842 + $0x1a1] sm:$0xff] %vm644, %v2767
      %2870 = vst.msk [vmem:[%s2842 + $0x1b1] sm:$0xff] %vm644, %v2768
      %2871 = vst.msk [vmem:[%s2842 + $0x1c1] sm:$0xff] %vm644, %v2769
      %2872 = vst.msk [vmem:[%s2842 + $0x1d1] sm:$0xff] %vm644, %v2770
      %2873 = vst.msk [vmem:[%s2842 + $0x1e1] sm:$0xff] %vm644, %v2771
      %2874 = vst.msk [vmem:[%s2842 + $0x1f1] sm:$0xff] %vm644, %v2772
      %v2875 = vld [vmem:[#allocation3] sm:$0xff]
      %v2876 = vld [vmem:[#allocation3 + $0x10] sm:$0xff]
      %v2877 = vld [vmem:[#allocation3 + $0x20] sm:$0xff]
      %v2878 = vld [vmem:[#allocation3 + $0x30] sm:$0xff]
      %v2879 = vld [vmem:[#allocation3 + $0x40] sm:$0xff]
      %v2880 = vld [vmem:[#allocation3 + $0x50] sm:$0xff]
      %v2881 = vld [vmem:[#allocation3 + $0x60] sm:$0xff]
      %v2882 = vld [vmem:[#allocation3 + $0x70] sm:$0xff]
      %v2883 = vld [vmem:[#allocation3 + $0x80] sm:$0xff]
      %v2884 = vld [vmem:[#allocation3 + $0x90] sm:$0xff]
      %v2885 = vld [vmem:[#allocation3 + $0xa0] sm:$0xff]
      %v2886 = vld [vmem:[#allocation3 + $0xb0] sm:$0xff]
      %v2887 = vld [vmem:[#allocation3 + $0xc0] sm:$0xff]
      %v2888 = vld [vmem:[#allocation3 + $0xd0] sm:$0xff]
      %v2889 = vld [vmem:[#allocation3 + $0xe0] sm:$0xff]
      %v2890 = vld [vmem:[#allocation3 + $0xf0] sm:$0xff]
      %v2891 = vld [vmem:[#allocation3 + $0x100] sm:$0xff]
      %v2892 = vld [vmem:[#allocation3 + $0x110] sm:$0xff]
      %v2893 = vld [vmem:[#allocation3 + $0x120] sm:$0xff]
      %v2894 = vld [vmem:[#allocation3 + $0x130] sm:$0xff]
      %v2895 = vld [vmem:[#allocation3 + $0x140] sm:$0xff]
      %v2896 = vld [vmem:[#allocation3 + $0x150] sm:$0xff]
      %v2897 = vld [vmem:[#allocation3 + $0x160] sm:$0xff]
      %v2898 = vld [vmem:[#allocation3 + $0x170] sm:$0xff]
      %v2899 = vld [vmem:[#allocation3 + $0x180] sm:$0xff]
      %v2900 = vld [vmem:[#allocation3 + $0x190] sm:$0xff]
      %v2901 = vld [vmem:[#allocation3 + $0x1a0] sm:$0xff]
      %v2902 = vld [vmem:[#allocation3 + $0x1b0] sm:$0xff]
      %v2903 = vld [vmem:[#allocation3 + $0x1c0] sm:$0xff]
      %v2904 = vld [vmem:[#allocation3 + $0x1d0] sm:$0xff]
      %v2905 = vld [vmem:[#allocation3 + $0x1e0] sm:$0xff]
      %v2906 = vld [vmem:[#allocation3 + $0x1f0] sm:$0xff]
      %2907 = vst.msk [vmem:[#allocation5] sm:$0xff] %vm644, %v2875
      %2908 = vst.msk [vmem:[#allocation5 + $0x8] sm:$0xff] %vm644, %v2876
      %2909 = vst.msk [vmem:[#allocation5 + $0x10] sm:$0xff] %vm644, %v2877
      %2910 = vst.msk [vmem:[#allocation5 + $0x18] sm:$0xff] %vm644, %v2878
      %2911 = vst.msk [vmem:[#allocation5 + $0x20] sm:$0xff] %vm644, %v2879
      %2912 = vst.msk [vmem:[#allocation5 + $0x28] sm:$0xff] %vm644, %v2880
      %2913 = vst.msk [vmem:[#allocation5 + $0x30] sm:$0xff] %vm644, %v2881
      %2914 = vst.msk [vmem:[#allocation5 + $0x38] sm:$0xff] %vm644, %v2882
      %2915 = vst.msk [vmem:[#allocation5 + $0x40] sm:$0xff] %vm644, %v2883
      %2916 = vst.msk [vmem:[#allocation5 + $0x48] sm:$0xff] %vm644, %v2884
      %2917 = vst.msk [vmem:[#allocation5 + $0x50] sm:$0xff] %vm644, %v2885
      %2918 = vst.msk [vmem:[#allocation5 + $0x58] sm:$0xff] %vm644, %v2886
      %2919 = vst.msk [vmem:[#allocation5 + $0x60] sm:$0xff] %vm644, %v2887
      %2920 = vst.msk [vmem:[#allocation5 + $0x68] sm:$0xff] %vm644, %v2888
      %2921 = vst.msk [vmem:[#allocation5 + $0x70] sm:$0xff] %vm644, %v2889
      %2922 = vst.msk [vmem:[#allocation5 + $0x78] sm:$0xff] %vm644, %v2890
      %2923 = vst.msk [vmem:[#allocation5 + $0x80] sm:$0xff] %vm644, %v2891
      %2924 = vst.msk [vmem:[#allocation5 + $0x88] sm:$0xff] %vm644, %v2892
      %2925 = vst.msk [vmem:[#allocation5 + $0x90] sm:$0xff] %vm644, %v2893
      %2926 = vst.msk [vmem:[#allocation5 + $0x98] sm:$0xff] %vm644, %v2894
      %2927 = vst.msk [vmem:[#allocation5 + $0xa0] sm:$0xff] %vm644, %v2895
      %2928 = vst.msk [vmem:[#allocation5 + $0xa8] sm:$0xff] %vm644, %v2896
      %2929 = vst.msk [vmem:[#allocation5 + $0xb0] sm:$0xff] %vm644, %v2897
      %2930 = vst.msk [vmem:[#allocation5 + $0xb8] sm:$0xff] %vm644, %v2898
      %2931 = vst.msk [vmem:[#allocation5 + $0xc0] sm:$0xff] %vm644, %v2899
      %2932 = vst.msk [vmem:[#allocation5 + $0xc8] sm:$0xff] %vm644, %v2900
      %2933 = vst.msk [vmem:[#allocation5 + $0xd0] sm:$0xff] %vm644, %v2901
      %2934 = vst.msk [vmem:[#allocation5 + $0xd8] sm:$0xff] %vm644, %v2902
      %2935 = vst.msk [vmem:[#allocation5 + $0xe0] sm:$0xff] %vm644, %v2903
      %2936 = vst.msk [vmem:[#allocation5 + $0xe8] sm:$0xff] %vm644, %v2904
      %2937 = vst.msk [vmem:[#allocation5 + $0xf0] sm:$0xff] %vm644, %v2905
      %2938 = vst.msk [vmem:[#allocation5 + $0xf8] sm:$0xff] %vm644, %v2906
      %v2939 = vld [vmem:[#allocation3 + $0x1] sm:$0xff]
      %v2940 = vld [vmem:[#allocation3 + $0x11] sm:$0xff]
      %v2941 = vld [vmem:[#allocation3 + $0x21] sm:$0xff]
      %v2942 = vld [vmem:[#allocation3 + $0x31] sm:$0xff]
      %v2943 = vld [vmem:[#allocation3 + $0x41] sm:$0xff]
      %v2944 = vld [vmem:[#allocation3 + $0x51] sm:$0xff]
      %v2945 = vld [vmem:[#allocation3 + $0x61] sm:$0xff]
      %v2946 = vld [vmem:[#allocation3 + $0x71] sm:$0xff]
      %v2947 = vld [vmem:[#allocation3 + $0x81] sm:$0xff]
      %v2948 = vld [vmem:[#allocation3 + $0x91] sm:$0xff]
      %v2949 = vld [vmem:[#allocation3 + $0xa1] sm:$0xff]
      %v2950 = vld [vmem:[#allocation3 + $0xb1] sm:$0xff]
      %v2951 = vld [vmem:[#allocation3 + $0xc1] sm:$0xff]
      %v2952 = vld [vmem:[#allocation3 + $0xd1] sm:$0xff]
      %v2953 = vld [vmem:[#allocation3 + $0xe1] sm:$0xff]
      %v2954 = vld [vmem:[#allocation3 + $0xf1] sm:$0xff]
      %v2955 = vld [vmem:[#allocation3 + $0x101] sm:$0xff]
      %v2956 = vld [vmem:[#allocation3 + $0x111] sm:$0xff]
      %v2957 = vld [vmem:[#allocation3 + $0x121] sm:$0xff]
      %v2958 = vld [vmem:[#allocation3 + $0x131] sm:$0xff]
      %v2959 = vld [vmem:[#allocation3 + $0x141] sm:$0xff]
      %v2960 = vld [vmem:[#allocation3 + $0x151] sm:$0xff]
      %v2961 = vld [vmem:[#allocation3 + $0x161] sm:$0xff]
      %v2962 = vld [vmem:[#allocation3 + $0x171] sm:$0xff]
      %v2963 = vld [vmem:[#allocation3 + $0x181] sm:$0xff]
      %v2964 = vld [vmem:[#allocation3 + $0x191] sm:$0xff]
      %v2965 = vld [vmem:[#allocation3 + $0x1a1] sm:$0xff]
      %v2966 = vld [vmem:[#allocation3 + $0x1b1] sm:$0xff]
      %v2967 = vld [vmem:[#allocation3 + $0x1c1] sm:$0xff]
      %v2968 = vld [vmem:[#allocation3 + $0x1d1] sm:$0xff]
      %v2969 = vld [vmem:[#allocation3 + $0x1e1] sm:$0xff]
      %v2970 = vld [vmem:[#allocation3 + $0x1f1] sm:$0xff]
      %3003 = vrot.lane.b32.xlu0 %v2939, 8
      %v3004 = vpop.permute.xlu0 %3003
      %3005 = vrot.lane.b32.xlu0 %v2940, 8
      %v3006 = vpop.permute.xlu0 %3005
      %3007 = vrot.lane.b32.xlu0 %v2941, 8
      %v3008 = vpop.permute.xlu0 %3007
      %3009 = vrot.lane.b32.xlu0 %v2942, 8
      %v3010 = vpop.permute.xlu0 %3009
      %3011 = vrot.lane.b32.xlu0 %v2943, 8
      %v3012 = vpop.permute.xlu0 %3011
      %3013 = vrot.lane.b32.xlu0 %v2944, 8
      %v3014 = vpop.permute.xlu0 %3013
      %3015 = vrot.lane.b32.xlu0 %v2945, 8
      %v3016 = vpop.permute.xlu0 %3015
      %3017 = vrot.lane.b32.xlu0 %v2946, 8
      %v3018 = vpop.permute.xlu0 %3017
      %3019 = vrot.lane.b32.xlu0 %v2947, 8
      %v3020 = vpop.permute.xlu0 %3019
      %3021 = vrot.lane.b32.xlu0 %v2948, 8
      %v3022 = vpop.permute.xlu0 %3021
      %3023 = vrot.lane.b32.xlu0 %v2949, 8
      %v3024 = vpop.permute.xlu0 %3023
      %3025 = vrot.lane.b32.xlu0 %v2950, 8
      %v3026 = vpop.permute.xlu0 %3025
      %3027 = vrot.lane.b32.xlu0 %v2951, 8
      %v3028 = vpop.permute.xlu0 %3027
      %3029 = vrot.lane.b32.xlu0 %v2952, 8
      %v3030 = vpop.permute.xlu0 %3029
      %3031 = vrot.lane.b32.xlu0 %v2953, 8
      %v3032 = vpop.permute.xlu0 %3031
      %3033 = vrot.lane.b32.xlu0 %v2954, 8
      %v3034 = vpop.permute.xlu0 %3033
      %3035 = vrot.lane.b32.xlu0 %v2955, 8
      %v3036 = vpop.permute.xlu0 %3035
      %3037 = vrot.lane.b32.xlu0 %v2956, 8
      %v3038 = vpop.permute.xlu0 %3037
      %3039 = vrot.lane.b32.xlu0 %v2957, 8
      %v3040 = vpop.permute.xlu0 %3039
      %3041 = vrot.lane.b32.xlu0 %v2958, 8
      %v3042 = vpop.permute.xlu0 %3041
      %3043 = vrot.lane.b32.xlu0 %v2959, 8
      %v3044 = vpop.permute.xlu0 %3043
      %3045 = vrot.lane.b32.xlu0 %v2960, 8
      %v3046 = vpop.permute.xlu0 %3045
      %3047 = vrot.lane.b32.xlu0 %v2961, 8
      %v3048 = vpop.permute.xlu0 %3047
      %3049 = vrot.lane.b32.xlu0 %v2962, 8
      %v3050 = vpop.permute.xlu0 %3049
      %3051 = vrot.lane.b32.xlu0 %v2963, 8
      %v3052 = vpop.permute.xlu0 %3051
      %3053 = vrot.lane.b32.xlu0 %v2964, 8
      %v3054 = vpop.permute.xlu0 %3053
      %3055 = vrot.lane.b32.xlu0 %v2965, 8
      %v3056 = vpop.permute.xlu0 %3055
      %3057 = vrot.lane.b32.xlu0 %v2966, 8
      %v3058 = vpop.permute.xlu0 %3057
      %3059 = vrot.lane.b32.xlu0 %v2967, 8
      %v3060 = vpop.permute.xlu0 %3059
      %3061 = vrot.lane.b32.xlu0 %v2968, 8
      %v3062 = vpop.permute.xlu0 %3061
      %3063 = vrot.lane.b32.xlu0 %v2969, 8
      %v3064 = vpop.permute.xlu0 %3063
      %3065 = vrot.lane.b32.xlu0 %v2970, 8
      %v3066 = vpop.permute.xlu0 %3065
      %3099 = vst.msk [vmem:[#allocation5] sm:$0xff] %vm773, %v3004
      %3100 = vst.msk [vmem:[#allocation5 + $0x8] sm:$0xff] %vm773, %v3006
      %3101 = vst.msk [vmem:[#allocation5 + $0x10] sm:$0xff] %vm773, %v3008
      %3102 = vst.msk [vmem:[#allocation5 + $0x18] sm:$0xff] %vm773, %v3010
      %3103 = vst.msk [vmem:[#allocation5 + $0x20] sm:$0xff] %vm773, %v3012
      %3104 = vst.msk [vmem:[#allocation5 + $0x28] sm:$0xff] %vm773, %v3014
      %3105 = vst.msk [vmem:[#allocation5 + $0x30] sm:$0xff] %vm773, %v3016
      %3106 = vst.msk [vmem:[#allocation5 + $0x38] sm:$0xff] %vm773, %v3018
      %3107 = vst.msk [vmem:[#allocation5 + $0x40] sm:$0xff] %vm773, %v3020
      %3108 = vst.msk [vmem:[#allocation5 + $0x48] sm:$0xff] %vm773, %v3022
      %3109 = vst.msk [vmem:[#allocation5 + $0x50] sm:$0xff] %vm773, %v3024
      %3110 = vst.msk [vmem:[#allocation5 + $0x58] sm:$0xff] %vm773, %v3026
      %3111 = vst.msk [vmem:[#allocation5 + $0x60] sm:$0xff] %vm773, %v3028
      %3112 = vst.msk [vmem:[#allocation5 + $0x68] sm:$0xff] %vm773, %v3030
      %3113 = vst.msk [vmem:[#allocation5 + $0x70] sm:$0xff] %vm773, %v3032
      %3114 = vst.msk [vmem:[#allocation5 + $0x78] sm:$0xff] %vm773, %v3034
      %3115 = vst.msk [vmem:[#allocation5 + $0x80] sm:$0xff] %vm773, %v3036
      %3116 = vst.msk [vmem:[#allocation5 + $0x88] sm:$0xff] %vm773, %v3038
      %3117 = vst.msk [vmem:[#allocation5 + $0x90] sm:$0xff] %vm773, %v3040
      %3118 = vst.msk [vmem:[#allocation5 + $0x98] sm:$0xff] %vm773, %v3042
      %3119 = vst.msk [vmem:[#allocation5 + $0xa0] sm:$0xff] %vm773, %v3044
      %3120 = vst.msk [vmem:[#allocation5 + $0xa8] sm:$0xff] %vm773, %v3046
      %3121 = vst.msk [vmem:[#allocation5 + $0xb0] sm:$0xff] %vm773, %v3048
      %3122 = vst.msk [vmem:[#allocation5 + $0xb8] sm:$0xff] %vm773, %v3050
      %3123 = vst.msk [vmem:[#allocation5 + $0xc0] sm:$0xff] %vm773, %v3052
      %3124 = vst.msk [vmem:[#allocation5 + $0xc8] sm:$0xff] %vm773, %v3054
      %3125 = vst.msk [vmem:[#allocation5 + $0xd0] sm:$0xff] %vm773, %v3056
      %3126 = vst.msk [vmem:[#allocation5 + $0xd8] sm:$0xff] %vm773, %v3058
      %3127 = vst.msk [vmem:[#allocation5 + $0xe0] sm:$0xff] %vm773, %v3060
      %3128 = vst.msk [vmem:[#allocation5 + $0xe8] sm:$0xff] %vm773, %v3062
      %3129 = vst.msk [vmem:[#allocation5 + $0xf0] sm:$0xff] %vm773, %v3064
      %3130 = vst.msk [vmem:[#allocation5 + $0xf8] sm:$0xff] %vm773, %v3066
      %v3131 = vld [vmem:[#allocation3 + $0x2] sm:$0xff]
      %v3132 = vld [vmem:[#allocation3 + $0x12] sm:$0xff]
      %v3133 = vld [vmem:[#allocation3 + $0x22] sm:$0xff]
      %v3134 = vld [vmem:[#allocation3 + $0x32] sm:$0xff]
      %v3135 = vld [vmem:[#allocation3 + $0x42] sm:$0xff]
      %v3136 = vld [vmem:[#allocation3 + $0x52] sm:$0xff]
      %v3137 = vld [vmem:[#allocation3 + $0x62] sm:$0xff]
      %v3138 = vld [vmem:[#allocation3 + $0x72] sm:$0xff]
      %v3139 = vld [vmem:[#allocation3 + $0x82] sm:$0xff]
      %v3140 = vld [vmem:[#allocation3 + $0x92] sm:$0xff]
      %v3141 = vld [vmem:[#allocation3 + $0xa2] sm:$0xff]
      %v3142 = vld [vmem:[#allocation3 + $0xb2] sm:$0xff]
      %v3143 = vld [vmem:[#allocation3 + $0xc2] sm:$0xff]
      %v3144 = vld [vmem:[#allocation3 + $0xd2] sm:$0xff]
      %v3145 = vld [vmem:[#allocation3 + $0xe2] sm:$0xff]
      %v3146 = vld [vmem:[#allocation3 + $0xf2] sm:$0xff]
      %v3147 = vld [vmem:[#allocation3 + $0x102] sm:$0xff]
      %v3148 = vld [vmem:[#allocation3 + $0x112] sm:$0xff]
      %v3149 = vld [vmem:[#allocation3 + $0x122] sm:$0xff]
      %v3150 = vld [vmem:[#allocation3 + $0x132] sm:$0xff]
      %v3151 = vld [vmem:[#allocation3 + $0x142] sm:$0xff]
      %v3152 = vld [vmem:[#allocation3 + $0x152] sm:$0xff]
      %v3153 = vld [vmem:[#allocation3 + $0x162] sm:$0xff]
      %v3154 = vld [vmem:[#allocation3 + $0x172] sm:$0xff]
      %v3155 = vld [vmem:[#allocation3 + $0x182] sm:$0xff]
      %v3156 = vld [vmem:[#allocation3 + $0x192] sm:$0xff]
      %v3157 = vld [vmem:[#allocation3 + $0x1a2] sm:$0xff]
      %v3158 = vld [vmem:[#allocation3 + $0x1b2] sm:$0xff]
      %v3159 = vld [vmem:[#allocation3 + $0x1c2] sm:$0xff]
      %v3160 = vld [vmem:[#allocation3 + $0x1d2] sm:$0xff]
      %v3161 = vld [vmem:[#allocation3 + $0x1e2] sm:$0xff]
      %v3162 = vld [vmem:[#allocation3 + $0x1f2] sm:$0xff]
      %3195 = vrot.lane.b32.xlu0 %v3131, 16
      %v3196 = vpop.permute.xlu0 %3195
      %3197 = vrot.lane.b32.xlu0 %v3132, 16
      %v3198 = vpop.permute.xlu0 %3197
      %3199 = vrot.lane.b32.xlu0 %v3133, 16
      %v3200 = vpop.permute.xlu0 %3199
      %3201 = vrot.lane.b32.xlu0 %v3134, 16
      %v3202 = vpop.permute.xlu0 %3201
      %3203 = vrot.lane.b32.xlu0 %v3135, 16
      %v3204 = vpop.permute.xlu0 %3203
      %3205 = vrot.lane.b32.xlu0 %v3136, 16
      %v3206 = vpop.permute.xlu0 %3205
      %3207 = vrot.lane.b32.xlu0 %v3137, 16
      %v3208 = vpop.permute.xlu0 %3207
      %3209 = vrot.lane.b32.xlu0 %v3138, 16
      %v3210 = vpop.permute.xlu0 %3209
      %3211 = vrot.lane.b32.xlu0 %v3139, 16
      %v3212 = vpop.permute.xlu0 %3211
      %3213 = vrot.lane.b32.xlu0 %v3140, 16
      %v3214 = vpop.permute.xlu0 %3213
      %3215 = vrot.lane.b32.xlu0 %v3141, 16
      %v3216 = vpop.permute.xlu0 %3215
      %3217 = vrot.lane.b32.xlu0 %v3142, 16
      %v3218 = vpop.permute.xlu0 %3217
      %3219 = vrot.lane.b32.xlu0 %v3143, 16
      %v3220 = vpop.permute.xlu0 %3219
      %3221 = vrot.lane.b32.xlu0 %v3144, 16
      %v3222 = vpop.permute.xlu0 %3221
      %3223 = vrot.lane.b32.xlu0 %v3145, 16
      %v3224 = vpop.permute.xlu0 %3223
      %3225 = vrot.lane.b32.xlu0 %v3146, 16
      %v3226 = vpop.permute.xlu0 %3225
      %3227 = vrot.lane.b32.xlu0 %v3147, 16
      %v3228 = vpop.permute.xlu0 %3227
      %3229 = vrot.lane.b32.xlu0 %v3148, 16
      %v3230 = vpop.permute.xlu0 %3229
      %3231 = vrot.lane.b32.xlu0 %v3149, 16
      %v3232 = vpop.permute.xlu0 %3231
      %3233 = vrot.lane.b32.xlu0 %v3150, 16
      %v3234 = vpop.permute.xlu0 %3233
      %3235 = vrot.lane.b32.xlu0 %v3151, 16
      %v3236 = vpop.permute.xlu0 %3235
      %3237 = vrot.lane.b32.xlu0 %v3152, 16
      %v3238 = vpop.permute.xlu0 %3237
      %3239 = vrot.lane.b32.xlu0 %v3153, 16
      %v3240 = vpop.permute.xlu0 %3239
      %3241 = vrot.lane.b32.xlu0 %v3154, 16
      %v3242 = vpop.permute.xlu0 %3241
      %3243 = vrot.lane.b32.xlu0 %v3155, 16
      %v3244 = vpop.permute.xlu0 %3243
      %3245 = vrot.lane.b32.xlu0 %v3156, 16
      %v3246 = vpop.permute.xlu0 %3245
      %3247 = vrot.lane.b32.xlu0 %v3157, 16
      %v3248 = vpop.permute.xlu0 %3247
      %3249 = vrot.lane.b32.xlu0 %v3158, 16
      %v3250 = vpop.permute.xlu0 %3249
      %3251 = vrot.lane.b32.xlu0 %v3159, 16
      %v3252 = vpop.permute.xlu0 %3251
      %3253 = vrot.lane.b32.xlu0 %v3160, 16
      %v3254 = vpop.permute.xlu0 %3253
      %3255 = vrot.lane.b32.xlu0 %v3161, 16
      %v3256 = vpop.permute.xlu0 %3255
      %3257 = vrot.lane.b32.xlu0 %v3162, 16
      %v3258 = vpop.permute.xlu0 %3257
      %vm3291 = vcmask 195712
      %3292 = vst.msk [vmem:[#allocation5] sm:$0xff] %vm3291, %v3196
      %3293 = vst.msk [vmem:[#allocation5 + $0x8] sm:$0xff] %vm3291, %v3198
      %3294 = vst.msk [vmem:[#allocation5 + $0x10] sm:$0xff] %vm3291, %v3200
      %3295 = vst.msk [vmem:[#allocation5 + $0x18] sm:$0xff] %vm3291, %v3202
      %3296 = vst.msk [vmem:[#allocation5 + $0x20] sm:$0xff] %vm3291, %v3204
      %3297 = vst.msk [vmem:[#allocation5 + $0x28] sm:$0xff] %vm3291, %v3206
      %3298 = vst.msk [vmem:[#allocation5 + $0x30] sm:$0xff] %vm3291, %v3208
      %3299 = vst.msk [vmem:[#allocation5 + $0x38] sm:$0xff] %vm3291, %v3210
      %3300 = vst.msk [vmem:[#allocation5 + $0x40] sm:$0xff] %vm3291, %v3212
      %3301 = vst.msk [vmem:[#allocation5 + $0x48] sm:$0xff] %vm3291, %v3214
      %3302 = vst.msk [vmem:[#allocation5 + $0x50] sm:$0xff] %vm3291, %v3216
      %3303 = vst.msk [vmem:[#allocation5 + $0x58] sm:$0xff] %vm3291, %v3218
      %3304 = vst.msk [vmem:[#allocation5 + $0x60] sm:$0xff] %vm3291, %v3220
      %3305 = vst.msk [vmem:[#allocation5 + $0x68] sm:$0xff] %vm3291, %v3222
      %3306 = vst.msk [vmem:[#allocation5 + $0x70] sm:$0xff] %vm3291, %v3224
      %3307 = vst.msk [vmem:[#allocation5 + $0x78] sm:$0xff] %vm3291, %v3226
      %3308 = vst.msk [vmem:[#allocation5 + $0x80] sm:$0xff] %vm3291, %v3228
      %3309 = vst.msk [vmem:[#allocation5 + $0x88] sm:$0xff] %vm3291, %v3230
      %3310 = vst.msk [vmem:[#allocation5 + $0x90] sm:$0xff] %vm3291, %v3232
      %3311 = vst.msk [vmem:[#allocation5 + $0x98] sm:$0xff] %vm3291, %v3234
      %3312 = vst.msk [vmem:[#allocation5 + $0xa0] sm:$0xff] %vm3291, %v3236
      %3313 = vst.msk [vmem:[#allocation5 + $0xa8] sm:$0xff] %vm3291, %v3238
      %3314 = vst.msk [vmem:[#allocation5 + $0xb0] sm:$0xff] %vm3291, %v3240
      %3315 = vst.msk [vmem:[#allocation5 + $0xb8] sm:$0xff] %vm3291, %v3242
      %3316 = vst.msk [vmem:[#allocation5 + $0xc0] sm:$0xff] %vm3291, %v3244
      %3317 = vst.msk [vmem:[#allocation5 + $0xc8] sm:$0xff] %vm3291, %v3246
      %3318 = vst.msk [vmem:[#allocation5 + $0xd0] sm:$0xff] %vm3291, %v3248
      %3319 = vst.msk [vmem:[#allocation5 + $0xd8] sm:$0xff] %vm3291, %v3250
      %3320 = vst.msk [vmem:[#allocation5 + $0xe0] sm:$0xff] %vm3291, %v3252
      %3321 = vst.msk [vmem:[#allocation5 + $0xe8] sm:$0xff] %vm3291, %v3254
      %3322 = vst.msk [vmem:[#allocation5 + $0xf0] sm:$0xff] %vm3291, %v3256
      %3323 = vst.msk [vmem:[#allocation5 + $0xf8] sm:$0xff] %vm3291, %v3258
      %v3324 = vld [vmem:[%s2842] sm:$0xff]
      %v3325 = vld [vmem:[%s2842 + $0x10] sm:$0xff]
      %v3326 = vld [vmem:[%s2842 + $0x20] sm:$0xff]
      %v3327 = vld [vmem:[%s2842 + $0x30] sm:$0xff]
      %v3328 = vld [vmem:[%s2842 + $0x40] sm:$0xff]
      %v3329 = vld [vmem:[%s2842 + $0x50] sm:$0xff]
      %v3330 = vld [vmem:[%s2842 + $0x60] sm:$0xff]
      %v3331 = vld [vmem:[%s2842 + $0x70] sm:$0xff]
      %v3332 = vld [vmem:[%s2842 + $0x80] sm:$0xff]
      %v3333 = vld [vmem:[%s2842 + $0x90] sm:$0xff]
      %v3334 = vld [vmem:[%s2842 + $0xa0] sm:$0xff]
      %v3335 = vld [vmem:[%s2842 + $0xb0] sm:$0xff]
      %v3336 = vld [vmem:[%s2842 + $0xc0] sm:$0xff]
      %v3337 = vld [vmem:[%s2842 + $0xd0] sm:$0xff]
      %v3338 = vld [vmem:[%s2842 + $0xe0] sm:$0xff]
      %v3339 = vld [vmem:[%s2842 + $0xf0] sm:$0xff]
      %v3340 = vld [vmem:[%s2842 + $0x100] sm:$0xff]
      %v3341 = vld [vmem:[%s2842 + $0x110] sm:$0xff]
      %v3342 = vld [vmem:[%s2842 + $0x120] sm:$0xff]
      %v3343 = vld [vmem:[%s2842 + $0x130] sm:$0xff]
      %v3344 = vld [vmem:[%s2842 + $0x140] sm:$0xff]
      %v3345 = vld [vmem:[%s2842 + $0x150] sm:$0xff]
      %v3346 = vld [vmem:[%s2842 + $0x160] sm:$0xff]
      %v3347 = vld [vmem:[%s2842 + $0x170] sm:$0xff]
      %v3348 = vld [vmem:[%s2842 + $0x180] sm:$0xff]
      %v3349 = vld [vmem:[%s2842 + $0x190] sm:$0xff]
      %v3350 = vld [vmem:[%s2842 + $0x1a0] sm:$0xff]
      %v3351 = vld [vmem:[%s2842 + $0x1b0] sm:$0xff]
      %v3352 = vld [vmem:[%s2842 + $0x1c0] sm:$0xff]
      %v3353 = vld [vmem:[%s2842 + $0x1d0] sm:$0xff]
      %v3354 = vld [vmem:[%s2842 + $0x1e0] sm:$0xff]
      %v3355 = vld [vmem:[%s2842 + $0x1f0] sm:$0xff]
      %3388 = vrot.lane.b32.xlu0 %v3324, 24
      %v3389 = vpop.permute.xlu0 %3388
      %3390 = vrot.lane.b32.xlu0 %v3325, 24
      %v3391 = vpop.permute.xlu0 %3390
      %3392 = vrot.lane.b32.xlu0 %v3326, 24
      %v3393 = vpop.permute.xlu0 %3392
      %3394 = vrot.lane.b32.xlu0 %v3327, 24
      %v3395 = vpop.permute.xlu0 %3394
      %3396 = vrot.lane.b32.xlu0 %v3328, 24
      %v3397 = vpop.permute.xlu0 %3396
      %3398 = vrot.lane.b32.xlu0 %v3329, 24
      %v3399 = vpop.permute.xlu0 %3398
      %3400 = vrot.lane.b32.xlu0 %v3330, 24
      %v3401 = vpop.permute.xlu0 %3400
      %3402 = vrot.lane.b32.xlu0 %v3331, 24
      %v3403 = vpop.permute.xlu0 %3402
      %3404 = vrot.lane.b32.xlu0 %v3332, 24
      %v3405 = vpop.permute.xlu0 %3404
      %3406 = vrot.lane.b32.xlu0 %v3333, 24
      %v3407 = vpop.permute.xlu0 %3406
      %3408 = vrot.lane.b32.xlu0 %v3334, 24
      %v3409 = vpop.permute.xlu0 %3408
      %3410 = vrot.lane.b32.xlu0 %v3335, 24
      %v3411 = vpop.permute.xlu0 %3410
      %3412 = vrot.lane.b32.xlu0 %v3336, 24
      %v3413 = vpop.permute.xlu0 %3412
      %3414 = vrot.lane.b32.xlu0 %v3337, 24
      %v3415 = vpop.permute.xlu0 %3414
      %3416 = vrot.lane.b32.xlu0 %v3338, 24
      %v3417 = vpop.permute.xlu0 %3416
      %3418 = vrot.lane.b32.xlu0 %v3339, 24
      %v3419 = vpop.permute.xlu0 %3418
      %3420 = vrot.lane.b32.xlu0 %v3340, 24
      %v3421 = vpop.permute.xlu0 %3420
      %3422 = vrot.lane.b32.xlu0 %v3341, 24
      %v3423 = vpop.permute.xlu0 %3422
      %3424 = vrot.lane.b32.xlu0 %v3342, 24
      %v3425 = vpop.permute.xlu0 %3424
      %3426 = vrot.lane.b32.xlu0 %v3343, 24
      %v3427 = vpop.permute.xlu0 %3426
      %3428 = vrot.lane.b32.xlu0 %v3344, 24
      %v3429 = vpop.permute.xlu0 %3428
      %3430 = vrot.lane.b32.xlu0 %v3345, 24
      %v3431 = vpop.permute.xlu0 %3430
      %3432 = vrot.lane.b32.xlu0 %v3346, 24
      %v3433 = vpop.permute.xlu0 %3432
      %3434 = vrot.lane.b32.xlu0 %v3347, 24
      %v3435 = vpop.permute.xlu0 %3434
      %3436 = vrot.lane.b32.xlu0 %v3348, 24
      %v3437 = vpop.permute.xlu0 %3436
      %3438 = vrot.lane.b32.xlu0 %v3349, 24
      %v3439 = vpop.permute.xlu0 %3438
      %3440 = vrot.lane.b32.xlu0 %v3350, 24
      %v3441 = vpop.permute.xlu0 %3440
      %3442 = vrot.lane.b32.xlu0 %v3351, 24
      %v3443 = vpop.permute.xlu0 %3442
      %3444 = vrot.lane.b32.xlu0 %v3352, 24
      %v3445 = vpop.permute.xlu0 %3444
      %3446 = vrot.lane.b32.xlu0 %v3353, 24
      %v3447 = vpop.permute.xlu0 %3446
      %3448 = vrot.lane.b32.xlu0 %v3354, 24
      %v3449 = vpop.permute.xlu0 %3448
      %3450 = vrot.lane.b32.xlu0 %v3355, 24
      %v3451 = vpop.permute.xlu0 %3450
      %vm3484 = vcmask 261312
      %3485 = vst.msk [vmem:[#allocation5] sm:$0xff] %vm3484, %v3389
      %3486 = vst.msk [vmem:[#allocation5 + $0x8] sm:$0xff] %vm3484, %v3391
      %3487 = vst.msk [vmem:[#allocation5 + $0x10] sm:$0xff] %vm3484, %v3393
      %3488 = vst.msk [vmem:[#allocation5 + $0x18] sm:$0xff] %vm3484, %v3395
      %3489 = vst.msk [vmem:[#allocation5 + $0x20] sm:$0xff] %vm3484, %v3397
      %3490 = vst.msk [vmem:[#allocation5 + $0x28] sm:$0xff] %vm3484, %v3399
      %3491 = vst.msk [vmem:[#allocation5 + $0x30] sm:$0xff] %vm3484, %v3401
      %3492 = vst.msk [vmem:[#allocation5 + $0x38] sm:$0xff] %vm3484, %v3403
      %3493 = vst.msk [vmem:[#allocation5 + $0x40] sm:$0xff] %vm3484, %v3405
      %3494 = vst.msk [vmem:[#allocation5 + $0x48] sm:$0xff] %vm3484, %v3407
      %3495 = vst.msk [vmem:[#allocation5 + $0x50] sm:$0xff] %vm3484, %v3409
      %3496 = vst.msk [vmem:[#allocation5 + $0x58] sm:$0xff] %vm3484, %v3411
      %3497 = vst.msk [vmem:[#allocation5 + $0x60] sm:$0xff] %vm3484, %v3413
      %3498 = vst.msk [vmem:[#allocation5 + $0x68] sm:$0xff] %vm3484, %v3415
      %3499 = vst.msk [vmem:[#allocation5 + $0x70] sm:$0xff] %vm3484, %v3417
      %3500 = vst.msk [vmem:[#allocation5 + $0x78] sm:$0xff] %vm3484, %v3419
      %3501 = vst.msk [vmem:[#allocation5 + $0x80] sm:$0xff] %vm3484, %v3421
      %3502 = vst.msk [vmem:[#allocation5 + $0x88] sm:$0xff] %vm3484, %v3423
      %3503 = vst.msk [vmem:[#allocation5 + $0x90] sm:$0xff] %vm3484, %v3425
      %3504 = vst.msk [vmem:[#allocation5 + $0x98] sm:$0xff] %vm3484, %v3427
      %3505 = vst.msk [vmem:[#allocation5 + $0xa0] sm:$0xff] %vm3484, %v3429
      %3506 = vst.msk [vmem:[#allocation5 + $0xa8] sm:$0xff] %vm3484, %v3431
      %3507 = vst.msk [vmem:[#allocation5 + $0xb0] sm:$0xff] %vm3484, %v3433
      %3508 = vst.msk [vmem:[#allocation5 + $0xb8] sm:$0xff] %vm3484, %v3435
      %3509 = vst.msk [vmem:[#allocation5 + $0xc0] sm:$0xff] %vm3484, %v3437
      %3510 = vst.msk [vmem:[#allocation5 + $0xc8] sm:$0xff] %vm3484, %v3439
      %3511 = vst.msk [vmem:[#allocation5 + $0xd0] sm:$0xff] %vm3484, %v3441
      %3512 = vst.msk [vmem:[#allocation5 + $0xd8] sm:$0xff] %vm3484, %v3443
      %3513 = vst.msk [vmem:[#allocation5 + $0xe0] sm:$0xff] %vm3484, %v3445
      %3514 = vst.msk [vmem:[#allocation5 + $0xe8] sm:$0xff] %vm3484, %v3447
      %3515 = vst.msk [vmem:[#allocation5 + $0xf0] sm:$0xff] %vm3484, %v3449
      %3516 = vst.msk [vmem:[#allocation5 + $0xf8] sm:$0xff] %vm3484, %v3451
      %v3517 = vld [vmem:[%s2842 + $0x1] sm:$0xff]
      %v3518 = vld [vmem:[%s2842 + $0x11] sm:$0xff]
      %v3519 = vld [vmem:[%s2842 + $0x21] sm:$0xff]
      %v3520 = vld [vmem:[%s2842 + $0x31] sm:$0xff]
      %v3521 = vld [vmem:[%s2842 + $0x41] sm:$0xff]
      %v3522 = vld [vmem:[%s2842 + $0x51] sm:$0xff]
      %v3523 = vld [vmem:[%s2842 + $0x61] sm:$0xff]
      %v3524 = vld [vmem:[%s2842 + $0x71] sm:$0xff]
      %v3525 = vld [vmem:[%s2842 + $0x81] sm:$0xff]
      %v3526 = vld [vmem:[%s2842 + $0x91] sm:$0xff]
      %v3527 = vld [vmem:[%s2842 + $0xa1] sm:$0xff]
      %v3528 = vld [vmem:[%s2842 + $0xb1] sm:$0xff]
      %v3529 = vld [vmem:[%s2842 + $0xc1] sm:$0xff]
      %v3530 = vld [vmem:[%s2842 + $0xd1] sm:$0xff]
      %v3531 = vld [vmem:[%s2842 + $0xe1] sm:$0xff]
      %v3532 = vld [vmem:[%s2842 + $0xf1] sm:$0xff]
      %v3533 = vld [vmem:[%s2842 + $0x101] sm:$0xff]
      %v3534 = vld [vmem:[%s2842 + $0x111] sm:$0xff]
      %v3535 = vld [vmem:[%s2842 + $0x121] sm:$0xff]
      %v3536 = vld [vmem:[%s2842 + $0x131] sm:$0xff]
      %v3537 = vld [vmem:[%s2842 + $0x141] sm:$0xff]
      %v3538 = vld [vmem:[%s2842 + $0x151] sm:$0xff]
      %v3539 = vld [vmem:[%s2842 + $0x161] sm:$0xff]
      %v3540 = vld [vmem:[%s2842 + $0x171] sm:$0xff]
      %v3541 = vld [vmem:[%s2842 + $0x181] sm:$0xff]
      %v3542 = vld [vmem:[%s2842 + $0x191] sm:$0xff]
      %v3543 = vld [vmem:[%s2842 + $0x1a1] sm:$0xff]
      %v3544 = vld [vmem:[%s2842 + $0x1b1] sm:$0xff]
      %v3545 = vld [vmem:[%s2842 + $0x1c1] sm:$0xff]
      %v3546 = vld [vmem:[%s2842 + $0x1d1] sm:$0xff]
      %v3547 = vld [vmem:[%s2842 + $0x1e1] sm:$0xff]
      %v3548 = vld [vmem:[%s2842 + $0x1f1] sm:$0xff]
      %3581 = vrot.lane.b32.xlu0 %v3517, 32
      %v3582 = vpop.permute.xlu0 %3581
      %3583 = vrot.lane.b32.xlu0 %v3518, 32
      %v3584 = vpop.permute.xlu0 %3583
      %3585 = vrot.lane.b32.xlu0 %v3519, 32
      %v3586 = vpop.permute.xlu0 %3585
      %3587 = vrot.lane.b32.xlu0 %v3520, 32
      %v3588 = vpop.permute.xlu0 %3587
      %3589 = vrot.lane.b32.xlu0 %v3521, 32
      %v3590 = vpop.permute.xlu0 %3589
      %3591 = vrot.lane.b32.xlu0 %v3522, 32
      %v3592 = vpop.permute.xlu0 %3591
      %3593 = vrot.lane.b32.xlu0 %v3523, 32
      %v3594 = vpop.permute.xlu0 %3593
      %3595 = vrot.lane.b32.xlu0 %v3524, 32
      %v3596 = vpop.permute.xlu0 %3595
      %3597 = vrot.lane.b32.xlu0 %v3525, 32
      %v3598 = vpop.permute.xlu0 %3597
      %3599 = vrot.lane.b32.xlu0 %v3526, 32
      %v3600 = vpop.permute.xlu0 %3599
      %3601 = vrot.lane.b32.xlu0 %v3527, 32
      %v3602 = vpop.permute.xlu0 %3601
      %3603 = vrot.lane.b32.xlu0 %v3528, 32
      %v3604 = vpop.permute.xlu0 %3603
      %3605 = vrot.lane.b32.xlu0 %v3529, 32
      %v3606 = vpop.permute.xlu0 %3605
      %3607 = vrot.lane.b32.xlu0 %v3530, 32
      %v3608 = vpop.permute.xlu0 %3607
      %3609 = vrot.lane.b32.xlu0 %v3531, 32
      %v3610 = vpop.permute.xlu0 %3609
      %3611 = vrot.lane.b32.xlu0 %v3532, 32
      %v3612 = vpop.permute.xlu0 %3611
      %3613 = vrot.lane.b32.xlu0 %v3533, 32
      %v3614 = vpop.permute.xlu0 %3613
      %3615 = vrot.lane.b32.xlu0 %v3534, 32
      %v3616 = vpop.permute.xlu0 %3615
      %3617 = vrot.lane.b32.xlu0 %v3535, 32
      %v3618 = vpop.permute.xlu0 %3617
      %3619 = vrot.lane.b32.xlu0 %v3536, 32
      %v3620 = vpop.permute.xlu0 %3619
      %3621 = vrot.lane.b32.xlu0 %v3537, 32
      %v3622 = vpop.permute.xlu0 %3621
      %3623 = vrot.lane.b32.xlu0 %v3538, 32
      %v3624 = vpop.permute.xlu0 %3623
      %3625 = vrot.lane.b32.xlu0 %v3539, 32
      %v3626 = vpop.permute.xlu0 %3625
      %3627 = vrot.lane.b32.xlu0 %v3540, 32
      %v3628 = vpop.permute.xlu0 %3627
      %3629 = vrot.lane.b32.xlu0 %v3541, 32
      %v3630 = vpop.permute.xlu0 %3629
      %3631 = vrot.lane.b32.xlu0 %v3542, 32
      %v3632 = vpop.permute.xlu0 %3631
      %3633 = vrot.lane.b32.xlu0 %v3543, 32
      %v3634 = vpop.permute.xlu0 %3633
      %3635 = vrot.lane.b32.xlu0 %v3544, 32
      %v3636 = vpop.permute.xlu0 %3635
      %3637 = vrot.lane.b32.xlu0 %v3545, 32
      %v3638 = vpop.permute.xlu0 %3637
      %3639 = vrot.lane.b32.xlu0 %v3546, 32
      %v3640 = vpop.permute.xlu0 %3639
      %3641 = vrot.lane.b32.xlu0 %v3547, 32
      %v3642 = vpop.permute.xlu0 %3641
      %3643 = vrot.lane.b32.xlu0 %v3548, 32
      %v3644 = vpop.permute.xlu0 %3643
      %vm3677 = vcmask 326912
      %3678 = vst.msk [vmem:[#allocation5] sm:$0xff] %vm3677, %v3582
      %3679 = vst.msk [vmem:[#allocation5 + $0x8] sm:$0xff] %vm3677, %v3584
      %3680 = vst.msk [vmem:[#allocation5 + $0x10] sm:$0xff] %vm3677, %v3586
      %3681 = vst.msk [vmem:[#allocation5 + $0x18] sm:$0xff] %vm3677, %v3588
      %3682 = vst.msk [vmem:[#allocation5 + $0x20] sm:$0xff] %vm3677, %v3590
      %3683 = vst.msk [vmem:[#allocation5 + $0x28] sm:$0xff] %vm3677, %v3592
      %3684 = vst.msk [vmem:[#allocation5 + $0x30] sm:$0xff] %vm3677, %v3594
      %3685 = vst.msk [vmem:[#allocation5 + $0x38] sm:$0xff] %vm3677, %v3596
      %3686 = vst.msk [vmem:[#allocation5 + $0x40] sm:$0xff] %vm3677, %v3598
      %3687 = vst.msk [vmem:[#allocation5 + $0x48] sm:$0xff] %vm3677, %v3600
      %3688 = vst.msk [vmem:[#allocation5 + $0x50] sm:$0xff] %vm3677, %v3602
      %3689 = vst.msk [vmem:[#allocation5 + $0x58] sm:$0xff] %vm3677, %v3604
      %3690 = vst.msk [vmem:[#allocation5 + $0x60] sm:$0xff] %vm3677, %v3606
      %3691 = vst.msk [vmem:[#allocation5 + $0x68] sm:$0xff] %vm3677, %v3608
      %3692 = vst.msk [vmem:[#allocation5 + $0x70] sm:$0xff] %vm3677, %v3610
      %3693 = vst.msk [vmem:[#allocation5 + $0x78] sm:$0xff] %vm3677, %v3612
      %3694 = vst.msk [vmem:[#allocation5 + $0x80] sm:$0xff] %vm3677, %v3614
      %3695 = vst.msk [vmem:[#allocation5 + $0x88] sm:$0xff] %vm3677, %v3616
      %3696 = vst.msk [vmem:[#allocation5 + $0x90] sm:$0xff] %vm3677, %v3618
      %3697 = vst.msk [vmem:[#allocation5 + $0x98] sm:$0xff] %vm3677, %v3620
      %3698 = vst.msk [vmem:[#allocation5 + $0xa0] sm:$0xff] %vm3677, %v3622
      %3699 = vst.msk [vmem:[#allocation5 + $0xa8] sm:$0xff] %vm3677, %v3624
      %3700 = vst.msk [vmem:[#allocation5 + $0xb0] sm:$0xff] %vm3677, %v3626
      %3701 = vst.msk [vmem:[#allocation5 + $0xb8] sm:$0xff] %vm3677, %v3628
      %3702 = vst.msk [vmem:[#allocation5 + $0xc0] sm:$0xff] %vm3677, %v3630
      %3703 = vst.msk [vmem:[#allocation5 + $0xc8] sm:$0xff] %vm3677, %v3632
      %3704 = vst.msk [vmem:[#allocation5 + $0xd0] sm:$0xff] %vm3677, %v3634
      %3705 = vst.msk [vmem:[#allocation5 + $0xd8] sm:$0xff] %vm3677, %v3636
      %3706 = vst.msk [vmem:[#allocation5 + $0xe0] sm:$0xff] %vm3677, %v3638
      %3707 = vst.msk [vmem:[#allocation5 + $0xe8] sm:$0xff] %vm3677, %v3640
      %3708 = vst.msk [vmem:[#allocation5 + $0xf0] sm:$0xff] %vm3677, %v3642
      %3709 = vst.msk [vmem:[#allocation5 + $0xf8] sm:$0xff] %vm3677, %v3644
      %v3710 = vld [vmem:[%s2842 + $0x2] sm:$0xff]
      %v3711 = vld [vmem:[%s2842 + $0x12] sm:$0xff]
      %v3712 = vld [vmem:[%s2842 + $0x22] sm:$0xff]
      %v3713 = vld [vmem:[%s2842 + $0x32] sm:$0xff]
      %v3714 = vld [vmem:[%s2842 + $0x42] sm:$0xff]
      %v3715 = vld [vmem:[%s2842 + $0x52] sm:$0xff]
      %v3716 = vld [vmem:[%s2842 + $0x62] sm:$0xff]
      %v3717 = vld [vmem:[%s2842 + $0x72] sm:$0xff]
      %v3718 = vld [vmem:[%s2842 + $0x82] sm:$0xff]
      %v3719 = vld [vmem:[%s2842 + $0x92] sm:$0xff]
      %v3720 = vld [vmem:[%s2842 + $0xa2] sm:$0xff]
      %v3721 = vld [vmem:[%s2842 + $0xb2] sm:$0xff]
      %v3722 = vld [vmem:[%s2842 + $0xc2] sm:$0xff]
      %v3723 = vld [vmem:[%s2842 + $0xd2] sm:$0xff]
      %v3724 = vld [vmem:[%s2842 + $0xe2] sm:$0xff]
      %v3725 = vld [vmem:[%s2842 + $0xf2] sm:$0xff]
      %v3726 = vld [vmem:[%s2842 + $0x102] sm:$0xff]
      %v3727 = vld [vmem:[%s2842 + $0x112] sm:$0xff]
      %v3728 = vld [vmem:[%s2842 + $0x122] sm:$0xff]
      %v3729 = vld [vmem:[%s2842 + $0x132] sm:$0xff]
      %v3730 = vld [vmem:[%s2842 + $0x142] sm:$0xff]
      %v3731 = vld [vmem:[%s2842 + $0x152] sm:$0xff]
      %v3732 = vld [vmem:[%s2842 + $0x162] sm:$0xff]
      %v3733 = vld [vmem:[%s2842 + $0x172] sm:$0xff]
      %v3734 = vld [vmem:[%s2842 + $0x182] sm:$0xff]
      %v3735 = vld [vmem:[%s2842 + $0x192] sm:$0xff]
      %v3736 = vld [vmem:[%s2842 + $0x1a2] sm:$0xff]
      %v3737 = vld [vmem:[%s2842 + $0x1b2] sm:$0xff]
      %v3738 = vld [vmem:[%s2842 + $0x1c2] sm:$0xff]
      %v3739 = vld [vmem:[%s2842 + $0x1d2] sm:$0xff]
      %v3740 = vld [vmem:[%s2842 + $0x1e2] sm:$0xff]
      %v3741 = vld [vmem:[%s2842 + $0x1f2] sm:$0xff]
      %3774 = vrot.lane.b32.xlu0 %v3710, 40
      %v3775 = vpop.permute.xlu0 %3774
      %3776 = vrot.lane.b32.xlu0 %v3711, 40
      %v3777 = vpop.permute.xlu0 %3776
      %3778 = vrot.lane.b32.xlu0 %v3712, 40
      %v3779 = vpop.permute.xlu0 %3778
      %3780 = vrot.lane.b32.xlu0 %v3713, 40
      %v3781 = vpop.permute.xlu0 %3780
      %3782 = vrot.lane.b32.xlu0 %v3714, 40
      %v3783 = vpop.permute.xlu0 %3782
      %3784 = vrot.lane.b32.xlu0 %v3715, 40
      %v3785 = vpop.permute.xlu0 %3784
      %3786 = vrot.lane.b32.xlu0 %v3716, 40
      %v3787 = vpop.permute.xlu0 %3786
      %3788 = vrot.lane.b32.xlu0 %v3717, 40
      %v3789 = vpop.permute.xlu0 %3788
      %3790 = vrot.lane.b32.xlu0 %v3718, 40
      %v3791 = vpop.permute.xlu0 %3790
      %3792 = vrot.lane.b32.xlu0 %v3719, 40
      %v3793 = vpop.permute.xlu0 %3792
      %3794 = vrot.lane.b32.xlu0 %v3720, 40
      %v3795 = vpop.permute.xlu0 %3794
      %3796 = vrot.lane.b32.xlu0 %v3721, 40
      %v3797 = vpop.permute.xlu0 %3796
      %3798 = vrot.lane.b32.xlu0 %v3722, 40
      %v3799 = vpop.permute.xlu0 %3798
      %3800 = vrot.lane.b32.xlu0 %v3723, 40
      %v3801 = vpop.permute.xlu0 %3800
      %3802 = vrot.lane.b32.xlu0 %v3724, 40
      %v3803 = vpop.permute.xlu0 %3802
      %3804 = vrot.lane.b32.xlu0 %v3725, 40
      %v3805 = vpop.permute.xlu0 %3804
      %3806 = vrot.lane.b32.xlu0 %v3726, 40
      %v3807 = vpop.permute.xlu0 %3806
      %3808 = vrot.lane.b32.xlu0 %v3727, 40
      %v3809 = vpop.permute.xlu0 %3808
      %3810 = vrot.lane.b32.xlu0 %v3728, 40
      %v3811 = vpop.permute.xlu0 %3810
      %3812 = vrot.lane.b32.xlu0 %v3729, 40
      %v3813 = vpop.permute.xlu0 %3812
      %3814 = vrot.lane.b32.xlu0 %v3730, 40
      %v3815 = vpop.permute.xlu0 %3814
      %3816 = vrot.lane.b32.xlu0 %v3731, 40
      %v3817 = vpop.permute.xlu0 %3816
      %3818 = vrot.lane.b32.xlu0 %v3732, 40
      %v3819 = vpop.permute.xlu0 %3818
      %3820 = vrot.lane.b32.xlu0 %v3733, 40
      %v3821 = vpop.permute.xlu0 %3820
      %3822 = vrot.lane.b32.xlu0 %v3734, 40
      %v3823 = vpop.permute.xlu0 %3822
      %3824 = vrot.lane.b32.xlu0 %v3735, 40
      %v3825 = vpop.permute.xlu0 %3824
      %3826 = vrot.lane.b32.xlu0 %v3736, 40
      %v3827 = vpop.permute.xlu0 %3826
      %3828 = vrot.lane.b32.xlu0 %v3737, 40
      %v3829 = vpop.permute.xlu0 %3828
      %3830 = vrot.lane.b32.xlu0 %v3738, 40
      %v3831 = vpop.permute.xlu0 %3830
      %3832 = vrot.lane.b32.xlu0 %v3739, 40
      %v3833 = vpop.permute.xlu0 %3832
      %3834 = vrot.lane.b32.xlu0 %v3740, 40
      %v3835 = vpop.permute.xlu0 %3834
      %3836 = vrot.lane.b32.xlu0 %v3741, 40
      %v3837 = vpop.permute.xlu0 %3836
      %vm3870 = vcmask 392512
      %3871 = vst.msk [vmem:[#allocation5] sm:$0xff] %vm3870, %v3775
      %3872 = vst.msk [vmem:[#allocation5 + $0x8] sm:$0xff] %vm3870, %v3777
      %3873 = vst.msk [vmem:[#allocation5 + $0x10] sm:$0xff] %vm3870, %v3779
      %3874 = vst.msk [vmem:[#allocation5 + $0x18] sm:$0xff] %vm3870, %v3781
      %3875 = vst.msk [vmem:[#allocation5 + $0x20] sm:$0xff] %vm3870, %v3783
      %3876 = vst.msk [vmem:[#allocation5 + $0x28] sm:$0xff] %vm3870, %v3785
      %3877 = vst.msk [vmem:[#allocation5 + $0x30] sm:$0xff] %vm3870, %v3787
      %3878 = vst.msk [vmem:[#allocation5 + $0x38] sm:$0xff] %vm3870, %v3789
      %3879 = vst.msk [vmem:[#allocation5 + $0x40] sm:$0xff] %vm3870, %v3791
      %3880 = vst.msk [vmem:[#allocation5 + $0x48] sm:$0xff] %vm3870, %v3793
      %3881 = vst.msk [vmem:[#allocation5 + $0x50] sm:$0xff] %vm3870, %v3795
      %3882 = vst.msk [vmem:[#allocation5 + $0x58] sm:$0xff] %vm3870, %v3797
      %3883 = vst.msk [vmem:[#allocation5 + $0x60] sm:$0xff] %vm3870, %v3799
      %3884 = vst.msk [vmem:[#allocation5 + $0x68] sm:$0xff] %vm3870, %v3801
      %3885 = vst.msk [vmem:[#allocation5 + $0x70] sm:$0xff] %vm3870, %v3803
      %3886 = vst.msk [vmem:[#allocation5 + $0x78] sm:$0xff] %vm3870, %v3805
      %3887 = vst.msk [vmem:[#allocation5 + $0x80] sm:$0xff] %vm3870, %v3807
      %3888 = vst.msk [vmem:[#allocation5 + $0x88] sm:$0xff] %vm3870, %v3809
      %3889 = vst.msk [vmem:[#allocation5 + $0x90] sm:$0xff] %vm3870, %v3811
      %3890 = vst.msk [vmem:[#allocation5 + $0x98] sm:$0xff] %vm3870, %v3813
      %3891 = vst.msk [vmem:[#allocation5 + $0xa0] sm:$0xff] %vm3870, %v3815
      %3892 = vst.msk [vmem:[#allocation5 + $0xa8] sm:$0xff] %vm3870, %v3817
      %3893 = vst.msk [vmem:[#allocation5 + $0xb0] sm:$0xff] %vm3870, %v3819
      %3894 = vst.msk [vmem:[#allocation5 + $0xb8] sm:$0xff] %vm3870, %v3821
      %3895 = vst.msk [vmem:[#allocation5 + $0xc0] sm:$0xff] %vm3870, %v3823
      %3896 = vst.msk [vmem:[#allocation5 + $0xc8] sm:$0xff] %vm3870, %v3825
      %3897 = vst.msk [vmem:[#allocation5 + $0xd0] sm:$0xff] %vm3870, %v3827
      %3898 = vst.msk [vmem:[#allocation5 + $0xd8] sm:$0xff] %vm3870, %v3829
      %3899 = vst.msk [vmem:[#allocation5 + $0xe0] sm:$0xff] %vm3870, %v3831
      %3900 = vst.msk [vmem:[#allocation5 + $0xe8] sm:$0xff] %vm3870, %v3833
      %3901 = vst.msk [vmem:[#allocation5 + $0xf0] sm:$0xff] %vm3870, %v3835
      %3902 = vst.msk [vmem:[#allocation5 + $0xf8] sm:$0xff] %vm3870, %v3837
      %s3903 = scalar_lea.vmem [#allocation3], 32
      %v3904 = vld [vmem:[%s3903] sm:$0xff]
      %v3905 = vld [vmem:[%s3903 + $0x10] sm:$0xff]
      %v3906 = vld [vmem:[%s3903 + $0x20] sm:$0xff]
      %v3907 = vld [vmem:[%s3903 + $0x30] sm:$0xff]
      %v3908 = vld [vmem:[%s3903 + $0x40] sm:$0xff]
      %v3909 = vld [vmem:[%s3903 + $0x50] sm:$0xff]
      %v3910 = vld [vmem:[%s3903 + $0x60] sm:$0xff]
      %v3911 = vld [vmem:[%s3903 + $0x70] sm:$0xff]
      %v3912 = vld [vmem:[%s3903 + $0x80] sm:$0xff]
      %v3913 = vld [vmem:[%s3903 + $0x90] sm:$0xff]
      %v3914 = vld [vmem:[%s3903 + $0xa0] sm:$0xff]
      %v3915 = vld [vmem:[%s3903 + $0xb0] sm:$0xff]
      %v3916 = vld [vmem:[%s3903 + $0xc0] sm:$0xff]
      %v3917 = vld [vmem:[%s3903 + $0xd0] sm:$0xff]
      %v3918 = vld [vmem:[%s3903 + $0xe0] sm:$0xff]
      %v3919 = vld [vmem:[%s3903 + $0xf0] sm:$0xff]
      %v3920 = vld [vmem:[%s3903 + $0x100] sm:$0xff]
      %v3921 = vld [vmem:[%s3903 + $0x110] sm:$0xff]
      %v3922 = vld [vmem:[%s3903 + $0x120] sm:$0xff]
      %v3923 = vld [vmem:[%s3903 + $0x130] sm:$0xff]
      %v3924 = vld [vmem:[%s3903 + $0x140] sm:$0xff]
      %v3925 = vld [vmem:[%s3903 + $0x150] sm:$0xff]
      %v3926 = vld [vmem:[%s3903 + $0x160] sm:$0xff]
      %v3927 = vld [vmem:[%s3903 + $0x170] sm:$0xff]
      %v3928 = vld [vmem:[%s3903 + $0x180] sm:$0xff]
      %v3929 = vld [vmem:[%s3903 + $0x190] sm:$0xff]
      %v3930 = vld [vmem:[%s3903 + $0x1a0] sm:$0xff]
      %v3931 = vld [vmem:[%s3903 + $0x1b0] sm:$0xff]
      %v3932 = vld [vmem:[%s3903 + $0x1c0] sm:$0xff]
      %v3933 = vld [vmem:[%s3903 + $0x1d0] sm:$0xff]
      %v3934 = vld [vmem:[%s3903 + $0x1e0] sm:$0xff]
      %v3935 = vld [vmem:[%s3903 + $0x1f0] sm:$0xff]
      %3968 = vrot.lane.b32.xlu0 %v3904, 48
      %v3969 = vpop.permute.xlu0 %3968
      %3970 = vrot.lane.b32.xlu0 %v3905, 48
      %v3971 = vpop.permute.xlu0 %3970
      %3972 = vrot.lane.b32.xlu0 %v3906, 48
      %v3973 = vpop.permute.xlu0 %3972
      %3974 = vrot.lane.b32.xlu0 %v3907, 48
      %v3975 = vpop.permute.xlu0 %3974
      %3976 = vrot.lane.b32.xlu0 %v3908, 48
      %v3977 = vpop.permute.xlu0 %3976
      %3978 = vrot.lane.b32.xlu0 %v3909, 48
      %v3979 = vpop.permute.xlu0 %3978
      %3980 = vrot.lane.b32.xlu0 %v3910, 48
      %v3981 = vpop.permute.xlu0 %3980
      %3982 = vrot.lane.b32.xlu0 %v3911, 48
      %v3983 = vpop.permute.xlu0 %3982
      %3984 = vrot.lane.b32.xlu0 %v3912, 48
      %v3985 = vpop.permute.xlu0 %3984
      %3986 = vrot.lane.b32.xlu0 %v3913, 48
      %v3987 = vpop.permute.xlu0 %3986
      %3988 = vrot.lane.b32.xlu0 %v3914, 48
      %v3989 = vpop.permute.xlu0 %3988
      %3990 = vrot.lane.b32.xlu0 %v3915, 48
      %v3991 = vpop.permute.xlu0 %3990
      %3992 = vrot.lane.b32.xlu0 %v3916, 48
      %v3993 = vpop.permute.xlu0 %3992
      %3994 = vrot.lane.b32.xlu0 %v3917, 48
      %v3995 = vpop.permute.xlu0 %3994
      %3996 = vrot.lane.b32.xlu0 %v3918, 48
      %v3997 = vpop.permute.xlu0 %3996
      %3998 = vrot.lane.b32.xlu0 %v3919, 48
      %v3999 = vpop.permute.xlu0 %3998
      %4000 = vrot.lane.b32.xlu0 %v3920, 48
      %v4001 = vpop.permute.xlu0 %4000
      %4002 = vrot.lane.b32.xlu0 %v3921, 48
      %v4003 = vpop.permute.xlu0 %4002
      %4004 = vrot.lane.b32.xlu0 %v3922, 48
      %v4005 = vpop.permute.xlu0 %4004
      %4006 = vrot.lane.b32.xlu0 %v3923, 48
      %v4007 = vpop.permute.xlu0 %4006
      %4008 = vrot.lane.b32.xlu0 %v3924, 48
      %v4009 = vpop.permute.xlu0 %4008
      %4010 = vrot.lane.b32.xlu0 %v3925, 48
      %v4011 = vpop.permute.xlu0 %4010
      %4012 = vrot.lane.b32.xlu0 %v3926, 48
      %v4013 = vpop.permute.xlu0 %4012
      %4014 = vrot.lane.b32.xlu0 %v3927, 48
      %v4015 = vpop.permute.xlu0 %4014
      %4016 = vrot.lane.b32.xlu0 %v3928, 48
      %v4017 = vpop.permute.xlu0 %4016
      %4018 = vrot.lane.b32.xlu0 %v3929, 48
      %v4019 = vpop.permute.xlu0 %4018
      %4020 = vrot.lane.b32.xlu0 %v3930, 48
      %v4021 = vpop.permute.xlu0 %4020
      %4022 = vrot.lane.b32.xlu0 %v3931, 48
      %v4023 = vpop.permute.xlu0 %4022
      %4024 = vrot.lane.b32.xlu0 %v3932, 48
      %v4025 = vpop.permute.xlu0 %4024
      %4026 = vrot.lane.b32.xlu0 %v3933, 48
      %v4027 = vpop.permute.xlu0 %4026
      %4028 = vrot.lane.b32.xlu0 %v3934, 48
      %v4029 = vpop.permute.xlu0 %4028
      %4030 = vrot.lane.b32.xlu0 %v3935, 48
      %v4031 = vpop.permute.xlu0 %4030
      %vm4064 = vcmask 458112
      %4065 = vst.msk [vmem:[#allocation5] sm:$0xff] %vm4064, %v3969
      %4066 = vst.msk [vmem:[#allocation5 + $0x8] sm:$0xff] %vm4064, %v3971
      %4067 = vst.msk [vmem:[#allocation5 + $0x10] sm:$0xff] %vm4064, %v3973
      %4068 = vst.msk [vmem:[#allocation5 + $0x18] sm:$0xff] %vm4064, %v3975
      %4069 = vst.msk [vmem:[#allocation5 + $0x20] sm:$0xff] %vm4064, %v3977
      %4070 = vst.msk [vmem:[#allocation5 + $0x28] sm:$0xff] %vm4064, %v3979
      %4071 = vst.msk [vmem:[#allocation5 + $0x30] sm:$0xff] %vm4064, %v3981
      %4072 = vst.msk [vmem:[#allocation5 + $0x38] sm:$0xff] %vm4064, %v3983
      %4073 = vst.msk [vmem:[#allocation5 + $0x40] sm:$0xff] %vm4064, %v3985
      %4074 = vst.msk [vmem:[#allocation5 + $0x48] sm:$0xff] %vm4064, %v3987
      %4075 = vst.msk [vmem:[#allocation5 + $0x50] sm:$0xff] %vm4064, %v3989
      %4076 = vst.msk [vmem:[#allocation5 + $0x58] sm:$0xff] %vm4064, %v3991
      %4077 = vst.msk [vmem:[#allocation5 + $0x60] sm:$0xff] %vm4064, %v3993
      %4078 = vst.msk [vmem:[#allocation5 + $0x68] sm:$0xff] %vm4064, %v3995
      %4079 = vst.msk [vmem:[#allocation5 + $0x70] sm:$0xff] %vm4064, %v3997
      %4080 = vst.msk [vmem:[#allocation5 + $0x78] sm:$0xff] %vm4064, %v3999
      %4081 = vst.msk [vmem:[#allocation5 + $0x80] sm:$0xff] %vm4064, %v4001
      %4082 = vst.msk [vmem:[#allocation5 + $0x88] sm:$0xff] %vm4064, %v4003
      %4083 = vst.msk [vmem:[#allocation5 + $0x90] sm:$0xff] %vm4064, %v4005
      %4084 = vst.msk [vmem:[#allocation5 + $0x98] sm:$0xff] %vm4064, %v4007
      %4085 = vst.msk [vmem:[#allocation5 + $0xa0] sm:$0xff] %vm4064, %v4009
      %4086 = vst.msk [vmem:[#allocation5 + $0xa8] sm:$0xff] %vm4064, %v4011
      %4087 = vst.msk [vmem:[#allocation5 + $0xb0] sm:$0xff] %vm4064, %v4013
      %4088 = vst.msk [vmem:[#allocation5 + $0xb8] sm:$0xff] %vm4064, %v4015
      %4089 = vst.msk [vmem:[#allocation5 + $0xc0] sm:$0xff] %vm4064, %v4017
      %4090 = vst.msk [vmem:[#allocation5 + $0xc8] sm:$0xff] %vm4064, %v4019
      %4091 = vst.msk [vmem:[#allocation5 + $0xd0] sm:$0xff] %vm4064, %v4021
      %4092 = vst.msk [vmem:[#allocation5 + $0xd8] sm:$0xff] %vm4064, %v4023
      %4093 = vst.msk [vmem:[#allocation5 + $0xe0] sm:$0xff] %vm4064, %v4025
      %4094 = vst.msk [vmem:[#allocation5 + $0xe8] sm:$0xff] %vm4064, %v4027
      %4095 = vst.msk [vmem:[#allocation5 + $0xf0] sm:$0xff] %vm4064, %v4029
      %4096 = vst.msk [vmem:[#allocation5 + $0xf8] sm:$0xff] %vm4064, %v4031
      %v4097 = vld [vmem:[%s3903 + $0x1] sm:$0xff]
      %v4098 = vld [vmem:[%s3903 + $0x11] sm:$0xff]
      %v4099 = vld [vmem:[%s3903 + $0x21] sm:$0xff]
      %v4100 = vld [vmem:[%s3903 + $0x31] sm:$0xff]
      %v4101 = vld [vmem:[%s3903 + $0x41] sm:$0xff]
      %v4102 = vld [vmem:[%s3903 + $0x51] sm:$0xff]
      %v4103 = vld [vmem:[%s3903 + $0x61] sm:$0xff]
      %v4104 = vld [vmem:[%s3903 + $0x71] sm:$0xff]
      %v4105 = vld [vmem:[%s3903 + $0x81] sm:$0xff]
      %v4106 = vld [vmem:[%s3903 + $0x91] sm:$0xff]
      %v4107 = vld [vmem:[%s3903 + $0xa1] sm:$0xff]
      %v4108 = vld [vmem:[%s3903 + $0xb1] sm:$0xff]
      %v4109 = vld [vmem:[%s3903 + $0xc1] sm:$0xff]
      %v4110 = vld [vmem:[%s3903 + $0xd1] sm:$0xff]
      %v4111 = vld [vmem:[%s3903 + $0xe1] sm:$0xff]
      %v4112 = vld [vmem:[%s3903 + $0xf1] sm:$0xff]
      %v4113 = vld [vmem:[%s3903 + $0x101] sm:$0xff]
      %v4114 = vld [vmem:[%s3903 + $0x111] sm:$0xff]
      %v4115 = vld [vmem:[%s3903 + $0x121] sm:$0xff]
      %v4116 = vld [vmem:[%s3903 + $0x131] sm:$0xff]
      %v4117 = vld [vmem:[%s3903 + $0x141] sm:$0xff]
      %v4118 = vld [vmem:[%s3903 + $0x151] sm:$0xff]
      %v4119 = vld [vmem:[%s3903 + $0x161] sm:$0xff]
      %v4120 = vld [vmem:[%s3903 + $0x171] sm:$0xff]
      %v4121 = vld [vmem:[%s3903 + $0x181] sm:$0xff]
      %v4122 = vld [vmem:[%s3903 + $0x191] sm:$0xff]
      %v4123 = vld [vmem:[%s3903 + $0x1a1] sm:$0xff]
      %v4124 = vld [vmem:[%s3903 + $0x1b1] sm:$0xff]
      %v4125 = vld [vmem:[%s3903 + $0x1c1] sm:$0xff]
      %v4126 = vld [vmem:[%s3903 + $0x1d1] sm:$0xff]
      %v4127 = vld [vmem:[%s3903 + $0x1e1] sm:$0xff]
      %v4128 = vld [vmem:[%s3903 + $0x1f1] sm:$0xff]
      %4161 = vrot.lane.b32.xlu0 %v4097, 56
      %v4162 = vpop.permute.xlu0 %4161
      %4163 = vrot.lane.b32.xlu0 %v4098, 56
      %v4164 = vpop.permute.xlu0 %4163
      %4165 = vrot.lane.b32.xlu0 %v4099, 56
      %v4166 = vpop.permute.xlu0 %4165
      %4167 = vrot.lane.b32.xlu0 %v4100, 56
      %v4168 = vpop.permute.xlu0 %4167
      %4169 = vrot.lane.b32.xlu0 %v4101, 56
      %v4170 = vpop.permute.xlu0 %4169
      %4171 = vrot.lane.b32.xlu0 %v4102, 56
      %v4172 = vpop.permute.xlu0 %4171
      %4173 = vrot.lane.b32.xlu0 %v4103, 56
      %v4174 = vpop.permute.xlu0 %4173
      %4175 = vrot.lane.b32.xlu0 %v4104, 56
      %v4176 = vpop.permute.xlu0 %4175
      %4177 = vrot.lane.b32.xlu0 %v4105, 56
      %v4178 = vpop.permute.xlu0 %4177
      %4179 = vrot.lane.b32.xlu0 %v4106, 56
      %v4180 = vpop.permute.xlu0 %4179
      %4181 = vrot.lane.b32.xlu0 %v4107, 56
      %v4182 = vpop.permute.xlu0 %4181
      %4183 = vrot.lane.b32.xlu0 %v4108, 56
      %v4184 = vpop.permute.xlu0 %4183
      %4185 = vrot.lane.b32.xlu0 %v4109, 56
      %v4186 = vpop.permute.xlu0 %4185
      %4187 = vrot.lane.b32.xlu0 %v4110, 56
      %v4188 = vpop.permute.xlu0 %4187
      %4189 = vrot.lane.b32.xlu0 %v4111, 56
      %v4190 = vpop.permute.xlu0 %4189
      %4191 = vrot.lane.b32.xlu0 %v4112, 56
      %v4192 = vpop.permute.xlu0 %4191
      %4193 = vrot.lane.b32.xlu0 %v4113, 56
      %v4194 = vpop.permute.xlu0 %4193
      %4195 = vrot.lane.b32.xlu0 %v4114, 56
      %v4196 = vpop.permute.xlu0 %4195
      %4197 = vrot.lane.b32.xlu0 %v4115, 56
      %v4198 = vpop.permute.xlu0 %4197
      %4199 = vrot.lane.b32.xlu0 %v4116, 56
      %v4200 = vpop.permute.xlu0 %4199
      %4201 = vrot.lane.b32.xlu0 %v4117, 56
      %v4202 = vpop.permute.xlu0 %4201
      %4203 = vrot.lane.b32.xlu0 %v4118, 56
      %v4204 = vpop.permute.xlu0 %4203
      %4205 = vrot.lane.b32.xlu0 %v4119, 56
      %v4206 = vpop.permute.xlu0 %4205
      %4207 = vrot.lane.b32.xlu0 %v4120, 56
      %v4208 = vpop.permute.xlu0 %4207
      %4209 = vrot.lane.b32.xlu0 %v4121, 56
      %v4210 = vpop.permute.xlu0 %4209
      %4211 = vrot.lane.b32.xlu0 %v4122, 56
      %v4212 = vpop.permute.xlu0 %4211
      %4213 = vrot.lane.b32.xlu0 %v4123, 56
      %v4214 = vpop.permute.xlu0 %4213
      %4215 = vrot.lane.b32.xlu0 %v4124, 56
      %v4216 = vpop.permute.xlu0 %4215
      %4217 = vrot.lane.b32.xlu0 %v4125, 56
      %v4218 = vpop.permute.xlu0 %4217
      %4219 = vrot.lane.b32.xlu0 %v4126, 56
      %v4220 = vpop.permute.xlu0 %4219
      %4221 = vrot.lane.b32.xlu0 %v4127, 56
      %v4222 = vpop.permute.xlu0 %4221
      %4223 = vrot.lane.b32.xlu0 %v4128, 56
      %v4224 = vpop.permute.xlu0 %4223
      %vm4257 = vcmask 523712
      %4258 = vst.msk [vmem:[#allocation5] sm:$0xff] %vm4257, %v4162
      %4259 = vst.msk [vmem:[#allocation5 + $0x8] sm:$0xff] %vm4257, %v4164
      %4260 = vst.msk [vmem:[#allocation5 + $0x10] sm:$0xff] %vm4257, %v4166
      %4261 = vst.msk [vmem:[#allocation5 + $0x18] sm:$0xff] %vm4257, %v4168
      %4262 = vst.msk [vmem:[#allocation5 + $0x20] sm:$0xff] %vm4257, %v4170
      %4263 = vst.msk [vmem:[#allocation5 + $0x28] sm:$0xff] %vm4257, %v4172
      %4264 = vst.msk [vmem:[#allocation5 + $0x30] sm:$0xff] %vm4257, %v4174
      %4265 = vst.msk [vmem:[#allocation5 + $0x38] sm:$0xff] %vm4257, %v4176
      %4266 = vst.msk [vmem:[#allocation5 + $0x40] sm:$0xff] %vm4257, %v4178
      %4267 = vst.msk [vmem:[#allocation5 + $0x48] sm:$0xff] %vm4257, %v4180
      %4268 = vst.msk [vmem:[#allocation5 + $0x50] sm:$0xff] %vm4257, %v4182
      %4269 = vst.msk [vmem:[#allocation5 + $0x58] sm:$0xff] %vm4257, %v4184
      %4270 = vst.msk [vmem:[#allocation5 + $0x60] sm:$0xff] %vm4257, %v4186
      %4271 = vst.msk [vmem:[#allocation5 + $0x68] sm:$0xff] %vm4257, %v4188
      %4272 = vst.msk [vmem:[#allocation5 + $0x70] sm:$0xff] %vm4257, %v4190
      %4273 = vst.msk [vmem:[#allocation5 + $0x78] sm:$0xff] %vm4257, %v4192
      %4274 = vst.msk [vmem:[#allocation5 + $0x80] sm:$0xff] %vm4257, %v4194
      %4275 = vst.msk [vmem:[#allocation5 + $0x88] sm:$0xff] %vm4257, %v4196
      %4276 = vst.msk [vmem:[#allocation5 + $0x90] sm:$0xff] %vm4257, %v4198
      %4277 = vst.msk [vmem:[#allocation5 + $0x98] sm:$0xff] %vm4257, %v4200
      %4278 = vst.msk [vmem:[#allocation5 + $0xa0] sm:$0xff] %vm4257, %v4202
      %4279 = vst.msk [vmem:[#allocation5 + $0xa8] sm:$0xff] %vm4257, %v4204
      %4280 = vst.msk [vmem:[#allocation5 + $0xb0] sm:$0xff] %vm4257, %v4206
      %4281 = vst.msk [vmem:[#allocation5 + $0xb8] sm:$0xff] %vm4257, %v4208
      %4282 = vst.msk [vmem:[#allocation5 + $0xc0] sm:$0xff] %vm4257, %v4210
      %4283 = vst.msk [vmem:[#allocation5 + $0xc8] sm:$0xff] %vm4257, %v4212
      %4284 = vst.msk [vmem:[#allocation5 + $0xd0] sm:$0xff] %vm4257, %v4214
      %4285 = vst.msk [vmem:[#allocation5 + $0xd8] sm:$0xff] %vm4257, %v4216
      %4286 = vst.msk [vmem:[#allocation5 + $0xe0] sm:$0xff] %vm4257, %v4218
      %4287 = vst.msk [vmem:[#allocation5 + $0xe8] sm:$0xff] %vm4257, %v4220
      %4288 = vst.msk [vmem:[#allocation5 + $0xf0] sm:$0xff] %vm4257, %v4222
      %4289 = vst.msk [vmem:[#allocation5 + $0xf8] sm:$0xff] %vm4257, %v4224
      %v4290 = vld [vmem:[%s3903 + $0x2] sm:$0xff]
      %v4291 = vld [vmem:[%s3903 + $0x12] sm:$0xff]
      %v4292 = vld [vmem:[%s3903 + $0x22] sm:$0xff]
      %v4293 = vld [vmem:[%s3903 + $0x32] sm:$0xff]
      %v4294 = vld [vmem:[%s3903 + $0x42] sm:$0xff]
      %v4295 = vld [vmem:[%s3903 + $0x52] sm:$0xff]
      %v4296 = vld [vmem:[%s3903 + $0x62] sm:$0xff]
      %v4297 = vld [vmem:[%s3903 + $0x72] sm:$0xff]
      %v4298 = vld [vmem:[%s3903 + $0x82] sm:$0xff]
      %v4299 = vld [vmem:[%s3903 + $0x92] sm:$0xff]
      %v4300 = vld [vmem:[%s3903 + $0xa2] sm:$0xff]
      %v4301 = vld [vmem:[%s3903 + $0xb2] sm:$0xff]
      %v4302 = vld [vmem:[%s3903 + $0xc2] sm:$0xff]
      %v4303 = vld [vmem:[%s3903 + $0xd2] sm:$0xff]
      %v4304 = vld [vmem:[%s3903 + $0xe2] sm:$0xff]
      %v4305 = vld [vmem:[%s3903 + $0xf2] sm:$0xff]
      %v4306 = vld [vmem:[%s3903 + $0x102] sm:$0xff]
      %v4307 = vld [vmem:[%s3903 + $0x112] sm:$0xff]
      %v4308 = vld [vmem:[%s3903 + $0x122] sm:$0xff]
      %v4309 = vld [vmem:[%s3903 + $0x132] sm:$0xff]
      %v4310 = vld [vmem:[%s3903 + $0x142] sm:$0xff]
      %v4311 = vld [vmem:[%s3903 + $0x152] sm:$0xff]
      %v4312 = vld [vmem:[%s3903 + $0x162] sm:$0xff]
      %v4313 = vld [vmem:[%s3903 + $0x172] sm:$0xff]
      %v4314 = vld [vmem:[%s3903 + $0x182] sm:$0xff]
      %v4315 = vld [vmem:[%s3903 + $0x192] sm:$0xff]
      %v4316 = vld [vmem:[%s3903 + $0x1a2] sm:$0xff]
      %v4317 = vld [vmem:[%s3903 + $0x1b2] sm:$0xff]
      %v4318 = vld [vmem:[%s3903 + $0x1c2] sm:$0xff]
      %v4319 = vld [vmem:[%s3903 + $0x1d2] sm:$0xff]
      %v4320 = vld [vmem:[%s3903 + $0x1e2] sm:$0xff]
      %v4321 = vld [vmem:[%s3903 + $0x1f2] sm:$0xff]
      %4354 = vrot.lane.b32.xlu0 %v4290, 64
      %v4355 = vpop.permute.xlu0 %4354
      %4356 = vrot.lane.b32.xlu0 %v4291, 64
      %v4357 = vpop.permute.xlu0 %4356
      %4358 = vrot.lane.b32.xlu0 %v4292, 64
      %v4359 = vpop.permute.xlu0 %4358
      %4360 = vrot.lane.b32.xlu0 %v4293, 64
      %v4361 = vpop.permute.xlu0 %4360
      %4362 = vrot.lane.b32.xlu0 %v4294, 64
      %v4363 = vpop.permute.xlu0 %4362
      %4364 = vrot.lane.b32.xlu0 %v4295, 64
      %v4365 = vpop.permute.xlu0 %4364
      %4366 = vrot.lane.b32.xlu0 %v4296, 64
      %v4367 = vpop.permute.xlu0 %4366
      %4368 = vrot.lane.b32.xlu0 %v4297, 64
      %v4369 = vpop.permute.xlu0 %4368
      %4370 = vrot.lane.b32.xlu0 %v4298, 64
      %v4371 = vpop.permute.xlu0 %4370
      %4372 = vrot.lane.b32.xlu0 %v4299, 64
      %v4373 = vpop.permute.xlu0 %4372
      %4374 = vrot.lane.b32.xlu0 %v4300, 64
      %v4375 = vpop.permute.xlu0 %4374
      %4376 = vrot.lane.b32.xlu0 %v4301, 64
      %v4377 = vpop.permute.xlu0 %4376
      %4378 = vrot.lane.b32.xlu0 %v4302, 64
      %v4379 = vpop.permute.xlu0 %4378
      %4380 = vrot.lane.b32.xlu0 %v4303, 64
      %v4381 = vpop.permute.xlu0 %4380
      %4382 = vrot.lane.b32.xlu0 %v4304, 64
      %v4383 = vpop.permute.xlu0 %4382
      %4384 = vrot.lane.b32.xlu0 %v4305, 64
      %v4385 = vpop.permute.xlu0 %4384
      %4386 = vrot.lane.b32.xlu0 %v4306, 64
      %v4387 = vpop.permute.xlu0 %4386
      %4388 = vrot.lane.b32.xlu0 %v4307, 64
      %v4389 = vpop.permute.xlu0 %4388
      %4390 = vrot.lane.b32.xlu0 %v4308, 64
      %v4391 = vpop.permute.xlu0 %4390
      %4392 = vrot.lane.b32.xlu0 %v4309, 64
      %v4393 = vpop.permute.xlu0 %4392
      %4394 = vrot.lane.b32.xlu0 %v4310, 64
      %v4395 = vpop.permute.xlu0 %4394
      %4396 = vrot.lane.b32.xlu0 %v4311, 64
      %v4397 = vpop.permute.xlu0 %4396
      %4398 = vrot.lane.b32.xlu0 %v4312, 64
      %v4399 = vpop.permute.xlu0 %4398
      %4400 = vrot.lane.b32.xlu0 %v4313, 64
      %v4401 = vpop.permute.xlu0 %4400
      %4402 = vrot.lane.b32.xlu0 %v4314, 64
      %v4403 = vpop.permute.xlu0 %4402
      %4404 = vrot.lane.b32.xlu0 %v4315, 64
      %v4405 = vpop.permute.xlu0 %4404
      %4406 = vrot.lane.b32.xlu0 %v4316, 64
      %v4407 = vpop.permute.xlu0 %4406
      %4408 = vrot.lane.b32.xlu0 %v4317, 64
      %v4409 = vpop.permute.xlu0 %4408
      %4410 = vrot.lane.b32.xlu0 %v4318, 64
      %v4411 = vpop.permute.xlu0 %4410
      %4412 = vrot.lane.b32.xlu0 %v4319, 64
      %v4413 = vpop.permute.xlu0 %4412
      %4414 = vrot.lane.b32.xlu0 %v4320, 64
      %v4415 = vpop.permute.xlu0 %4414
      %4416 = vrot.lane.b32.xlu0 %v4321, 64
      %v4417 = vpop.permute.xlu0 %4416
      %vm4450 = vcmask 589312
      %4451 = vst.msk [vmem:[#allocation5] sm:$0xff] %vm4450, %v4355
      %4452 = vst.msk [vmem:[#allocation5 + $0x8] sm:$0xff] %vm4450, %v4357
      %4453 = vst.msk [vmem:[#allocation5 + $0x10] sm:$0xff] %vm4450, %v4359
      %4454 = vst.msk [vmem:[#allocation5 + $0x18] sm:$0xff] %vm4450, %v4361
      %4455 = vst.msk [vmem:[#allocation5 + $0x20] sm:$0xff] %vm4450, %v4363
      %4456 = vst.msk [vmem:[#allocation5 + $0x28] sm:$0xff] %vm4450, %v4365
      %4457 = vst.msk [vmem:[#allocation5 + $0x30] sm:$0xff] %vm4450, %v4367
      %4458 = vst.msk [vmem:[#allocation5 + $0x38] sm:$0xff] %vm4450, %v4369
      %4459 = vst.msk [vmem:[#allocation5 + $0x40] sm:$0xff] %vm4450, %v4371
      %4460 = vst.msk [vmem:[#allocation5 + $0x48] sm:$0xff] %vm4450, %v4373
      %4461 = vst.msk [vmem:[#allocation5 + $0x50] sm:$0xff] %vm4450, %v4375
      %4462 = vst.msk [vmem:[#allocation5 + $0x58] sm:$0xff] %vm4450, %v4377
      %4463 = vst.msk [vmem:[#allocation5 + $0x60] sm:$0xff] %vm4450, %v4379
      %4464 = vst.msk [vmem:[#allocation5 + $0x68] sm:$0xff] %vm4450, %v4381
      %4465 = vst.msk [vmem:[#allocation5 + $0x70] sm:$0xff] %vm4450, %v4383
      %4466 = vst.msk [vmem:[#allocation5 + $0x78] sm:$0xff] %vm4450, %v4385
      %4467 = vst.msk [vmem:[#allocation5 + $0x80] sm:$0xff] %vm4450, %v4387
      %4468 = vst.msk [vmem:[#allocation5 + $0x88] sm:$0xff] %vm4450, %v4389
      %4469 = vst.msk [vmem:[#allocation5 + $0x90] sm:$0xff] %vm4450, %v4391
      %4470 = vst.msk [vmem:[#allocation5 + $0x98] sm:$0xff] %vm4450, %v4393
      %4471 = vst.msk [vmem:[#allocation5 + $0xa0] sm:$0xff] %vm4450, %v4395
      %4472 = vst.msk [vmem:[#allocation5 + $0xa8] sm:$0xff] %vm4450, %v4397
      %4473 = vst.msk [vmem:[#allocation5 + $0xb0] sm:$0xff] %vm4450, %v4399
      %4474 = vst.msk [vmem:[#allocation5 + $0xb8] sm:$0xff] %vm4450, %v4401
      %4475 = vst.msk [vmem:[#allocation5 + $0xc0] sm:$0xff] %vm4450, %v4403
      %4476 = vst.msk [vmem:[#allocation5 + $0xc8] sm:$0xff] %vm4450, %v4405
      %4477 = vst.msk [vmem:[#allocation5 + $0xd0] sm:$0xff] %vm4450, %v4407
      %4478 = vst.msk [vmem:[#allocation5 + $0xd8] sm:$0xff] %vm4450, %v4409
      %4479 = vst.msk [vmem:[#allocation5 + $0xe0] sm:$0xff] %vm4450, %v4411
      %4480 = vst.msk [vmem:[#allocation5 + $0xe8] sm:$0xff] %vm4450, %v4413
      %4481 = vst.msk [vmem:[#allocation5 + $0xf0] sm:$0xff] %vm4450, %v4415
      %4482 = vst.msk [vmem:[#allocation5 + $0xf8] sm:$0xff] %vm4450, %v4417
      %v4483 = vld [vmem:[#allocation5] sm:$0xff]
      %v4484 = vld [vmem:[#allocation5 + $0x8] sm:$0xff]
      %v4485 = vld [vmem:[#allocation5 + $0x10] sm:$0xff]
      %v4486 = vld [vmem:[#allocation5 + $0x18] sm:$0xff]
      %v4487 = vld [vmem:[#allocation5 + $0x20] sm:$0xff]
      %v4488 = vld [vmem:[#allocation5 + $0x28] sm:$0xff]
      %v4489 = vld [vmem:[#allocation5 + $0x30] sm:$0xff]
      %v4490 = vld [vmem:[#allocation5 + $0x38] sm:$0xff]
      %v4491 = vld [vmem:[#allocation5 + $0x40] sm:$0xff]
      %v4492 = vld [vmem:[#allocation5 + $0x48] sm:$0xff]
      %v4493 = vld [vmem:[#allocation5 + $0x50] sm:$0xff]
      %v4494 = vld [vmem:[#allocation5 + $0x58] sm:$0xff]
      %v4495 = vld [vmem:[#allocation5 + $0x60] sm:$0xff]
      %v4496 = vld [vmem:[#allocation5 + $0x68] sm:$0xff]
      %v4497 = vld [vmem:[#allocation5 + $0x70] sm:$0xff]
      %v4498 = vld [vmem:[#allocation5 + $0x78] sm:$0xff]
      %v4499 = vld [vmem:[#allocation5 + $0x80] sm:$0xff]
      %v4500 = vld [vmem:[#allocation5 + $0x88] sm:$0xff]
      %v4501 = vld [vmem:[#allocation5 + $0x90] sm:$0xff]
      %v4502 = vld [vmem:[#allocation5 + $0x98] sm:$0xff]
      %v4503 = vld [vmem:[#allocation5 + $0xa0] sm:$0xff]
      %v4504 = vld [vmem:[#allocation5 + $0xa8] sm:$0xff]
      %v4505 = vld [vmem:[#allocation5 + $0xb0] sm:$0xff]
      %v4506 = vld [vmem:[#allocation5 + $0xb8] sm:$0xff]
      %v4507 = vld [vmem:[#allocation5 + $0xc0] sm:$0xff]
      %v4508 = vld [vmem:[#allocation5 + $0xc8] sm:$0xff]
      %v4509 = vld [vmem:[#allocation5 + $0xd0] sm:$0xff]
      %v4510 = vld [vmem:[#allocation5 + $0xd8] sm:$0xff]
      %v4511 = vld [vmem:[#allocation5 + $0xe0] sm:$0xff]
      %v4512 = vld [vmem:[#allocation5 + $0xe8] sm:$0xff]
      %v4513 = vld [vmem:[#allocation5 + $0xf0] sm:$0xff]
      %v4514 = vld [vmem:[#allocation5 + $0xf8] sm:$0xff]
      %v4515 = vpack.c.bf16 %v4484, %v4483
      %v4516 = vpack.c.bf16 %v4486, %v4485
      %v4517 = vpack.c.bf16 %v4488, %v4487
      %v4518 = vpack.c.bf16 %v4490, %v4489
      %v4519 = vpack.c.bf16 %v4492, %v4491
      %v4520 = vpack.c.bf16 %v4494, %v4493
      %v4521 = vpack.c.bf16 %v4496, %v4495
      %v4522 = vpack.c.bf16 %v4498, %v4497
      %v4523 = vpack.c.bf16 %v4500, %v4499
      %v4524 = vpack.c.bf16 %v4502, %v4501
      %v4525 = vpack.c.bf16 %v4504, %v4503
      %v4526 = vpack.c.bf16 %v4506, %v4505
      %v4527 = vpack.c.bf16 %v4508, %v4507
      %v4528 = vpack.c.bf16 %v4510, %v4509
      %v4529 = vpack.c.bf16 %v4512, %v4511
      %v4530 = vpack.c.bf16 %v4514, %v4513
      %v4531 = vld [vmem:[%s7] sm:$0xf]
      %v4532 = vld [vmem:[%s7 + $0x4] sm:$0xf]
      %v4533 = vld [vmem:[%s7 + $0x8] sm:$0xf]
      %v4534 = vld [vmem:[%s7 + $0xc] sm:$0xf]
      %v4535 = vld [vmem:[%s7 + $0x10] sm:$0xf]
      %v4536 = vld [vmem:[%s7 + $0x14] sm:$0xf]
      %v4537 = vld [vmem:[%s7 + $0x18] sm:$0xf]
      %v4538 = vld [vmem:[%s7 + $0x1c] sm:$0xf]
      %v4539 = vld [vmem:[%s7 + $0x20] sm:$0xf]
      %v4549 = vunpack.c.l.b16 %v4531
      %v4550 = vunpack.c.l.b16 %v4532
      %v4551 = vunpack.c.l.b16 %v4533
      %v4552 = vunpack.c.l.b16 %v4534
      %v4553 = vunpack.c.l.b16 %v4535
      %v4554 = vunpack.c.l.b16 %v4536
      %v4555 = vunpack.c.l.b16 %v4537
      %v4556 = vunpack.c.l.b16 %v4538
      %v4557 = vunpack.c.l.b16 %v4539
      %v4558 = vpack.c.b16 %v4550, %v4549
      %v4559 = vpack.c.b16 %v4552, %v4551
      %v4560 = vpack.c.b16 %v4554, %v4553
      %v4561 = vpack.c.b16 %v4556, %v4555
      %v4562 = vpack.c.b16 %v4557, %v4557
      %vm4567 = vcmask 588800
      %v4569 = vsel %vm4567, %v4515, 0
      %v4572 = vsel %vm4567, %v4516, 0
      %v4575 = vsel %vm4567, %v4517, 0
      %v4578 = vsel %vm4567, %v4518, 0
      %v4581 = vsel %vm4567, %v4519, 0
      %v4584 = vsel %vm4567, %v4520, 0
      %v4587 = vsel %vm4567, %v4521, 0
      %v4590 = vsel %vm4567, %v4522, 0
      %v4593 = vsel %vm4567, %v4523, 0
      %v4596 = vsel %vm4567, %v4524, 0
      %v4599 = vsel %vm4567, %v4525, 0
      %v4602 = vsel %vm4567, %v4526, 0
      %v4605 = vsel %vm4567, %v4527, 0
      %v4608 = vsel %vm4567, %v4528, 0
      %v4611 = vsel %vm4567, %v4529, 0
      %v4614 = vsel %vm4567, %v4530, 0
      %vm4616 = vcmask 1043456
      %v4618 = vsel %vm4616, %v4562, 0
      %4620 = vmatprep.subr.bf16.mxu0 0
      %4621 = vmatpush1.bf16.msra.mxu0 0
      %4622 = vmatprep.subr.bf16.mxu0 0
      %4623 = vmatpush1.bf16.msra.mxu0 0
      %4624 = vmatprep.subr.bf16.mxu0 0
      %4625 = vmatpush1.bf16.msra.mxu0 0
      %4626 = vmatprep.subr.bf16.mxu0 0
      %4627 = vmatpush1.bf16.msra.mxu0 %v4618
      %4628 = vmatprep.subr.bf16.mxu0 0
      %4629 = vmatpush1.bf16.msra.mxu0 %v4561
      %4630 = vmatprep.subr.bf16.mxu0 0
      %4631 = vmatpush1.bf16.msra.mxu0 %v4560
      %4632 = vmatprep.subr.bf16.mxu0 0
      %4633 = vmatpush1.bf16.msra.mxu0 %v4559
      %4634 = vmatprep.subr.bf16.mxu0 0
      %4635 = vmatpush1.bf16.msra.mxu0 %v4558
      %4636 = vmatprep.subr.bf16.mxu0 0
      %4637 = vmatpush2.bf16.msra.mxu0 0
      %4638 = vmatprep.subr.bf16.mxu0 0
      %4639 = vmatpush2.bf16.msra.mxu0 0
      %4640 = vmatprep.subr.bf16.mxu0 0
      %4641 = vmatpush2.bf16.msra.mxu0 0
      %4642 = vmatprep.subr.bf16.mxu0 0
      %4643 = vmatpush2.bf16.msra.mxu0 0
      %4644 = vmatprep.subr.bf16.mxu0 0
      %4645 = vmatpush2.bf16.msra.mxu0 0
      %4646 = vmatprep.subr.bf16.mxu0 0
      %4647 = vmatpush2.bf16.msra.mxu0 0
      %4648 = vmatprep.subr.bf16.mxu0 0
      %4649 = vmatpush2.bf16.msra.mxu0 0
      %4650 = vmatprep.subr.bf16.mxu0 0
      %4651 = vmatpush2.bf16.msra.mxu0 0
      %4652 = vmatprep.mubr.bf16.mxu0 0
      %4653 = vmatmul.mubr.bf16.gmra.mxu0 %v4569
      %v4654 = vpop.f32.mrf.mxu0
      %v4655 = vadd.f32 0.0, %v4654
      %v4656 = vpop.f32.mrf.mxu0
      %v4657 = vpop.f32.mrf.mxu0
      %v4658 = vadd.f32 0.0, %v4657
      %v4659 = vpop.f32.mrf.mxu0
      %4660 = vmatprep.mubr.bf16.mxu0 0
      %4661 = vmatmul.mubr.bf16.gmra.mxu0 %v4572
      %v4662 = vpop.f32.mrf.mxu0
      %v4663 = vadd.f32 0.0, %v4662
      %v4664 = vpop.f32.mrf.mxu0
      %v4665 = vpop.f32.mrf.mxu0
      %v4666 = vadd.f32 0.0, %v4665
      %v4667 = vpop.f32.mrf.mxu0
      %4668 = vmatprep.mubr.bf16.mxu0 0
      %4669 = vmatmul.mubr.bf16.gmra.mxu0 %v4575
      %v4670 = vpop.f32.mrf.mxu0
      %v4671 = vadd.f32 0.0, %v4670
      %v4672 = vpop.f32.mrf.mxu0
      %v4673 = vpop.f32.mrf.mxu0
      %v4674 = vadd.f32 0.0, %v4673
      %v4675 = vpop.f32.mrf.mxu0
      %4676 = vmatprep.mubr.bf16.mxu0 0
      %4677 = vmatmul.mubr.bf16.gmra.mxu0 %v4578
      %v4678 = vpop.f32.mrf.mxu0
      %v4679 = vadd.f32 0.0, %v4678
      %v4680 = vpop.f32.mrf.mxu0
      %v4681 = vpop.f32.mrf.mxu0
      %v4682 = vadd.f32 0.0, %v4681
      %v4683 = vpop.f32.mrf.mxu0
      %4684 = vmatprep.mubr.bf16.mxu0 0
      %4685 = vmatmul.mubr.bf16.gmra.mxu0 %v4581
      %v4686 = vpop.f32.mrf.mxu0
      %v4687 = vadd.f32 0.0, %v4686
      %v4688 = vpop.f32.mrf.mxu0
      %v4689 = vpop.f32.mrf.mxu0
      %v4690 = vadd.f32 0.0, %v4689
      %v4691 = vpop.f32.mrf.mxu0
      %4692 = vmatprep.mubr.bf16.mxu0 0
      %4693 = vmatmul.mubr.bf16.gmra.mxu0 %v4584
      %v4694 = vpop.f32.mrf.mxu0
      %v4695 = vadd.f32 0.0, %v4694
      %v4696 = vpop.f32.mrf.mxu0
      %v4697 = vpop.f32.mrf.mxu0
      %v4698 = vadd.f32 0.0, %v4697
      %v4699 = vpop.f32.mrf.mxu0
      %4700 = vmatprep.mubr.bf16.mxu0 0
      %4701 = vmatmul.mubr.bf16.gmra.mxu0 %v4587
      %v4702 = vpop.f32.mrf.mxu0
      %v4703 = vadd.f32 0.0, %v4702
      %v4704 = vpop.f32.mrf.mxu0
      %v4705 = vpop.f32.mrf.mxu0
      %v4706 = vadd.f32 0.0, %v4705
      %v4707 = vpop.f32.mrf.mxu0
      %4708 = vmatprep.mubr.bf16.mxu0 0
      %4709 = vmatmul.mubr.bf16.gmra.mxu0 %v4590
      %v4710 = vpop.f32.mrf.mxu0
      %v4711 = vadd.f32 0.0, %v4710
      %v4712 = vpop.f32.mrf.mxu0
      %v4713 = vpop.f32.mrf.mxu0
      %v4714 = vadd.f32 0.0, %v4713
      %v4715 = vpop.f32.mrf.mxu0
      %4716 = vmatprep.mubr.bf16.mxu0 0
      %4717 = vmatmul.mubr.bf16.gmra.mxu0 %v4593
      %v4718 = vpop.f32.mrf.mxu0
      %v4719 = vadd.f32 0.0, %v4718
      %v4720 = vpop.f32.mrf.mxu0
      %v4721 = vpop.f32.mrf.mxu0
      %v4722 = vadd.f32 0.0, %v4721
      %v4723 = vpop.f32.mrf.mxu0
      %4724 = vmatprep.mubr.bf16.mxu0 0
      %4725 = vmatmul.mubr.bf16.gmra.mxu0 %v4596
      %v4726 = vpop.f32.mrf.mxu0
      %v4727 = vadd.f32 0.0, %v4726
      %v4728 = vpop.f32.mrf.mxu0
      %v4729 = vpop.f32.mrf.mxu0
      %v4730 = vadd.f32 0.0, %v4729
      %v4731 = vpop.f32.mrf.mxu0
      %4732 = vmatprep.mubr.bf16.mxu0 0
      %4733 = vmatmul.mubr.bf16.gmra.mxu0 %v4599
      %v4734 = vpop.f32.mrf.mxu0
      %v4735 = vadd.f32 0.0, %v4734
      %v4736 = vpop.f32.mrf.mxu0
      %v4737 = vpop.f32.mrf.mxu0
      %v4738 = vadd.f32 0.0, %v4737
      %v4739 = vpop.f32.mrf.mxu0
      %4740 = vmatprep.mubr.bf16.mxu0 0
      %4741 = vmatmul.mubr.bf16.gmra.mxu0 %v4602
      %v4742 = vpop.f32.mrf.mxu0
      %v4743 = vadd.f32 0.0, %v4742
      %v4744 = vpop.f32.mrf.mxu0
      %v4745 = vpop.f32.mrf.mxu0
      %v4746 = vadd.f32 0.0, %v4745
      %v4747 = vpop.f32.mrf.mxu0
      %4748 = vmatprep.mubr.bf16.mxu0 0
      %4749 = vmatmul.mubr.bf16.gmra.mxu0 %v4605
      %v4750 = vpop.f32.mrf.mxu0
      %v4751 = vadd.f32 0.0, %v4750
      %v4752 = vpop.f32.mrf.mxu0
      %v4753 = vpop.f32.mrf.mxu0
      %v4754 = vadd.f32 0.0, %v4753
      %v4755 = vpop.f32.mrf.mxu0
      %4756 = vmatprep.mubr.bf16.mxu0 0
      %4757 = vmatmul.mubr.bf16.gmra.mxu0 %v4608
      %v4758 = vpop.f32.mrf.mxu0
      %v4759 = vadd.f32 0.0, %v4758
      %v4760 = vpop.f32.mrf.mxu0
      %v4761 = vpop.f32.mrf.mxu0
      %v4762 = vadd.f32 0.0, %v4761
      %v4763 = vpop.f32.mrf.mxu0
      %4764 = vmatprep.mubr.bf16.mxu0 0
      %4765 = vmatmul.mubr.bf16.gmra.mxu0 %v4611
      %v4766 = vpop.f32.mrf.mxu0
      %v4767 = vadd.f32 0.0, %v4766
      %v4768 = vpop.f32.mrf.mxu0
      %v4769 = vpop.f32.mrf.mxu0
      %v4770 = vadd.f32 0.0, %v4769
      %v4771 = vpop.f32.mrf.mxu0
      %4772 = vmatprep.mubr.bf16.mxu0 0
      %4773 = vmatmul.mubr.bf16.gmra.mxu0 %v4614
      %v4774 = vpop.f32.mrf.mxu0
      %v4775 = vadd.f32 0.0, %v4774
      %v4776 = vpop.f32.mrf.mxu0
      %v4777 = vpop.f32.mrf.mxu0
      %v4778 = vadd.f32 0.0, %v4777
      %v4779 = vpop.f32.mrf.mxu0
      %4780 = vdwg.mxu0
      %v4781 = vld [vmem:[%s8] sm:$0x1]
      %v4783 = vlaneseq
      %v4784 = vshrl.u32 %v4783, 7
      %v4785 = vsub.s32 0, %v4784
      %v4786 = vrot.slane %v4781, %v4785
      %v4788 = vmul.f32 %v4655, %v4786
      %v4789 = vmul.f32 %v4658, %v4786
      %v4790 = vmul.f32 %v4663, %v4786
      %v4791 = vmul.f32 %v4666, %v4786
      %v4792 = vmul.f32 %v4671, %v4786
      %v4793 = vmul.f32 %v4674, %v4786
      %v4794 = vmul.f32 %v4679, %v4786
      %v4795 = vmul.f32 %v4682, %v4786
      %v4796 = vmul.f32 %v4687, %v4786
      %v4797 = vmul.f32 %v4690, %v4786
      %v4798 = vmul.f32 %v4695, %v4786
      %v4799 = vmul.f32 %v4698, %v4786
      %v4800 = vmul.f32 %v4703, %v4786
      %v4801 = vmul.f32 %v4706, %v4786
      %v4802 = vmul.f32 %v4711, %v4786
      %v4803 = vmul.f32 %v4714, %v4786
      %v4804 = vmul.f32 %v4719, %v4786
      %v4805 = vmul.f32 %v4722, %v4786
      %v4806 = vmul.f32 %v4727, %v4786
      %v4807 = vmul.f32 %v4730, %v4786
      %v4808 = vmul.f32 %v4735, %v4786
      %v4809 = vmul.f32 %v4738, %v4786
      %v4810 = vmul.f32 %v4743, %v4786
      %v4811 = vmul.f32 %v4746, %v4786
      %v4812 = vmul.f32 %v4751, %v4786
      %v4813 = vmul.f32 %v4754, %v4786
      %v4814 = vmul.f32 %v4759, %v4786
      %v4815 = vmul.f32 %v4762, %v4786
      %v4816 = vmul.f32 %v4767, %v4786
      %v4817 = vmul.f32 %v4770, %v4786
      %v4818 = vmul.f32 %v4775, %v4786
      %v4819 = vmul.f32 %v4778, %v4786
      %v4820 = vld [vmem:[%s9] sm:$0x1]
      %v4822 = vlaneseq
      %v4823 = vshrl.u32 %v4822, 7
      %v4824 = vsub.s32 0, %v4823
      %v4825 = vrot.slane %v4820, %v4824
      %v4827 = vadd.f32 %v4788, %v4825
      %v4828 = vadd.f32 %v4789, %v4825
      %v4829 = vadd.f32 %v4790, %v4825
      %v4830 = vadd.f32 %v4791, %v4825
      %v4831 = vadd.f32 %v4792, %v4825
      %v4832 = vadd.f32 %v4793, %v4825
      %v4833 = vadd.f32 %v4794, %v4825
      %v4834 = vadd.f32 %v4795, %v4825
      %v4835 = vadd.f32 %v4796, %v4825
      %v4836 = vadd.f32 %v4797, %v4825
      %v4837 = vadd.f32 %v4798, %v4825
      %v4838 = vadd.f32 %v4799, %v4825
      %v4839 = vadd.f32 %v4800, %v4825
      %v4840 = vadd.f32 %v4801, %v4825
      %v4841 = vadd.f32 %v4802, %v4825
      %v4842 = vadd.f32 %v4803, %v4825
      %v4843 = vadd.f32 %v4804, %v4825
      %v4844 = vadd.f32 %v4805, %v4825
      %v4845 = vadd.f32 %v4806, %v4825
      %v4846 = vadd.f32 %v4807, %v4825
      %v4847 = vadd.f32 %v4808, %v4825
      %v4848 = vadd.f32 %v4809, %v4825
      %v4849 = vadd.f32 %v4810, %v4825
      %v4850 = vadd.f32 %v4811, %v4825
      %v4851 = vadd.f32 %v4812, %v4825
      %v4852 = vadd.f32 %v4813, %v4825
      %v4853 = vadd.f32 %v4814, %v4825
      %v4854 = vadd.f32 %v4815, %v4825
      %v4855 = vadd.f32 %v4816, %v4825
      %v4856 = vadd.f32 %v4817, %v4825
      %v4857 = vadd.f32 %v4818, %v4825
      %v4858 = vadd.f32 %v4819, %v4825
      %v4859 = vmax.f32 %v4827, 0.0
      %v4860 = vmax.f32 %v4828, 0.0
      %v4861 = vmax.f32 %v4829, 0.0
      %v4862 = vmax.f32 %v4830, 0.0
      %v4863 = vmax.f32 %v4831, 0.0
      %v4864 = vmax.f32 %v4832, 0.0
      %v4865 = vmax.f32 %v4833, 0.0
      %v4866 = vmax.f32 %v4834, 0.0
      %v4867 = vmax.f32 %v4835, 0.0
      %v4868 = vmax.f32 %v4836, 0.0
      %v4869 = vmax.f32 %v4837, 0.0
      %v4870 = vmax.f32 %v4838, 0.0
      %v4871 = vmax.f32 %v4839, 0.0
      %v4872 = vmax.f32 %v4840, 0.0
      %v4873 = vmax.f32 %v4841, 0.0
      %v4874 = vmax.f32 %v4842, 0.0
      %v4875 = vmax.f32 %v4843, 0.0
      %v4876 = vmax.f32 %v4844, 0.0
      %v4877 = vmax.f32 %v4845, 0.0
      %v4878 = vmax.f32 %v4846, 0.0
      %v4879 = vmax.f32 %v4847, 0.0
      %v4880 = vmax.f32 %v4848, 0.0
      %v4881 = vmax.f32 %v4849, 0.0
      %v4882 = vmax.f32 %v4850, 0.0
      %v4883 = vmax.f32 %v4851, 0.0
      %v4884 = vmax.f32 %v4852, 0.0
      %v4885 = vmax.f32 %v4853, 0.0
      %v4886 = vmax.f32 %v4854, 0.0
      %v4887 = vmax.f32 %v4855, 0.0
      %v4888 = vmax.f32 %v4856, 0.0
      %v4889 = vmax.f32 %v4857, 0.0
      %v4890 = vmax.f32 %v4858, 0.0
      %4891 = vst.msk [vmem:[%s379] sm:$0xff] %vm644, %v4859
      %4892 = vst.msk [vmem:[%s379 + $0x8] sm:$0xff] %vm644, %v4860
      %4893 = vst.msk [vmem:[%s379 + $0x10] sm:$0xff] %vm644, %v4861
      %4894 = vst.msk [vmem:[%s379 + $0x18] sm:$0xff] %vm644, %v4862
      %4895 = vst.msk [vmem:[%s379 + $0x20] sm:$0xff] %vm644, %v4863
      %4896 = vst.msk [vmem:[%s379 + $0x28] sm:$0xff] %vm644, %v4864
      %4897 = vst.msk [vmem:[%s379 + $0x30] sm:$0xff] %vm644, %v4865
      %4898 = vst.msk [vmem:[%s379 + $0x38] sm:$0xff] %vm644, %v4866
      %4899 = vst.msk [vmem:[%s379 + $0x40] sm:$0xff] %vm644, %v4867
      %4900 = vst.msk [vmem:[%s379 + $0x48] sm:$0xff] %vm644, %v4868
      %4901 = vst.msk [vmem:[%s379 + $0x50] sm:$0xff] %vm644, %v4869
      %4902 = vst.msk [vmem:[%s379 + $0x58] sm:$0xff] %vm644, %v4870
      %4903 = vst.msk [vmem:[%s379 + $0x60] sm:$0xff] %vm644, %v4871
      %4904 = vst.msk [vmem:[%s379 + $0x68] sm:$0xff] %vm644, %v4872
      %4905 = vst.msk [vmem:[%s379 + $0x70] sm:$0xff] %vm644, %v4873
      %4906 = vst.msk [vmem:[%s379 + $0x78] sm:$0xff] %vm644, %v4874
      %4907 = vst.msk [vmem:[%s379 + $0x80] sm:$0xff] %vm644, %v4875
      %4908 = vst.msk [vmem:[%s379 + $0x88] sm:$0xff] %vm644, %v4876
      %4909 = vst.msk [vmem:[%s379 + $0x90] sm:$0xff] %vm644, %v4877
      %4910 = vst.msk [vmem:[%s379 + $0x98] sm:$0xff] %vm644, %v4878
      %4911 = vst.msk [vmem:[%s379 + $0xa0] sm:$0xff] %vm644, %v4879
      %4912 = vst.msk [vmem:[%s379 + $0xa8] sm:$0xff] %vm644, %v4880
      %4913 = vst.msk [vmem:[%s379 + $0xb0] sm:$0xff] %vm644, %v4881
      %4914 = vst.msk [vmem:[%s379 + $0xb8] sm:$0xff] %vm644, %v4882
      %4915 = vst.msk [vmem:[%s379 + $0xc0] sm:$0xff] %vm644, %v4883
      %4916 = vst.msk [vmem:[%s379 + $0xc8] sm:$0xff] %vm644, %v4884
      %4917 = vst.msk [vmem:[%s379 + $0xd0] sm:$0xff] %vm644, %v4885
      %4918 = vst.msk [vmem:[%s379 + $0xd8] sm:$0xff] %vm644, %v4886
      %4919 = vst.msk [vmem:[%s379 + $0xe0] sm:$0xff] %vm644, %v4887
      %4920 = vst.msk [vmem:[%s379 + $0xe8] sm:$0xff] %vm644, %v4888
      %4921 = vst.msk [vmem:[%s379 + $0xf0] sm:$0xff] %vm644, %v4889
      %4922 = vst.msk [vmem:[%s379 + $0xf8] sm:$0xff] %vm644, %v4890
      %p4923 = scmp.lt.s32.totalorder %s21, 1
      %s4924 = scalar_select %p4923, %s21, 1
      %s4925 = smul.addr %s4924, 32
      %s4926 = smul.addr %s4925, 8
      %s4927 = scalar_lea.vmem %s10, %s4926
      // Predicated region
      $region61: #{up_forward.1} parent=59 // pred_check
        %p4928 = pneg %p259
      $region62: #{up_forward.1} parent=59 // pred_check_branch
        %4930 = sbr.rel (%p4928) target = $region64
      $region63: #{up_forward.1} parent=59 // pred_region
        _
      $region64: #{up_forward.1} parent=59 // pred_fallthru
        _
    $region60: #{up_forward.1} parent=5 // pred_fallthru
      _
    %p4931 = scmp.le.s32.totalorder 2, %s16
    // Predicated region
    $region65: #{up_forward.1} parent=5 // pred_check
      %p4932 = pneg %p4931
    $region66: #{up_forward.1} parent=5 // pred_check_branch
      %4934 = sbr.rel (%p4932) target = $region68
    $region67: #{up_forward.1} parent=5 // pred_region
      %s4935 = ssub.s32 %s16, 2
      // Predicated region
      $region69: #{up_forward.1} parent=67 // pred_check
        %p4936 = pneg %p265
      $region70: #{up_forward.1} parent=67 // pred_check_branch
        %4938 = sbr.rel (%p4936) target = $region72
      $region71: #{up_forward.1} parent=67 // pred_region
        %p4939 = scmp.lt.s32.totalorder %s22, 1
        %s4940 = scalar_select %p4939, %s22, 1
        %s4941 = smul.addr %s4940, 32
        %s4942 = smul.addr %s4941, 8
        %s4943 = scalar_lea.vmem %s10, %s4942
      $region72: #{up_forward.1} parent=67 // pred_fallthru
        _
    $region68: #{up_forward.1} parent=5 // pred_fallthru
      _
  $region6: #{up_forward.1} parent=0 // loop_footer
    %s20 = sadd.s32 1, %s16
  $region7: #{up_forward.1} parent=0 // loop_footer_branch
    %15 = sbr.rel target = $region3
  $region8: #{up_forward.1} parent=0 // loop_exit
    _

</llo_original>
